<compile_context>
chip_gen: v7x
topology: tpu7x:2x2x1
jax: 0.10.0
libtpu: 0.0.40
codegen_flags: <defaults>
</compile_context>

<pallas_src>
import math

import jax
import jax.numpy as jnp
from jax.experimental import pallas as pl
from jax.experimental.pallas import tpu as pltpu


LANE = 128  # every hidden / output feature dim is zero-padded to one lane tile

# indices into the packed weight slab (6, LANE, LANE), bf16
_WQ, _WKV, _WOUT, _W1, _W2, _WHEAD = range(6)
# indices into the packed bias slab (8, LANE), f32
_BQPRE, _BKVPRE, _BQ, _BKV, _BOUT, _B1, _B2, _BHEAD = range(8)


def _round_up(x, m):
    return -(-x // m) * m


def _necto_kernel(q_ref, kv_ref, m_ref, wq_pre_ref, wkv_pre_ref, w_ref, b_ref, o_ref):
    f32, bf16 = jnp.float32, jnp.bfloat16
    tb = q_ref.shape[0]          # batch tile
    skv = kv_ref.shape[1]        # (padded) kv sequence length, multiple of 16
    fkv = kv_ref.shape[2]        # (padded) kv feature dim
    lane = o_ref.shape[1]        # = LANE

    relu = lambda x: jnp.maximum(x, 0.0)
    dot = lambda a, b: jnp.dot(a, b, preferred_element_type=f32)  # bf16 MXU, f32 acc

    q0 = q_ref[...]                                   # (TB, Fq)       bf16, entity 0 only
    kv = kv_ref[...].reshape(tb * skv, fkv)           # (TB*Skv, Fkv)  bf16, row-fused
    mask = m_ref[...]                                 # (TB, Skv)      f32, 1.0 == masked

    # --- EARL: entity preprocessing (bf16 matmuls, f32 accumulation) ----------
    q_emb = relu(dot(q0, wq_pre_ref[...]) + b_ref[_BQPRE:_BQPRE + 1, :])        # (TB, 128)
    kv_emb = relu(dot(kv, wkv_pre_ref[...]) + b_ref[_BKVPRE:_BKVPRE + 1, :])    # (TB*Skv, 128)

    # --- EARL: cross attention, fused K|V projection ---------------------------
    # 1/sqrt(D) is pre-folded into W_Q / b_Q; W_KV holds K in output lanes 0:D
    # and V in lanes D:2D, so K and V come out of one MXU pass.
    qv = dot(q_emb.astype(bf16), w_ref[_WQ]) + b_ref[_BQ:_BQ + 1, :]            # (TB, 128)
    kvp = dot(kv_emb.astype(bf16), w_ref[_WKV]) + b_ref[_BKV:_BKV + 1, :]
    kvp = kvp.reshape(tb, skv, lane)                                            # (TB, Skv, 128)

    # qv is exactly zero outside lanes 0:D, so the lane reduce only sees q·k.
    scores = jnp.sum(qv[:, None, :] * kvp, axis=-1)                             # (TB, Skv) f32
    scores = scores + mask * (-1e9)          # key padding mask (additive, like torch)
    smax = jnp.max(scores, axis=-1, keepdims=True)
    p = jnp.exp(scores - smax)
    denom = jnp.sum(p, axis=-1, keepdims=True)
    attn = p * pl.reciprocal(denom, approx=True)                                # EUP divide

    # attn-weighted sum keeps (unused) attn@K in lanes 0:D and attn@V in lanes
    # D:2D; w_out is repacked with zero rows 0:D so only the V lanes contribute.
    att = jnp.sum(attn[:, :, None] * kvp, axis=1)                               # (TB, 128)
    att = dot(att.astype(bf16), w_ref[_WOUT]) + b_ref[_BOUT:_BOUT + 1, :]

    x = q_emb + att                                   # residual (entity 0 only), f32

    # --- EARL: feed-forward + residual -----------------------------------------
    h = relu(dot(x.astype(bf16), w_ref[_W1]) + b_ref[_B1:_B1 + 1, :])
    ff = dot(h.astype(bf16), w_ref[_W2]) + b_ref[_B2:_B2 + 1, :]
    res = relu(x + ff)

    # --- Necto head: output(relu(res)), lane-dense store -----------------------
    o_ref[...] = dot(res.astype(bf16), w_ref[_WHEAD]) + b_ref[_BHEAD:_BHEAD + 1, :]


def pack_params(params):
    """One-time host-side packing: split w_in, fold softmax scale, fuse K|V,
    repack w_out, pad to lane tiles, cast weights to bf16 and stack into two
    slabs. Call once, reuse across forward calls."""
    fq = params["wq_pre"].shape[0]
    fkv = params["wkv_pre"].shape[0]
    d = params["wq_pre"].shape[1]
    d_ff = params["w1"].shape[1]
    n_out = params["w_head"].shape[1]
    assert max(d_ff, n_out) <= LANE and 2 * d <= LANE, "dims must fit one lane tile"

    scale = 1.0 / math.sqrt(d)
    w_in, b_in = params["w_in"], params["b_in"]
    wq = w_in[:, :d] * scale                 # fold 1/sqrt(D) into the Q projection
    wk = w_in[:, d:2 * d]
    wv = w_in[:, 2 * d:3 * d]
    bq = b_in[:, :d] * scale
    bk = b_in[:, d:2 * d]
    bv = b_in[:, 2 * d:3 * d]

    def pad2(x, rows, cols, row_off=0, col_off=0):
        out = jnp.zeros((rows, cols), x.dtype)
        return out.at[row_off:row_off + x.shape[0], col_off:col_off + x.shape[1]].set(x)

    # fused K|V projection: K in output lanes 0:D, V in lanes D:2D
    w_kv = jnp.concatenate([wk, wv], axis=1)                     # (D, 2D)
    b_kv = jnp.concatenate([bk, bv], axis=1)                     # (1, 2D)
    # repacked w_out: live rows at D:2D (the V lanes); zero rows kill the K lanes
    w_out_r = pad2(params["w_out"], LANE, LANE, row_off=d)

    mats = [pad2(wq, LANE, LANE), pad2(w_kv, LANE, LANE), w_out_r,
            pad2(params["w1"], LANE, LANE), pad2(params["w2"], LANE, LANE),
            pad2(params["w_head"], LANE, LANE)]
    w_slab = jnp.stack(mats).astype(jnp.bfloat16)                # (6,128,128) bf16

    biases = [params["bq_pre"], params["bkv_pre"], bq, b_kv,
              params["b_out"], params["b1"], params["b2"], params["b_head"]]
    b_slab = jnp.concatenate([pad2(b, 1, LANE) for b in biases], axis=0)  # (8,128) f32

    fq_p = _round_up(fq, 16)          # bf16-friendly sublane counts for the pre-layers
    fkv_p = _round_up(fkv, 16)
    return {
        "wq_pre": pad2(params["wq_pre"], fq_p, LANE).astype(jnp.bfloat16),    # (Fq_p,128)
        "wkv_pre": pad2(params["wkv_pre"], fkv_p, LANE).astype(jnp.bfloat16), # (Fkv_p,128)
        "w_slab": w_slab,
        "b_slab": b_slab.astype(jnp.float32),
        "fq_p": int(fq_p),
        "fkv_p": int(fkv_p),
        "n_out": int(n_out),
    }


def necto_forward(q, kv, m, packed):
    B, _sq, Fq = q.shape
    _, Skv, Fkv = kv.shape
    n_out = packed["n_out"]
    fq_p, fkv_p = packed["fq_p"], packed["fkv_p"]

    # Necto keeps earl_output[:, 0, :] only -> only query entity 0 matters.
    q0 = q[:, 0, :].astype(jnp.float32)                          # (B, Fq)
    kv = kv.astype(jnp.float32)
    m = m.astype(jnp.float32)

    # pad feature dims (zero columns) to the packed weights' row counts
    q0 = jnp.pad(q0, ((0, 0), (0, fq_p - Fq)))
    kv = jnp.pad(kv, ((0, 0), (0, 0), (0, fkv_p - Fkv)))

    # pad kv sequence to a bf16-friendly sublane multiple; padded keys fully masked
    skv_p = _round_up(Skv, 16)
    if skv_p != Skv:
        kv = jnp.pad(kv, ((0, 0), (0, skv_p - Skv), (0, 0)))
        m = jnp.pad(m, ((0, 0), (0, skv_p - Skv)), constant_values=1.0)

    # batch tiling: cap tb*skv_p so the (tb, skv_p, 128) f32 intermediates stay
    # ~2 MiB each (fits v5e's 16 MiB scoped default and v7x's 64 MiB physical
    # with double-buffering headroom); always >=2 grid steps when B >= 2 so both
    # v7x TensorCores get work; keep tb a multiple of 16 for bf16 blocks.
    MAX_FUSED_KV_ROWS = 4096
    tb_cap = max(16, min(128, (MAX_FUSED_KV_ROWS // skv_p) // 16 * 16))
    if B == 1:
        tb = 16
        steps = 1
    else:
        tb = min(tb_cap, max(16, _round_up((B + 1) // 2, 16)))
        steps = max(2, -(-B // tb))
    b_pad = steps * tb

    q0 = jnp.pad(q0, ((0, b_pad - B), (0, 0))).astype(jnp.bfloat16)
    kv = jnp.pad(kv, ((0, b_pad - B), (0, 0), (0, 0))).astype(jnp.bfloat16)
    m = jnp.pad(m, ((0, b_pad - B), (0, 0)))

    wq_pre, wkv_pre = packed["wq_pre"], packed["wkv_pre"]
    w_slab, b_slab = packed["w_slab"], packed["b_slab"]

    grid_spec = pltpu.PrefetchScalarGridSpec(
        num_scalar_prefetch=0,
        grid=(steps,),
        in_specs=[
            pl.BlockSpec((tb, fq_p), lambda b: (b, 0)),
            pl.BlockSpec((tb, skv_p, fkv_p), lambda b: (b, 0, 0)),
            pl.BlockSpec((tb, skv_p), lambda b: (b, 0)),
            # constant weights: same block every step
            pl.BlockSpec(wq_pre.shape, lambda b: (0, 0)),
            pl.BlockSpec(wkv_pre.shape, lambda b: (0, 0)),
            pl.BlockSpec(w_slab.shape, lambda b: (0, 0, 0)),
            pl.BlockSpec(b_slab.shape, lambda b: (0, 0)),
        ],
        out_specs=pl.BlockSpec((tb, LANE), lambda b: (b, 0)),
    )

    out = pl.pallas_call(
        _necto_kernel,
        out_shape=jax.ShapeDtypeStruct((b_pad, LANE), jnp.float32),
        grid_spec=grid_spec,
        compiler_params=pltpu.CompilerParams(
            dimension_semantics=("parallel",),
            vmem_limit_bytes=48 * 1024 * 1024,   # above v5e/v6e scoped defaults, under v7x physical
        ),
    )(q0, kv, m, wq_pre, wkv_pre, w_slab, b_slab)

    return out[:B, :n_out]


# ----------------------------- init + reference -------------------------------

def _xavier_uniform(key, shape):
    fan_in, fan_out = shape
    a = math.sqrt(6.0 / (fan_in + fan_out))
    return jax.random.uniform(key, shape, jnp.float32, minval=-a, maxval=a)


def init_params(key, fq, fkv, d, d_ff, n_out):
    ks = jax.random.split(key, 8)
    z = lambda n: jnp.zeros((1, n), jnp.float32)
    return {
        "wq_pre": _xavier_uniform(ks[0], (fq, d)),      "bq_pre": z(d),
        "wkv_pre": _xavier_uniform(ks[1], (fkv, d)),    "bkv_pre": z(d),
        "w_in": _xavier_uniform(ks[2], (d, 3 * d)),     "b_in": z(3 * d),
        "w_out": _xavier_uniform(ks[3], (d, d)),        "b_out": z(d),
        "w1": _xavier_uniform(ks[4], (d, d_ff)),        "b1": z(d_ff),
        "w2": _xavier_uniform(ks[5], (d_ff, d)),        "b2": z(d),
        "w_head": _xavier_uniform(ks[6], (d, n_out)),   "b_head": z(n_out),
    }


def _reference(q, kv, m, params, d):
    # plain-JAX f32 reference of the same forward, for a correctness check
    relu = lambda x: jnp.maximum(x, 0.0)
    q_emb = relu(q @ params["wq_pre"] + params["bq_pre"])
    kv_emb = relu(kv @ params["wkv_pre"] + params["bkv_pre"])
    w_in, b_in = params["w_in"], params["b_in"]
    Q = q_emb @ w_in[:, :d] + b_in[:, :d]
    K = kv_emb @ w_in[:, d:2 * d] + b_in[:, d:2 * d]
    V = kv_emb @ w_in[:, 2 * d:] + b_in[:, 2 * d:]
    scores = jnp.einsum("bqd,bkd->bqk", Q, K) / math.sqrt(d)
    scores = scores + m[:, None, :] * (-1e9)
    attn = jax.nn.softmax(scores, axis=-1)
    att = jnp.einsum("bqk,bkd->bqd", attn, V) @ params["w_out"] + params["b_out"]
    x = q_emb + att
    ff = relu(x @ params["w1"] + params["b1"]) @ params["w2"] + params["b2"]
    res = x + ff
    out = relu(res) @ params["w_head"] + params["b_head"]
    return out[:, 0, :]


if __name__ == "__main__":
    B, Sq, Skv = 2, 8, 8
    Fq, Fkv = 32, 24          # EARL defaults: query_features=32, key_value_features=24
    D, D_FF, N_OUT = 32, 32, 8

    key = jax.random.PRNGKey(0)
    k_q, k_kv, k_p = jax.random.split(key, 3)

    q = jax.random.normal(k_q, (B, Sq, Fq), jnp.float32)
    kv = jax.random.normal(k_kv, (B, Skv, Fkv), jnp.float32)
    m = jnp.zeros((B, Skv), jnp.float32).at[1, -2:].set(1.0)   # mask last 2 kv of batch 1

    params = init_params(k_p, Fq, Fkv, D, D_FF, N_OUT)
    packed = pack_params(params)   # one-time host-side packing

    out = necto_forward(q, kv, m, packed)
    out = jax.block_until_ready(out)

    ref = _reference(q, kv, m, params, D)
    assert out.shape == (B, N_OUT)
    # tolerance accounts for the bf16 MXU path (f32 accumulation) and the
    # hardware approximate reciprocal in the softmax denominator.
    err = float(jnp.max(jnp.abs(out - ref)))
    assert jnp.allclose(out, ref, atol=6e-2, rtol=6e-2), err

    print("KERNEL_OK")
</pallas_src>

<mosaic_0001>
module attributes {stable_mosaic.version = 11 : i64} {
  func.func @_necto_kernel(%arg0: i32, %arg1: memref<16x32xbf16, #tpu.memory_space<vmem>>, %arg2: memref<16x16x32xbf16, #tpu.memory_space<vmem>>, %arg3: memref<16x16xf32, #tpu.memory_space<vmem>>, %arg4: memref<32x128xbf16, #tpu.memory_space<vmem>>, %arg5: memref<32x128xbf16, #tpu.memory_space<vmem>>, %arg6: memref<6x128x128xbf16, #tpu.memory_space<vmem>>, %arg7: memref<8x128xf32, #tpu.memory_space<vmem>>, %arg8: memref<16x128xf32, #tpu.memory_space<vmem>>) attributes {dimension_semantics = [#tpu.dimension_semantics<parallel>], iteration_bounds = array<i64: 2>, scalar_prefetch = 0 : i64, scratch_operands = 0 : i64, tpu.core_type = #tpu.core_type<tc>, window_params = [{transform_indices = @transform_0, window_bounds = array<i64: 16, 32>}, {transform_indices = @transform_1, window_bounds = array<i64: 16, 16, 32>}, {transform_indices = @transform_2, window_bounds = array<i64: 16, 16>}, {pipeline_mode = #tpu.pipeline_mode<synchronous>, transform_indices = @transform_3, window_bounds = array<i64: 32, 128>}, {pipeline_mode = #tpu.pipeline_mode<synchronous>, transform_indices = @transform_4, window_bounds = array<i64: 32, 128>}, {pipeline_mode = #tpu.pipeline_mode<synchronous>, transform_indices = @transform_5, window_bounds = array<i64: 6, 128, 128>}, {pipeline_mode = #tpu.pipeline_mode<synchronous>, transform_indices = @transform_6, window_bounds = array<i64: 8, 128>}, {transform_indices = @transform_7, window_bounds = array<i64: 16, 128>}]} {
    %c0 = arith.constant 0 : index
    %c0_0 = arith.constant 0 : index
    %0 = vector.load %arg1[%c0, %c0_0] : memref<16x32xbf16, #tpu.memory_space<vmem>>, vector<16x32xbf16>
    %c0_1 = arith.constant 0 : index
    %c0_2 = arith.constant 0 : index
    %c0_3 = arith.constant 0 : index
    %1 = vector.load %arg2[%c0_1, %c0_2, %c0_3] : memref<16x16x32xbf16, #tpu.memory_space<vmem>>, vector<16x16x32xbf16>
    %2 = vector.shape_cast %1 : vector<16x16x32xbf16> to vector<256x32xbf16>
    %c0_4 = arith.constant 0 : index
    %c0_5 = arith.constant 0 : index
    %3 = vector.load %arg3[%c0_4, %c0_5] : memref<16x16xf32, #tpu.memory_space<vmem>>, vector<16x16xf32>
    %c0_6 = arith.constant 0 : index
    %c0_7 = arith.constant 0 : index
    %4 = vector.load %arg4[%c0_6, %c0_7] : memref<32x128xbf16, #tpu.memory_space<vmem>>, vector<32x128xbf16>
    %cst = arith.constant dense<0.000000e+00> : vector<16x128xf32>
    %5 = tpu.matmul %0, %4, %cst {dimension_numbers = #tpu.dot_dimension_numbers<[1], [0], [0], [1], [0, 0, 1, 1], [], []>} : vector<16x32xbf16>, vector<32x128xbf16>, vector<16x128xf32> -> vector<16x128xf32>
    %c0_8 = arith.constant 0 : index
    %c0_9 = arith.constant 0 : index
    %6 = vector.load %arg7[%c0_8, %c0_9] : memref<8x128xf32, #tpu.memory_space<vmem>>, vector<1x128xf32>
    %7 = vector.broadcast %6 : vector<1x128xf32> to vector<16x128xf32>
    %8 = arith.addf %5, %7 : vector<16x128xf32>
    %cst_10 = arith.constant 0.000000e+00 : f32
    %9 = vector.broadcast %cst_10 : f32 to vector<16x128xf32>
    %10 = arith.maximumf %8, %9 : vector<16x128xf32>
    %c0_11 = arith.constant 0 : index
    %c0_12 = arith.constant 0 : index
    %11 = vector.load %arg5[%c0_11, %c0_12] : memref<32x128xbf16, #tpu.memory_space<vmem>>, vector<32x128xbf16>
    %cst_13 = arith.constant dense<0.000000e+00> : vector<256x128xf32>
    %12 = tpu.matmul %2, %11, %cst_13 {dimension_numbers = #tpu.dot_dimension_numbers<[1], [0], [0], [1], [0, 0, 1, 1], [], []>} : vector<256x32xbf16>, vector<32x128xbf16>, vector<256x128xf32> -> vector<256x128xf32>
    %c1 = arith.constant 1 : index
    %c0_14 = arith.constant 0 : index
    %13 = vector.load %arg7[%c1, %c0_14] : memref<8x128xf32, #tpu.memory_space<vmem>>, vector<1x128xf32>
    %14 = vector.broadcast %13 : vector<1x128xf32> to vector<256x128xf32>
    %15 = arith.addf %12, %14 : vector<256x128xf32>
    %cst_15 = arith.constant 0.000000e+00 : f32
    %16 = vector.broadcast %cst_15 : f32 to vector<256x128xf32>
    %17 = arith.maximumf %15, %16 : vector<256x128xf32>
    %18 = arith.truncf %10 : vector<16x128xf32> to vector<16x128xbf16>
    %c0_16 = arith.constant 0 : index
    %c0_17 = arith.constant 0 : index
    %c0_18 = arith.constant 0 : index
    %19 = vector.load %arg6[%c0_16, %c0_17, %c0_18] : memref<6x128x128xbf16, #tpu.memory_space<vmem>>, vector<1x128x128xbf16>
    %20 = vector.shape_cast %19 : vector<1x128x128xbf16> to vector<128x128xbf16>
    %cst_19 = arith.constant dense<0.000000e+00> : vector<16x128xf32>
    %21 = tpu.matmul %18, %20, %cst_19 {dimension_numbers = #tpu.dot_dimension_numbers<[1], [0], [0], [1], [0, 0, 1, 1], [], []>} : vector<16x128xbf16>, vector<128x128xbf16>, vector<16x128xf32> -> vector<16x128xf32>
    %c2 = arith.constant 2 : index
    %c0_20 = arith.constant 0 : index
    %22 = vector.load %arg7[%c2, %c0_20] : memref<8x128xf32, #tpu.memory_space<vmem>>, vector<1x128xf32>
    %23 = vector.broadcast %22 : vector<1x128xf32> to vector<16x128xf32>
    %24 = arith.addf %21, %23 : vector<16x128xf32>
    %25 = arith.truncf %17 : vector<256x128xf32> to vector<256x128xbf16>
    %c1_21 = arith.constant 1 : index
    %c0_22 = arith.constant 0 : index
    %c0_23 = arith.constant 0 : index
    %26 = vector.load %arg6[%c1_21, %c0_22, %c0_23] : memref<6x128x128xbf16, #tpu.memory_space<vmem>>, vector<1x128x128xbf16>
    %27 = vector.shape_cast %26 : vector<1x128x128xbf16> to vector<128x128xbf16>
    %cst_24 = arith.constant dense<0.000000e+00> : vector<256x128xf32>
    %28 = tpu.matmul %25, %27, %cst_24 {dimension_numbers = #tpu.dot_dimension_numbers<[1], [0], [0], [1], [0, 0, 1, 1], [], []>} : vector<256x128xbf16>, vector<128x128xbf16>, vector<256x128xf32> -> vector<256x128xf32>
    %c3 = arith.constant 3 : index
    %c0_25 = arith.constant 0 : index
    %29 = vector.load %arg7[%c3, %c0_25] : memref<8x128xf32, #tpu.memory_space<vmem>>, vector<1x128xf32>
    %30 = vector.broadcast %29 : vector<1x128xf32> to vector<256x128xf32>
    %31 = arith.addf %28, %30 : vector<256x128xf32>
    %32 = vector.shape_cast %31 : vector<256x128xf32> to vector<16x16x128xf32>
    %33 = vector.shape_cast %24 : vector<16x128xf32> to vector<16x1x128xf32>
    %34 = vector.broadcast %33 : vector<16x1x128xf32> to vector<16x16x128xf32>
    %35 = arith.mulf %34, %32 : vector<16x16x128xf32>
    %cst_26 = arith.constant dense<0.000000e+00> : vector<16x16xf32>
    %36 = vector.multi_reduction <add>, %35, %cst_26 [2] : vector<16x16x128xf32> to vector<16x16xf32>
    %cst_27 = arith.constant -1.000000e+09 : f32
    %37 = vector.broadcast %cst_27 : f32 to vector<16x16xf32>
    %38 = arith.mulf %3, %37 : vector<16x16xf32>
    %39 = arith.addf %36, %38 : vector<16x16xf32>
    %cst_28 = arith.constant dense<0xFF800000> : vector<16xf32>
    %40 = vector.multi_reduction <maximumf>, %39, %cst_28 [1] : vector<16x16xf32> to vector<16xf32>
    %41 = vector.shape_cast %40 : vector<16xf32> to vector<16x1xf32>
    %42 = vector.broadcast %41 : vector<16x1xf32> to vector<16x16xf32>
    %43 = arith.subf %39, %42 : vector<16x16xf32>
    %44 = math.exp %43 : vector<16x16xf32>
    %cst_29 = arith.constant dense<0.000000e+00> : vector<16xf32>
    %45 = vector.multi_reduction <add>, %44, %cst_29 [1] : vector<16x16xf32> to vector<16xf32>
    %46 = vector.shape_cast %45 : vector<16xf32> to vector<16x1xf32>
    %47 = tpu.reciprocal %46 {approx = true} : vector<16x1xf32> -> vector<16x1xf32>
    %48 = vector.broadcast %47 : vector<16x1xf32> to vector<16x16xf32>
    %49 = arith.mulf %44, %48 : vector<16x16xf32>
    %50 = vector.shape_cast %49 : vector<16x16xf32> to vector<16x16x1xf32>
    %51 = vector.broadcast %50 : vector<16x16x1xf32> to vector<16x16x128xf32>
    %52 = arith.mulf %51, %32 : vector<16x16x128xf32>
    %cst_30 = arith.constant dense<0.000000e+00> : vector<16x128xf32>
    %53 = vector.multi_reduction <add>, %52, %cst_30 [1] : vector<16x16x128xf32> to vector<16x128xf32>
    %54 = arith.truncf %53 : vector<16x128xf32> to vector<16x128xbf16>
    %c2_31 = arith.constant 2 : index
    %c0_32 = arith.constant 0 : index
    %c0_33 = arith.constant 0 : index
    %55 = vector.load %arg6[%c2_31, %c0_32, %c0_33] : memref<6x128x128xbf16, #tpu.memory_space<vmem>>, vector<1x128x128xbf16>
    %56 = vector.shape_cast %55 : vector<1x128x128xbf16> to vector<128x128xbf16>
    %cst_34 = arith.constant dense<0.000000e+00> : vector<16x128xf32>
    %57 = tpu.matmul %54, %56, %cst_34 {dimension_numbers = #tpu.dot_dimension_numbers<[1], [0], [0], [1], [0, 0, 1, 1], [], []>} : vector<16x128xbf16>, vector<128x128xbf16>, vector<16x128xf32> -> vector<16x128xf32>
    %c4 = arith.constant 4 : index
    %c0_35 = arith.constant 0 : index
    %58 = vector.load %arg7[%c4, %c0_35] : memref<8x128xf32, #tpu.memory_space<vmem>>, vector<1x128xf32>
    %59 = vector.broadcast %58 : vector<1x128xf32> to vector<16x128xf32>
    %60 = arith.addf %57, %59 : vector<16x128xf32>
    %61 = arith.addf %10, %60 : vector<16x128xf32>
    %62 = arith.truncf %61 : vector<16x128xf32> to vector<16x128xbf16>
    %c3_36 = arith.constant 3 : index
    %c0_37 = arith.constant 0 : index
    %c0_38 = arith.constant 0 : index
    %63 = vector.load %arg6[%c3_36, %c0_37, %c0_38] : memref<6x128x128xbf16, #tpu.memory_space<vmem>>, vector<1x128x128xbf16>
    %64 = vector.shape_cast %63 : vector<1x128x128xbf16> to vector<128x128xbf16>
    %cst_39 = arith.constant dense<0.000000e+00> : vector<16x128xf32>
    %65 = tpu.matmul %62, %64, %cst_39 {dimension_numbers = #tpu.dot_dimension_numbers<[1], [0], [0], [1], [0, 0, 1, 1], [], []>} : vector<16x128xbf16>, vector<128x128xbf16>, vector<16x128xf32> -> vector<16x128xf32>
    %c5 = arith.constant 5 : index
    %c0_40 = arith.constant 0 : index
    %66 = vector.load %arg7[%c5, %c0_40] : memref<8x128xf32, #tpu.memory_space<vmem>>, vector<1x128xf32>
    %67 = vector.broadcast %66 : vector<1x128xf32> to vector<16x128xf32>
    %68 = arith.addf %65, %67 : vector<16x128xf32>
    %cst_41 = arith.constant 0.000000e+00 : f32
    %69 = vector.broadcast %cst_41 : f32 to vector<16x128xf32>
    %70 = arith.maximumf %68, %69 : vector<16x128xf32>
    %71 = arith.truncf %70 : vector<16x128xf32> to vector<16x128xbf16>
    %c4_42 = arith.constant 4 : index
    %c0_43 = arith.constant 0 : index
    %c0_44 = arith.constant 0 : index
    %72 = vector.load %arg6[%c4_42, %c0_43, %c0_44] : memref<6x128x128xbf16, #tpu.memory_space<vmem>>, vector<1x128x128xbf16>
    %73 = vector.shape_cast %72 : vector<1x128x128xbf16> to vector<128x128xbf16>
    %cst_45 = arith.constant dense<0.000000e+00> : vector<16x128xf32>
    %74 = tpu.matmul %71, %73, %cst_45 {dimension_numbers = #tpu.dot_dimension_numbers<[1], [0], [0], [1], [0, 0, 1, 1], [], []>} : vector<16x128xbf16>, vector<128x128xbf16>, vector<16x128xf32> -> vector<16x128xf32>
    %c6 = arith.constant 6 : index
    %c0_46 = arith.constant 0 : index
    %75 = vector.load %arg7[%c6, %c0_46] : memref<8x128xf32, #tpu.memory_space<vmem>>, vector<1x128xf32>
    %76 = vector.broadcast %75 : vector<1x128xf32> to vector<16x128xf32>
    %77 = arith.addf %74, %76 : vector<16x128xf32>
    %78 = arith.addf %61, %77 : vector<16x128xf32>
    %cst_47 = arith.constant 0.000000e+00 : f32
    %79 = vector.broadcast %cst_47 : f32 to vector<16x128xf32>
    %80 = arith.maximumf %78, %79 : vector<16x128xf32>
    %81 = arith.truncf %80 : vector<16x128xf32> to vector<16x128xbf16>
    %c5_48 = arith.constant 5 : index
    %c0_49 = arith.constant 0 : index
    %c0_50 = arith.constant 0 : index
    %82 = vector.load %arg6[%c5_48, %c0_49, %c0_50] : memref<6x128x128xbf16, #tpu.memory_space<vmem>>, vector<1x128x128xbf16>
    %83 = vector.shape_cast %82 : vector<1x128x128xbf16> to vector<128x128xbf16>
    %cst_51 = arith.constant dense<0.000000e+00> : vector<16x128xf32>
    %84 = tpu.matmul %81, %83, %cst_51 {dimension_numbers = #tpu.dot_dimension_numbers<[1], [0], [0], [1], [0, 0, 1, 1], [], []>} : vector<16x128xbf16>, vector<128x128xbf16>, vector<16x128xf32> -> vector<16x128xf32>
    %c7 = arith.constant 7 : index
    %c0_52 = arith.constant 0 : index
    %85 = vector.load %arg7[%c7, %c0_52] : memref<8x128xf32, #tpu.memory_space<vmem>>, vector<1x128xf32>
    %86 = vector.broadcast %85 : vector<1x128xf32> to vector<16x128xf32>
    %87 = arith.addf %84, %86 : vector<16x128xf32>
    %c0_53 = arith.constant 0 : index
    %c0_54 = arith.constant 0 : index
    %88 = vector.load %arg8[%c0_53, %c0_54] : memref<16x128xf32, #tpu.memory_space<vmem>>, vector<16x128xf32>
    tpu.vector_store %arg8[%c0_53, %c0_54], %87 {strides = array<i32>} : memref<16x128xf32, #tpu.memory_space<vmem>>, vector<16x128xf32>,
    return
  }
  func.func @transform_0(%arg0: i32) -> (i32, i32) {
    %c0_i32 = arith.constant 0 : i32
    %c0_i32_0 = arith.constant 0 : i32
    return %arg0, %c0_i32 : i32, i32
  }
  func.func @transform_1(%arg0: i32) -> (i32, i32, i32) {
    %c0_i32 = arith.constant 0 : i32
    %c0_i32_0 = arith.constant 0 : i32
    %c0_i32_1 = arith.constant 0 : i32
    return %arg0, %c0_i32, %c0_i32_0 : i32, i32, i32
  }
  func.func @transform_2(%arg0: i32) -> (i32, i32) {
    %c0_i32 = arith.constant 0 : i32
    %c0_i32_0 = arith.constant 0 : i32
    return %arg0, %c0_i32 : i32, i32
  }
  func.func @transform_3(%arg0: i32) -> (i32, i32) {
    %c0_i32 = arith.constant 0 : i32
    %c0_i32_0 = arith.constant 0 : i32
    %c0_i32_1 = arith.constant 0 : i32
    return %c0_i32, %c0_i32_0 : i32, i32
  }
  func.func @transform_4(%arg0: i32) -> (i32, i32) {
    %c0_i32 = arith.constant 0 : i32
    %c0_i32_0 = arith.constant 0 : i32
    %c0_i32_1 = arith.constant 0 : i32
    return %c0_i32, %c0_i32_0 : i32, i32
  }
  func.func @transform_5(%arg0: i32) -> (i32, i32, i32) {
    %c0_i32 = arith.constant 0 : i32
    %c0_i32_0 = arith.constant 0 : i32
    %c0_i32_1 = arith.constant 0 : i32
    %c0_i32_2 = arith.constant 0 : i32
    return %c0_i32, %c0_i32_0, %c0_i32_1 : i32, i32, i32
  }
  func.func @transform_6(%arg0: i32) -> (i32, i32) {
    %c0_i32 = arith.constant 0 : i32
    %c0_i32_0 = arith.constant 0 : i32
    %c0_i32_1 = arith.constant 0 : i32
    return %c0_i32, %c0_i32_0 : i32, i32
  }
  func.func @transform_7(%arg0: i32) -> (i32, i32) {
    %c0_i32 = arith.constant 0 : i32
    %c0_i32_0 = arith.constant 0 : i32
    return %arg0, %c0_i32 : i32, i32
  }
}

</mosaic_0001>

<llo_original>
// kernel: tpu_custom_call.1
$region0: #{tpu_custom_call.1}
  #allocation0 [shape = 'u32[]', space=smem, size = 0x4, offset = 0x4, fixed_abs, tag = 'smem constant byte address 0x4 - core index']
  #allocation1 [shape = 'u32[144,128]{1,0:T(1,128)}', space=vmem, size = 0x12000, scoped, tag = 'internal scratch']
  %s0 = inlined_call_operand.vmem [shape: bf16[32,32], index: 0, kind: input, shape index: {}]
  %s1 = inlined_call_operand.hbm [shape: bf16[32,16,32], index: 1, kind: input, shape index: {}]
  %s2 = inlined_call_operand.vmem [shape: f32[32,16], index: 2, kind: input, shape index: {}]
  %s3 = inlined_call_operand.vmem [shape: bf16[32,128], index: 3, kind: input, shape index: {}]
  %s4 = inlined_call_operand.vmem [shape: bf16[32,128], index: 4, kind: input, shape index: {}]
  %s5 = inlined_call_operand.hbm [shape: bf16[6,128,128], index: 5, kind: input, shape index: {}]
  %s6 = inlined_call_operand.vmem [shape: f32[8,128], index: 6, kind: input, shape index: {}]
  %s7 = inlined_call_operand.hbm [shape: f32[32,128], index: 7, kind: output, shape index: {}]
  %s8 = sld [smem:[#allocation0]]
  $region69: #{tpu_custom_call.1} parent=0
    _
  %s10 = ssub.s32 1, %s8
  %s11 = scalar_select 0, %s10, %s8
  $region1: #{tpu_custom_call.1} parent=0
    #allocation2 [shape = 'u8[131072]{0}', space=vmem, size = 0x20000, scoped, tag = 'input window, operand 1']
    #allocation3 [shape = 's32[2]{0}', space=sflag, size = 0x8, scoped, tag = 'scoped memory for tpu_custom_call.1']
    #allocation4 [shape = 's32[2]{0}', space=sflag, size = 0x8, scoped, tag = 'scoped memory for tpu_custom_call.1']
    #allocation5 [shape = 'u8[196608]{0}', space=vmem, size = 0x30000, scoped, tag = 'input window, operand 5, single buffered']
    #allocation6 [shape = 's32[1]{0}', space=sflag, size = 0x4, scoped, tag = 'scoped memory for tpu_custom_call.1']
    #allocation7 [shape = 'u8[16384]{0}', space=vmem, size = 0x4000, scoped, tag = 'output window, operand 0']
    %12 = vsyncpa [#allocation3], 0
    %s13 = scalar_lea.sflag [#allocation3], 1
    %14 = vsyncpa %s13, 0
    %15 = vsyncpa [#allocation6], 0
    %16 = vsyncpa [#allocation4], 0
    %s17 = scalar_lea.sflag [#allocation4], 1
    %18 = vsyncpa %s17, 0
    loop: start=0, step=1, limit=4
    $region2: #{tpu_custom_call.1} parent=1 // loop_pre_header
      _
    $region3: #{tpu_custom_call.1} parent=1 // loop_header
      %s20 = sphi 0, %s24
      %p21 = scmp.ge.s32.totalorder %s20, 4
      %s30 = sphi 0, %s32
      %s33 = sphi 0, %s30
      %s34 = sphi 0, %s33
      %s50 = sphi 0, %s34
      %s56 = sphi 0, %s58
      %s59 = sphi 0, %s56
      %s60 = sphi 0, %s59
      %s76 = sphi 0, %s60
      %s82 = sphi 0, %s84
      %s85 = sphi 0, %s82
      %s86 = sphi 0, %s85
      %s102 = sphi 0, %s86
      %s106 = sphi 0, %s106
      %s108 = sphi 0, %s106
      %s109 = sphi 0, %s108
      %s123 = sphi 0, %s109
      %s127 = sphi 0, %s127
      %s129 = sphi 0, %s127
      %s130 = sphi 0, %s129
      %s144 = sphi 0, %s130
      %s148 = sphi 0, %s148
      %s150 = sphi 0, %s148
      %s151 = sphi 0, %s150
      %s165 = sphi 0, %s151
      %s169 = sphi 0, %s169
      %s171 = sphi 0, %s169
      %s172 = sphi 0, %s171
      %s186 = sphi 0, %s172
      %s192 = sphi 0, %s194
      %s195 = sphi 0, %s192
      %s196 = sphi 0, %s195
      %s212 = sphi 0, %s196
    $region4: #{tpu_custom_call.1} parent=1 // loop_header_branch
      %23 = sbr.rel (%p21) target = $region8
    $region5: #{tpu_custom_call.1} parent=1 // loop_body
      %s25 = ssub.s32 %s20, 1
      %s26 = ssub.s32 %s20, 2
      %s27 = sadd.s32 %s20, 1
      %s28 = ssub.s32 %s20, %s27
      %p29 = scmp.eq.s32.totalorder %s28, 0
      %s31 = sadd.s32 %s30, 1
      %s32 = scalar_select %p29, %s30, %s31
      %p35 = pneg %p29
      %p36 = scmp.eq.s32.totalorder %s20, 1
      %p37 = por %p35, %p36
      %p38 = scmp.ne.s32.totalorder %s30, %s33
      %p39 = scmp.eq.s32.totalorder %s20, 0
      %p40 = por %p38, %p39
      %p41 = scmp.ne.s32.totalorder %s30, %s33
      %p42 = scmp.eq.s32.totalorder %s25, 1
      %p43 = por %p41, %p42
      %p44 = scmp.ne.s32.totalorder %s33, %s34
      %p45 = scmp.eq.s32.totalorder %s25, 0
      %p46 = por %p44, %p45
      %p47 = scmp.ne.s32.totalorder %s33, %s34
      %p48 = scmp.eq.s32.totalorder %s26, 1
      %p49 = por %p47, %p48
      %p51 = scmp.ne.s32.totalorder %s34, %s50
      %p52 = scmp.eq.s32.totalorder %s26, 0
      %p53 = por %p51, %p52
      %s54 = ssub.s32 %s20, %s27
      %p55 = scmp.eq.s32.totalorder %s54, 0
      %s57 = sadd.s32 %s56, 1
      %s58 = scalar_select %p55, %s56, %s57
      %p61 = pneg %p55
      %p62 = scmp.eq.s32.totalorder %s20, 1
      %p63 = por %p61, %p62
      %p64 = scmp.ne.s32.totalorder %s56, %s59
      %p65 = scmp.eq.s32.totalorder %s20, 0
      %p66 = por %p64, %p65
      %p67 = scmp.ne.s32.totalorder %s56, %s59
      %p68 = scmp.eq.s32.totalorder %s25, 1
      %p69 = por %p67, %p68
      %p70 = scmp.ne.s32.totalorder %s59, %s60
      %p71 = scmp.eq.s32.totalorder %s25, 0
      %p72 = por %p70, %p71
      %p73 = scmp.ne.s32.totalorder %s59, %s60
      %p74 = scmp.eq.s32.totalorder %s26, 1
      %p75 = por %p73, %p74
      %p77 = scmp.ne.s32.totalorder %s60, %s76
      %p78 = scmp.eq.s32.totalorder %s26, 0
      %p79 = por %p77, %p78
      %s80 = ssub.s32 %s20, %s27
      %p81 = scmp.eq.s32.totalorder %s80, 0
      %s83 = sadd.s32 %s82, 1
      %s84 = scalar_select %p81, %s82, %s83
      %p87 = pneg %p81
      %p88 = scmp.eq.s32.totalorder %s20, 1
      %p89 = por %p87, %p88
      %p90 = scmp.ne.s32.totalorder %s82, %s85
      %p91 = scmp.eq.s32.totalorder %s20, 0
      %p92 = por %p90, %p91
      %p93 = scmp.ne.s32.totalorder %s82, %s85
      %p94 = scmp.eq.s32.totalorder %s25, 1
      %p95 = por %p93, %p94
      %p96 = scmp.ne.s32.totalorder %s85, %s86
      %p97 = scmp.eq.s32.totalorder %s25, 0
      %p98 = por %p96, %p97
      %p99 = scmp.ne.s32.totalorder %s85, %s86
      %p100 = scmp.eq.s32.totalorder %s26, 1
      %p101 = por %p99, %p100
      %p103 = scmp.ne.s32.totalorder %s86, %s102
      %p104 = scmp.eq.s32.totalorder %s26, 0
      %p105 = por %p103, %p104
      %s107 = sadd.s32 %s106, 1
      %p110 = scmp.eq.s32.totalorder %s20, 1
      %p111 = scmp.ne.s32.totalorder %s106, %s108
      %p112 = scmp.eq.s32.totalorder %s20, 0
      %p113 = por %p111, %p112
      %p114 = scmp.ne.s32.totalorder %s106, %s108
      %p115 = scmp.eq.s32.totalorder %s25, 1
      %p116 = por %p114, %p115
      %p117 = scmp.ne.s32.totalorder %s108, %s109
      %p118 = scmp.eq.s32.totalorder %s25, 0
      %p119 = por %p117, %p118
      %p120 = scmp.ne.s32.totalorder %s108, %s109
      %p121 = scmp.eq.s32.totalorder %s26, 1
      %p122 = por %p120, %p121
      %p124 = scmp.ne.s32.totalorder %s109, %s123
      %p125 = scmp.eq.s32.totalorder %s26, 0
      %p126 = por %p124, %p125
      %s128 = sadd.s32 %s127, 1
      %p131 = scmp.eq.s32.totalorder %s20, 1
      %p132 = scmp.ne.s32.totalorder %s127, %s129
      %p133 = scmp.eq.s32.totalorder %s20, 0
      %p134 = por %p132, %p133
      %p135 = scmp.ne.s32.totalorder %s127, %s129
      %p136 = scmp.eq.s32.totalorder %s25, 1
      %p137 = por %p135, %p136
      %p138 = scmp.ne.s32.totalorder %s129, %s130
      %p139 = scmp.eq.s32.totalorder %s25, 0
      %p140 = por %p138, %p139
      %p141 = scmp.ne.s32.totalorder %s129, %s130
      %p142 = scmp.eq.s32.totalorder %s26, 1
      %p143 = por %p141, %p142
      %p145 = scmp.ne.s32.totalorder %s130, %s144
      %p146 = scmp.eq.s32.totalorder %s26, 0
      %p147 = por %p145, %p146
      %s149 = sadd.s32 %s148, 1
      %p152 = scmp.eq.s32.totalorder %s20, 1
      %p153 = scmp.ne.s32.totalorder %s148, %s150
      %p154 = scmp.eq.s32.totalorder %s20, 0
      %p155 = por %p153, %p154
      %p156 = scmp.ne.s32.totalorder %s148, %s150
      %p157 = scmp.eq.s32.totalorder %s25, 1
      %p158 = por %p156, %p157
      %p159 = scmp.ne.s32.totalorder %s150, %s151
      %p160 = scmp.eq.s32.totalorder %s25, 0
      %p161 = por %p159, %p160
      %p162 = scmp.ne.s32.totalorder %s150, %s151
      %p163 = scmp.eq.s32.totalorder %s26, 1
      %p164 = por %p162, %p163
      %p166 = scmp.ne.s32.totalorder %s151, %s165
      %p167 = scmp.eq.s32.totalorder %s26, 0
      %p168 = por %p166, %p167
      %s170 = sadd.s32 %s169, 1
      %p173 = scmp.eq.s32.totalorder %s20, 1
      %p174 = scmp.ne.s32.totalorder %s169, %s171
      %p175 = scmp.eq.s32.totalorder %s20, 0
      %p176 = por %p174, %p175
      %p177 = scmp.ne.s32.totalorder %s169, %s171
      %p178 = scmp.eq.s32.totalorder %s25, 1
      %p179 = por %p177, %p178
      %p180 = scmp.ne.s32.totalorder %s171, %s172
      %p181 = scmp.eq.s32.totalorder %s25, 0
      %p182 = por %p180, %p181
      %p183 = scmp.ne.s32.totalorder %s171, %s172
      %p184 = scmp.eq.s32.totalorder %s26, 1
      %p185 = por %p183, %p184
      %p187 = scmp.ne.s32.totalorder %s172, %s186
      %p188 = scmp.eq.s32.totalorder %s26, 0
      %p189 = por %p187, %p188
      %s190 = ssub.s32 %s20, %s27
      %p191 = scmp.eq.s32.totalorder %s190, 0
      %s193 = sadd.s32 %s192, 1
      %s194 = scalar_select %p191, %s192, %s193
      %p197 = pneg %p191
      %p198 = scmp.eq.s32.totalorder %s20, 1
      %p199 = por %p197, %p198
      %p200 = scmp.ne.s32.totalorder %s192, %s195
      %p201 = scmp.eq.s32.totalorder %s20, 0
      %p202 = por %p200, %p201
      %p203 = scmp.ne.s32.totalorder %s192, %s195
      %p204 = scmp.eq.s32.totalorder %s25, 1
      %p205 = por %p203, %p204
      %p206 = scmp.ne.s32.totalorder %s195, %s196
      %p207 = scmp.eq.s32.totalorder %s25, 0
      %p208 = por %p206, %p207
      %p209 = scmp.ne.s32.totalorder %s195, %s196
      %p210 = scmp.eq.s32.totalorder %s26, 1
      %p211 = por %p209, %p210
      %p213 = scmp.ne.s32.totalorder %s196, %s212
      %p214 = scmp.eq.s32.totalorder %s26, 0
      %p215 = por %p213, %p214
      %p216 = scmp.le.s32.totalorder 1, %s20
      %p217 = scmp.lt.s32.totalorder %s20, 3
      %p218 = pnand %p216, %p217
      %p219 = pneg %p218
      // Predicated region
      $region9: #{tpu_custom_call.1} parent=5 // pred_check
        _
      $region10: #{tpu_custom_call.1} parent=5 // pred_check_branch
        %221 = sbr.rel (%p218) target = $region12
      $region11: #{tpu_custom_call.1} parent=5 // pred_region
        %s222 = ssub.s32 %s20, 1
        // Predicated region
        $region13: #{tpu_custom_call.1} parent=11 // pred_check
          %p223 = pneg %p119
        $region14: #{tpu_custom_call.1} parent=11 // pred_check_branch
          %225 = sbr.rel (%p223) target = $region16
        $region15: #{tpu_custom_call.1} parent=11 // pred_region
          _
        $region16: #{tpu_custom_call.1} parent=11 // pred_fallthru
          _
        // Predicated region
        $region17: #{tpu_custom_call.1} parent=11 // pred_check
          %p226 = pneg %p140
        $region18: #{tpu_custom_call.1} parent=11 // pred_check_branch
          %228 = sbr.rel (%p226) target = $region20
        $region19: #{tpu_custom_call.1} parent=11 // pred_region
          _
        $region20: #{tpu_custom_call.1} parent=11 // pred_fallthru
          _
        // Predicated region
        $region21: #{tpu_custom_call.1} parent=11 // pred_check
          %p229 = pneg %p161
        $region22: #{tpu_custom_call.1} parent=11 // pred_check_branch
          %231 = sbr.rel (%p229) target = $region24
        $region23: #{tpu_custom_call.1} parent=11 // pred_region
          %s233 = ssub.s32 6144, 6144
          %234 = vsyncadd [#allocation6], %s233
          %s235 = sshll.u32 [#allocation5], 4
          %s236 = int_to_ptr.vmem [resolvable:$true] %s235
          %241 = dma.hbm_to_vmem [thread:$0]  %s5, 6144, %s236, [#allocation6], 64, 64, 4
        $region24: #{tpu_custom_call.1} parent=11 // pred_fallthru
          _
        // Predicated region
        $region25: #{tpu_custom_call.1} parent=11 // pred_check
          %p242 = pneg %p182
        $region26: #{tpu_custom_call.1} parent=11 // pred_check_branch
          %244 = sbr.rel (%p242) target = $region28
        $region27: #{tpu_custom_call.1} parent=11 // pred_region
          _
        $region28: #{tpu_custom_call.1} parent=11 // pred_fallthru
          _
      $region12: #{tpu_custom_call.1} parent=5 // pred_fallthru
        _
      %p245 = scmp.lt.s32.totalorder %s20, 2
      // Predicated region
      $region29: #{tpu_custom_call.1} parent=5 // pred_check
        %p246 = pneg %p245
      $region30: #{tpu_custom_call.1} parent=5 // pred_check_branch
        %248 = sbr.rel (%p246) target = $region32
      $region31: #{tpu_custom_call.1} parent=5 // pred_region
        // Predicated region
        $region33: #{tpu_custom_call.1} parent=31 // pred_check
          %p249 = pneg %p40
        $region34: #{tpu_custom_call.1} parent=31 // pred_check_branch
          %251 = sbr.rel (%p249) target = $region36
        $region35: #{tpu_custom_call.1} parent=31 // pred_region
          %s252 = smul.u32 2, %s20
          %p253 = scmp.lt.s32.totalorder %s252, 3
          %s254 = scalar_select %p253, %s252, 3
          %s255 = smul.addr %s254, 4
          %s256 = scalar_lea.vmem %s0, %s255
          %s257 = smul.u32 2, %s20
        $region36: #{tpu_custom_call.1} parent=31 // pred_fallthru
          _
        // Predicated region
        $region37: #{tpu_custom_call.1} parent=31 // pred_check
          %p258 = pneg %p66
        $region38: #{tpu_custom_call.1} parent=31 // pred_check_branch
          %260 = sbr.rel (%p258) target = $region40
        $region39: #{tpu_custom_call.1} parent=31 // pred_region
          %s261 = sand.u32 %s56, 1
          %s262 = scalar_lea.sflag [#allocation3], %s261
          %s263 = sand.u32 %s56, 1
          %s264 = smul.addr %s263, 128
          %s265 = scalar_lea.vmem [#allocation2], %s264
          %s266 = smul.u32 16, %s20
          %s268 = ssub.s32 2048, 2048
          %269 = vsyncadd %s262, %s268
          %s270 = smul.addr %s266, 2
          %s271 = smul.addr %s270, 64
          %s272 = scalar_lea.hbm %s1, %s271
          %s273 = sshll.u32 %s265, 4
          %s274 = int_to_ptr.vmem [resolvable:$true] %s273
          %279 = dma.hbm_to_vmem [thread:$0]  %s272, 2048, %s274, %s262, 64, 64, 4
        $region40: #{tpu_custom_call.1} parent=31 // pred_fallthru
          _
        // Predicated region
        $region41: #{tpu_custom_call.1} parent=31 // pred_check
          %p280 = pneg %p92
        $region42: #{tpu_custom_call.1} parent=31 // pred_check_branch
          %282 = sbr.rel (%p280) target = $region44
        $region43: #{tpu_custom_call.1} parent=31 // pred_region
          %s283 = smul.u32 2, %s20
          %p284 = scmp.lt.s32.totalorder %s283, 3
          %s285 = scalar_select %p284, %s283, 3
          %s286 = smul.addr %s285, 8
          %s287 = scalar_lea.vmem %s2, %s286
          %s288 = smul.u32 2, %s20
        $region44: #{tpu_custom_call.1} parent=31 // pred_fallthru
          _
      $region32: #{tpu_custom_call.1} parent=5 // pred_fallthru
        _
      %p289 = scmp.le.s32.totalorder 1, %s20
      %p290 = scmp.lt.s32.totalorder %s20, 3
      %p291 = pnand %p289, %p290
      %p292 = pneg %p291
      // Predicated region
      $region45: #{tpu_custom_call.1} parent=5 // pred_check
        _
      $region46: #{tpu_custom_call.1} parent=5 // pred_check_branch
        %294 = sbr.rel (%p291) target = $region48
      $region47: #{tpu_custom_call.1} parent=5 // pred_region
        %s295 = ssub.s32 %s20, 1
        %s296 = sand.u32 %s59, 1
        %s297 = scalar_lea.sflag [#allocation3], %s296
        %s298 = sand.u32 %s59, 1
        %s299 = smul.addr %s298, 128
        %s300 = scalar_lea.vmem [#allocation2], %s299
        // Predicated region
        $region49: #{tpu_custom_call.1} parent=47 // pred_check
          %p301 = pneg %p72
        $region50: #{tpu_custom_call.1} parent=47 // pred_check_branch
          %303 = sbr.rel (%p301) target = $region52
        $region51: #{tpu_custom_call.1} parent=47 // pred_region
          %304 = dma.done %s297, 2048
        $region52: #{tpu_custom_call.1} parent=47 // pred_fallthru
          _
        // Predicated region
        $region53: #{tpu_custom_call.1} parent=47 // pred_check
          %p305 = pneg %p161
        $region54: #{tpu_custom_call.1} parent=47 // pred_check_branch
          %307 = sbr.rel (%p305) target = $region56
        $region55: #{tpu_custom_call.1} parent=47 // pred_region
          %308 = dma.done [#allocation6], 6144
        $region56: #{tpu_custom_call.1} parent=47 // pred_fallthru
          _
        %s309 = smul.u32 2, %s25
        %p310 = scmp.lt.s32.totalorder %s309, 3
        %s311 = scalar_select %p310, %s309, 3
        %s312 = smul.addr %s311, 4
        %s313 = scalar_lea.vmem %s0, %s312
        %p314 = pneg %p46
        %p315 = pneg %p43
        %s316 = sand.u32 %s59, 1
        %s317 = scalar_lea.sflag [#allocation3], %s316
        %s318 = sand.u32 %s59, 1
        %s319 = smul.addr %s318, 128
        %s320 = scalar_lea.vmem [#allocation2], %s319
        %p321 = pneg %p72
        %p322 = pneg %p69
        %s323 = smul.u32 2, %s25
        %p324 = scmp.lt.s32.totalorder %s323, 3
        %s325 = scalar_select %p324, %s323, 3
        %s326 = smul.addr %s325, 8
        %s327 = scalar_lea.vmem %s2, %s326
        %p328 = pneg %p98
        %p329 = pneg %p95
        %p330 = pneg %p119
        %p331 = pneg %p116
        %p332 = pneg %p140
        %p333 = pneg %p137
        %p334 = pneg %p161
        %p335 = pneg %p158
        %p336 = pneg %p182
        %p337 = pneg %p179
        %p338 = pneg %p208
        %p339 = pneg %p205
        %s340 = sand.u32 %s195, 1
        %s341 = scalar_lea.sflag [#allocation4], %s340
        %s342 = sand.u32 %s195, 1
        %s343 = smul.addr %s342, 16
        %s344 = scalar_lea.vmem [#allocation7], %s343
        %s345 = smul.u32 2, %s25
        %p346 = scmp.lt.s32.totalorder %s345, 3
        %s347 = scalar_select %p346, %s345, 3
        %s348 = smul.addr %s347, 4
        %s349 = scalar_lea.vmem %s0, %s348
        %s350 = smul.u32 2, %s25
        %s351 = smul.u32 16, %s25
        %s352 = smul.u32 2, %s25
        %p353 = scmp.lt.s32.totalorder %s352, 3
        %s354 = scalar_select %p353, %s352, 3
        %s355 = smul.addr %s354, 8
        %s356 = scalar_lea.vmem %s2, %s355
        %s357 = smul.u32 2, %s25
        %s358 = smul.u32 2, %s25
        %v360 = vld [vmem:[%s349] sm:$0xf]
        %v361 = vld [vmem:[%s349 + $0x4] sm:$0xf]
        %v362 = vld [vmem:[%s300] sm:$0xf]
        %v363 = vld [vmem:[%s300 + $0x4] sm:$0xf]
        %v364 = vld [vmem:[%s300 + $0x8] sm:$0xf]
        %v365 = vld [vmem:[%s300 + $0xc] sm:$0xf]
        %v366 = vld [vmem:[%s300 + $0x10] sm:$0xf]
        %v367 = vld [vmem:[%s300 + $0x14] sm:$0xf]
        %v368 = vld [vmem:[%s300 + $0x18] sm:$0xf]
        %v369 = vld [vmem:[%s300 + $0x1c] sm:$0xf]
        %v370 = vld [vmem:[%s300 + $0x20] sm:$0xf]
        %v371 = vld [vmem:[%s300 + $0x24] sm:$0xf]
        %v372 = vld [vmem:[%s300 + $0x28] sm:$0xf]
        %v373 = vld [vmem:[%s300 + $0x2c] sm:$0xf]
        %v374 = vld [vmem:[%s300 + $0x30] sm:$0xf]
        %v375 = vld [vmem:[%s300 + $0x34] sm:$0xf]
        %v376 = vld [vmem:[%s300 + $0x38] sm:$0xf]
        %v377 = vld [vmem:[%s300 + $0x3c] sm:$0xf]
        %v378 = vld [vmem:[%s300 + $0x40] sm:$0xf]
        %v379 = vld [vmem:[%s300 + $0x44] sm:$0xf]
        %v380 = vld [vmem:[%s300 + $0x48] sm:$0xf]
        %v381 = vld [vmem:[%s300 + $0x4c] sm:$0xf]
        %v382 = vld [vmem:[%s300 + $0x50] sm:$0xf]
        %v383 = vld [vmem:[%s300 + $0x54] sm:$0xf]
        %v384 = vld [vmem:[%s300 + $0x58] sm:$0xf]
        %v385 = vld [vmem:[%s300 + $0x5c] sm:$0xf]
        %v386 = vld [vmem:[%s300 + $0x60] sm:$0xf]
        %v387 = vld [vmem:[%s300 + $0x64] sm:$0xf]
        %v388 = vld [vmem:[%s300 + $0x68] sm:$0xf]
        %v389 = vld [vmem:[%s300 + $0x6c] sm:$0xf]
        %v390 = vld [vmem:[%s300 + $0x70] sm:$0xf]
        %v391 = vld [vmem:[%s300 + $0x74] sm:$0xf]
        %v392 = vld [vmem:[%s300 + $0x78] sm:$0xf]
        %v393 = vld [vmem:[%s300 + $0x7c] sm:$0xf]
        %v394 = vld [vmem:[%s356] sm:$0xff]
        %v395 = vld [vmem:[%s356 + $0x8] sm:$0xff]
        %v396 = vld [vmem:[%s3] sm:$0xf]
        %v397 = vld [vmem:[%s3 + $0x4] sm:$0xf]
        %v398 = vld [vmem:[%s3 + $0x8] sm:$0xf]
        %v399 = vld [vmem:[%s3 + $0xc] sm:$0xf]
        %v400 = vld [vmem:[%s6] sm:$0x1]
        %v401 = vlaneseq
        %v402 = vshrl.u32 %v401, 7
        %v403 = vsub.s32 0, %v402
        %v404 = vrot.slane %v400, %v403
        %v407 = vunpack.c.l.b16 %v360
        %v408 = vunpack.c.l.b16 %v361
        %v409 = vpack.c.b16 %v408, %v407
        %v414 = vunpack.c.l.b16 %v396
        %v415 = vunpack.c.l.b16 %v397
        %v416 = vunpack.c.l.b16 %v398
        %v417 = vunpack.c.l.b16 %v399
        %v418 = vpack.c.b16 %v415, %v414
        %v419 = vpack.c.b16 %v417, %v416
        %vm422 = vcmask 261120
        %v424 = vsel %vm422, %v409, 0
        %426 = vmatprep.subr.bf16.mxu0 0
        %427 = vmatpush1.bf16.msra.mxu0 %v418
        %428 = vmatprep.subr.bf16.mxu0 0
        %429 = vmatpush1.bf16.msra.mxu0 %v419
        %430 = vmatprep.subr.bf16.mxu0 0
        %431 = vmatpush1.bf16.msra.mxu0 0
        %432 = vmatprep.subr.bf16.mxu0 0
        %433 = vmatpush1.bf16.msra.mxu0 0
        %434 = vmatprep.subr.bf16.mxu0 0
        %435 = vmatpush1.bf16.msra.mxu0 0
        %436 = vmatprep.subr.bf16.mxu0 0
        %437 = vmatpush1.bf16.msra.mxu0 0
        %438 = vmatprep.subr.bf16.mxu0 0
        %439 = vmatpush1.bf16.msra.mxu0 0
        %440 = vmatprep.subr.bf16.mxu0 0
        %441 = vmatpush1.bf16.msra.mxu0 0
        %442 = vmatprep.subr.bf16.mxu0 0
        %443 = vmatpush1.bf16.msra.mxu0 0
        %444 = vmatprep.subr.bf16.mxu0 0
        %445 = vmatpush1.bf16.msra.mxu0 0
        %446 = vmatprep.subr.bf16.mxu0 0
        %447 = vmatpush1.bf16.msra.mxu0 0
        %448 = vmatprep.subr.bf16.mxu0 0
        %449 = vmatpush1.bf16.msra.mxu0 0
        %450 = vmatprep.subr.bf16.mxu0 0
        %451 = vmatpush1.bf16.msra.mxu0 0
        %452 = vmatprep.subr.bf16.mxu0 0
        %453 = vmatpush1.bf16.msra.mxu0 0
        %454 = vmatprep.subr.bf16.mxu0 0
        %455 = vmatpush1.bf16.msra.mxu0 0
        %456 = vmatprep.subr.bf16.mxu0 0
        %457 = vmatpush1.bf16.msra.mxu0 0
        %458 = vmatprep.mubr.bf16.mxu0 0
        %459 = vmatmul.mubr.bf16.gmra.mrb[0].mxu0 %v424
        %v460 = vpop.f32.mrb[0].mxu0
        %v461 = vadd.f32 %v404, %v460
        %v462 = vpop.f32.mrb[0].mxu0
        %v463 = vpop.f32.mrb[0].mxu0
        %v464 = vadd.f32 %v404, %v463
        %v465 = vpop.f32.mrb[0].mxu0
        %466 = vdwg.mxu0
        %v467 = vmax.f32 %v461, 0.0
        %v468 = vmax.f32 %v464, 0.0
        %v469 = vld [vmem:[%s4] sm:$0xf]
        %v470 = vld [vmem:[%s4 + $0x4] sm:$0xf]
        %v471 = vld [vmem:[%s4 + $0x8] sm:$0xf]
        %v472 = vld [vmem:[%s4 + $0xc] sm:$0xf]
        %v473 = vld [vmem:[%s6 + $0x1] sm:$0x1]
        %v474 = vlaneseq
        %v475 = vshrl.u32 %v474, 7
        %v476 = vsub.s32 0, %v475
        %v477 = vrot.slane %v473, %v476
        %v510 = vunpack.c.l.b16 %v362
        %v511 = vunpack.c.l.b16 %v363
        %v512 = vunpack.c.l.b16 %v364
        %v513 = vunpack.c.l.b16 %v365
        %v514 = vunpack.c.l.b16 %v366
        %v515 = vunpack.c.l.b16 %v367
        %v516 = vunpack.c.l.b16 %v368
        %v517 = vunpack.c.l.b16 %v369
        %v518 = vunpack.c.l.b16 %v370
        %v519 = vunpack.c.l.b16 %v371
        %v520 = vunpack.c.l.b16 %v372
        %v521 = vunpack.c.l.b16 %v373
        %v522 = vunpack.c.l.b16 %v374
        %v523 = vunpack.c.l.b16 %v375
        %v524 = vunpack.c.l.b16 %v376
        %v525 = vunpack.c.l.b16 %v377
        %v526 = vunpack.c.l.b16 %v378
        %v527 = vunpack.c.l.b16 %v379
        %v528 = vunpack.c.l.b16 %v380
        %v529 = vunpack.c.l.b16 %v381
        %v530 = vunpack.c.l.b16 %v382
        %v531 = vunpack.c.l.b16 %v383
        %v532 = vunpack.c.l.b16 %v384
        %v533 = vunpack.c.l.b16 %v385
        %v534 = vunpack.c.l.b16 %v386
        %v535 = vunpack.c.l.b16 %v387
        %v536 = vunpack.c.l.b16 %v388
        %v537 = vunpack.c.l.b16 %v389
        %v538 = vunpack.c.l.b16 %v390
        %v539 = vunpack.c.l.b16 %v391
        %v540 = vunpack.c.l.b16 %v392
        %v541 = vunpack.c.l.b16 %v393
        %v542 = vpack.c.b16 %v511, %v510
        %v543 = vpack.c.b16 %v513, %v512
        %v544 = vpack.c.b16 %v515, %v514
        %v545 = vpack.c.b16 %v517, %v516
        %v546 = vpack.c.b16 %v519, %v518
        %v547 = vpack.c.b16 %v521, %v520
        %v548 = vpack.c.b16 %v523, %v522
        %v549 = vpack.c.b16 %v525, %v524
        %v550 = vpack.c.b16 %v527, %v526
        %v551 = vpack.c.b16 %v529, %v528
        %v552 = vpack.c.b16 %v531, %v530
        %v553 = vpack.c.b16 %v533, %v532
        %v554 = vpack.c.b16 %v535, %v534
        %v555 = vpack.c.b16 %v537, %v536
        %v556 = vpack.c.b16 %v539, %v538
        %v557 = vpack.c.b16 %v541, %v540
        %v562 = vunpack.c.l.b16 %v469
        %v563 = vunpack.c.l.b16 %v470
        %v564 = vunpack.c.l.b16 %v471
        %v565 = vunpack.c.l.b16 %v472
        %v566 = vpack.c.b16 %v563, %v562
        %v567 = vpack.c.b16 %v565, %v564
        %v571 = vsel %vm422, %v542, 0
        %v574 = vsel %vm422, %v543, 0
        %v577 = vsel %vm422, %v544, 0
        %v580 = vsel %vm422, %v545, 0
        %v583 = vsel %vm422, %v546, 0
        %v586 = vsel %vm422, %v547, 0
        %v589 = vsel %vm422, %v548, 0
        %v592 = vsel %vm422, %v549, 0
        %v595 = vsel %vm422, %v550, 0
        %v598 = vsel %vm422, %v551, 0
        %v601 = vsel %vm422, %v552, 0
        %v604 = vsel %vm422, %v553, 0
        %v607 = vsel %vm422, %v554, 0
        %v610 = vsel %vm422, %v555, 0
        %v613 = vsel %vm422, %v556, 0
        %v616 = vsel %vm422, %v557, 0
        %618 = vmatprep.subr.bf16.mxu0 0
        %619 = vmatpush1.bf16.msra.mxu0 %v566
        %620 = vmatprep.subr.bf16.mxu0 0
        %621 = vmatpush1.bf16.msra.mxu0 %v567
        %622 = vmatprep.subr.bf16.mxu0 0
        %623 = vmatpush1.bf16.msra.mxu0 0
        %624 = vmatprep.subr.bf16.mxu0 0
        %625 = vmatpush1.bf16.msra.mxu0 0
        %626 = vmatprep.subr.bf16.mxu0 0
        %627 = vmatpush1.bf16.msra.mxu0 0
        %628 = vmatprep.subr.bf16.mxu0 0
        %629 = vmatpush1.bf16.msra.mxu0 0
        %630 = vmatprep.subr.bf16.mxu0 0
        %631 = vmatpush1.bf16.msra.mxu0 0
        %632 = vmatprep.subr.bf16.mxu0 0
        %633 = vmatpush1.bf16.msra.mxu0 0
        %634 = vmatprep.subr.bf16.mxu0 0
        %635 = vmatpush1.bf16.msra.mxu0 0
        %636 = vmatprep.subr.bf16.mxu0 0
        %637 = vmatpush1.bf16.msra.mxu0 0
        %638 = vmatprep.subr.bf16.mxu0 0
        %639 = vmatpush1.bf16.msra.mxu0 0
        %640 = vmatprep.subr.bf16.mxu0 0
        %641 = vmatpush1.bf16.msra.mxu0 0
        %642 = vmatprep.subr.bf16.mxu0 0
        %643 = vmatpush1.bf16.msra.mxu0 0
        %644 = vmatprep.subr.bf16.mxu0 0
        %645 = vmatpush1.bf16.msra.mxu0 0
        %646 = vmatprep.subr.bf16.mxu0 0
        %647 = vmatpush1.bf16.msra.mxu0 0
        %648 = vmatprep.subr.bf16.mxu0 0
        %649 = vmatpush1.bf16.msra.mxu0 0
        %650 = vmatprep.mubr.bf16.mxu0 0
        %651 = vmatmul.mubr.bf16.gmra.mrb[0].mxu0 %v571
        %v652 = vpop.f32.mrb[0].mxu0
        %v653 = vadd.f32 %v477, %v652
        %v654 = vpop.f32.mrb[0].mxu0
        %v655 = vpop.f32.mrb[0].mxu0
        %v656 = vadd.f32 %v477, %v655
        %v657 = vpop.f32.mrb[0].mxu0
        %658 = vmatprep.mubr.bf16.mxu0 0
        %659 = vmatmul.mubr.bf16.gmra.mrb[0].mxu0 %v574
        %v660 = vpop.f32.mrb[0].mxu0
        %v661 = vadd.f32 %v477, %v660
        %v662 = vpop.f32.mrb[0].mxu0
        %v663 = vpop.f32.mrb[0].mxu0
        %v664 = vadd.f32 %v477, %v663
        %v665 = vpop.f32.mrb[0].mxu0
        %666 = vmatprep.mubr.bf16.mxu0 0
        %667 = vmatmul.mubr.bf16.gmra.mrb[0].mxu0 %v577
        %v668 = vpop.f32.mrb[0].mxu0
        %v669 = vadd.f32 %v477, %v668
        %v670 = vpop.f32.mrb[0].mxu0
        %v671 = vpop.f32.mrb[0].mxu0
        %v672 = vadd.f32 %v477, %v671
        %v673 = vpop.f32.mrb[0].mxu0
        %674 = vmatprep.mubr.bf16.mxu0 0
        %675 = vmatmul.mubr.bf16.gmra.mrb[0].mxu0 %v580
        %v676 = vpop.f32.mrb[0].mxu0
        %v677 = vadd.f32 %v477, %v676
        %v678 = vpop.f32.mrb[0].mxu0
        %v679 = vpop.f32.mrb[0].mxu0
        %v680 = vadd.f32 %v477, %v679
        %v681 = vpop.f32.mrb[0].mxu0
        %682 = vmatprep.mubr.bf16.mxu0 0
        %683 = vmatmul.mubr.bf16.gmra.mrb[0].mxu0 %v583
        %v684 = vpop.f32.mrb[0].mxu0
        %v685 = vadd.f32 %v477, %v684
        %v686 = vpop.f32.mrb[0].mxu0
        %v687 = vpop.f32.mrb[0].mxu0
        %v688 = vadd.f32 %v477, %v687
        %v689 = vpop.f32.mrb[0].mxu0
        %690 = vmatprep.mubr.bf16.mxu0 0
        %691 = vmatmul.mubr.bf16.gmra.mrb[0].mxu0 %v586
        %v692 = vpop.f32.mrb[0].mxu0
        %v693 = vadd.f32 %v477, %v692
        %v694 = vpop.f32.mrb[0].mxu0
        %v695 = vpop.f32.mrb[0].mxu0
        %v696 = vadd.f32 %v477, %v695
        %v697 = vpop.f32.mrb[0].mxu0
        %698 = vmatprep.mubr.bf16.mxu0 0
        %699 = vmatmul.mubr.bf16.gmra.mrb[0].mxu0 %v589
        %v700 = vpop.f32.mrb[0].mxu0
        %v701 = vadd.f32 %v477, %v700
        %v702 = vpop.f32.mrb[0].mxu0
        %v703 = vpop.f32.mrb[0].mxu0
        %v704 = vadd.f32 %v477, %v703
        %v705 = vpop.f32.mrb[0].mxu0
        %706 = vmatprep.mubr.bf16.mxu0 0
        %707 = vmatmul.mubr.bf16.gmra.mrb[0].mxu0 %v592
        %v708 = vpop.f32.mrb[0].mxu0
        %v709 = vadd.f32 %v477, %v708
        %v710 = vpop.f32.mrb[0].mxu0
        %v711 = vpop.f32.mrb[0].mxu0
        %v712 = vadd.f32 %v477, %v711
        %v713 = vpop.f32.mrb[0].mxu0
        %714 = vmatprep.mubr.bf16.mxu0 0
        %715 = vmatmul.mubr.bf16.gmra.mrb[0].mxu0 %v595
        %v716 = vpop.f32.mrb[0].mxu0
        %v717 = vadd.f32 %v477, %v716
        %v718 = vpop.f32.mrb[0].mxu0
        %v719 = vpop.f32.mrb[0].mxu0
        %v720 = vadd.f32 %v477, %v719
        %v721 = vpop.f32.mrb[0].mxu0
        %722 = vmatprep.mubr.bf16.mxu0 0
        %723 = vmatmul.mubr.bf16.gmra.mrb[0].mxu0 %v598
        %v724 = vpop.f32.mrb[0].mxu0
        %v725 = vadd.f32 %v477, %v724
        %v726 = vpop.f32.mrb[0].mxu0
        %v727 = vpop.f32.mrb[0].mxu0
        %v728 = vadd.f32 %v477, %v727
        %v729 = vpop.f32.mrb[0].mxu0
        %730 = vmatprep.mubr.bf16.mxu0 0
        %731 = vmatmul.mubr.bf16.gmra.mrb[0].mxu0 %v601
        %v732 = vpop.f32.mrb[0].mxu0
        %v733 = vadd.f32 %v477, %v732
        %v734 = vpop.f32.mrb[0].mxu0
        %v735 = vpop.f32.mrb[0].mxu0
        %v736 = vadd.f32 %v477, %v735
        %v737 = vpop.f32.mrb[0].mxu0
        %738 = vmatprep.mubr.bf16.mxu0 0
        %739 = vmatmul.mubr.bf16.gmra.mrb[0].mxu0 %v604
        %v740 = vpop.f32.mrb[0].mxu0
        %v741 = vadd.f32 %v477, %v740
        %v742 = vpop.f32.mrb[0].mxu0
        %v743 = vpop.f32.mrb[0].mxu0
        %v744 = vadd.f32 %v477, %v743
        %v745 = vpop.f32.mrb[0].mxu0
        %746 = vmatprep.mubr.bf16.mxu0 0
        %747 = vmatmul.mubr.bf16.gmra.mrb[0].mxu0 %v607
        %v748 = vpop.f32.mrb[0].mxu0
        %v749 = vadd.f32 %v477, %v748
        %v750 = vpop.f32.mrb[0].mxu0
        %v751 = vpop.f32.mrb[0].mxu0
        %v752 = vadd.f32 %v477, %v751
        %v753 = vpop.f32.mrb[0].mxu0
        %754 = vmatprep.mubr.bf16.mxu0 0
        %755 = vmatmul.mubr.bf16.gmra.mrb[0].mxu0 %v610
        %v756 = vpop.f32.mrb[0].mxu0
        %v757 = vadd.f32 %v477, %v756
        %v758 = vpop.f32.mrb[0].mxu0
        %v759 = vpop.f32.mrb[0].mxu0
        %v760 = vadd.f32 %v477, %v759
        %v761 = vpop.f32.mrb[0].mxu0
        %762 = vmatprep.mubr.bf16.mxu0 0
        %763 = vmatmul.mubr.bf16.gmra.mrb[0].mxu0 %v613
        %v764 = vpop.f32.mrb[0].mxu0
        %v765 = vadd.f32 %v477, %v764
        %v766 = vpop.f32.mrb[0].mxu0
        %v767 = vpop.f32.mrb[0].mxu0
        %v768 = vadd.f32 %v477, %v767
        %v769 = vpop.f32.mrb[0].mxu0
        %770 = vmatprep.mubr.bf16.mxu0 0
        %771 = vmatmul.mubr.bf16.gmra.mrb[0].mxu0 %v616
        %v772 = vpop.f32.mrb[0].mxu0
        %v773 = vadd.f32 %v477, %v772
        %v774 = vpop.f32.mrb[0].mxu0
        %v775 = vpop.f32.mrb[0].mxu0
        %v776 = vadd.f32 %v477, %v775
        %v777 = vpop.f32.mrb[0].mxu0
        %778 = vdwg.mxu0
        %v779 = vmax.f32 %v653, 0.0
        %v780 = vmax.f32 %v656, 0.0
        %v781 = vmax.f32 %v661, 0.0
        %v782 = vmax.f32 %v664, 0.0
        %v783 = vmax.f32 %v669, 0.0
        %v784 = vmax.f32 %v672, 0.0
        %v785 = vmax.f32 %v677, 0.0
        %v786 = vmax.f32 %v680, 0.0
        %v787 = vmax.f32 %v685, 0.0
        %v788 = vmax.f32 %v688, 0.0
        %v789 = vmax.f32 %v693, 0.0
        %v790 = vmax.f32 %v696, 0.0
        %v791 = vmax.f32 %v701, 0.0
        %v792 = vmax.f32 %v704, 0.0
        %v793 = vmax.f32 %v709, 0.0
        %v794 = vmax.f32 %v712, 0.0
        %v795 = vmax.f32 %v717, 0.0
        %v796 = vmax.f32 %v720, 0.0
        %v797 = vmax.f32 %v725, 0.0
        %v798 = vmax.f32 %v728, 0.0
        %v799 = vmax.f32 %v733, 0.0
        %v800 = vmax.f32 %v736, 0.0
        %v801 = vmax.f32 %v741, 0.0
        %v802 = vmax.f32 %v744, 0.0
        %v803 = vmax.f32 %v749, 0.0
        %v804 = vmax.f32 %v752, 0.0
        %v805 = vmax.f32 %v757, 0.0
        %v806 = vmax.f32 %v760, 0.0
        %v807 = vmax.f32 %v765, 0.0
        %v808 = vmax.f32 %v768, 0.0
        %v809 = vmax.f32 %v773, 0.0
        %v810 = vmax.f32 %v776, 0.0
        %v811 = vpack.c.bf16 %v468, %v467
        %v812 = vld [vmem:[#allocation5] sm:$0xf]
        %v813 = vld [vmem:[#allocation5 + $0x4] sm:$0xf]
        %v814 = vld [vmem:[#allocation5 + $0x8] sm:$0xf]
        %v815 = vld [vmem:[#allocation5 + $0xc] sm:$0xf]
        %v816 = vld [vmem:[#allocation5 + $0x10] sm:$0xf]
        %v817 = vld [vmem:[#allocation5 + $0x14] sm:$0xf]
        %v818 = vld [vmem:[#allocation5 + $0x18] sm:$0xf]
        %v819 = vld [vmem:[#allocation5 + $0x1c] sm:$0xf]
        %v820 = vld [vmem:[#allocation5 + $0x20] sm:$0xf]
        %v821 = vld [vmem:[#allocation5 + $0x24] sm:$0xf]
        %v822 = vld [vmem:[#allocation5 + $0x28] sm:$0xf]
        %v823 = vld [vmem:[#allocation5 + $0x2c] sm:$0xf]
        %v824 = vld [vmem:[#allocation5 + $0x30] sm:$0xf]
        %v825 = vld [vmem:[#allocation5 + $0x34] sm:$0xf]
        %v826 = vld [vmem:[#allocation5 + $0x38] sm:$0xf]
        %v827 = vld [vmem:[#allocation5 + $0x3c] sm:$0xf]
        %v828 = vld [vmem:[%s6 + $0x2] sm:$0x1]
        %v829 = vlaneseq
        %v830 = vshrl.u32 %v829, 7
        %v831 = vsub.s32 0, %v830
        %v832 = vrot.slane %v828, %v831
        %v849 = vunpack.c.l.b16 %v812
        %v850 = vunpack.c.l.b16 %v813
        %v851 = vunpack.c.l.b16 %v814
        %v852 = vunpack.c.l.b16 %v815
        %v853 = vunpack.c.l.b16 %v816
        %v854 = vunpack.c.l.b16 %v817
        %v855 = vunpack.c.l.b16 %v818
        %v856 = vunpack.c.l.b16 %v819
        %v857 = vunpack.c.l.b16 %v820
        %v858 = vunpack.c.l.b16 %v821
        %v859 = vunpack.c.l.b16 %v822
        %v860 = vunpack.c.l.b16 %v823
        %v861 = vunpack.c.l.b16 %v824
        %v862 = vunpack.c.l.b16 %v825
        %v863 = vunpack.c.l.b16 %v826
        %v864 = vunpack.c.l.b16 %v827
        %v865 = vpack.c.b16 %v850, %v849
        %v866 = vpack.c.b16 %v852, %v851
        %v867 = vpack.c.b16 %v854, %v853
        %v868 = vpack.c.b16 %v856, %v855
        %v869 = vpack.c.b16 %v858, %v857
        %v870 = vpack.c.b16 %v860, %v859
        %v871 = vpack.c.b16 %v862, %v861
        %v872 = vpack.c.b16 %v864, %v863
        %881 = vmatprep.subr.bf16.mxu0 0
        %882 = vmatpush1.bf16.msra.mxu0 %v865
        %883 = vmatprep.subr.bf16.mxu0 0
        %884 = vmatpush1.bf16.msra.mxu0 %v866
        %885 = vmatprep.subr.bf16.mxu0 0
        %886 = vmatpush1.bf16.msra.mxu0 %v867
        %887 = vmatprep.subr.bf16.mxu0 0
        %888 = vmatpush1.bf16.msra.mxu0 %v868
        %889 = vmatprep.subr.bf16.mxu0 0
        %890 = vmatpush1.bf16.msra.mxu0 %v869
        %891 = vmatprep.subr.bf16.mxu0 0
        %892 = vmatpush1.bf16.msra.mxu0 %v870
        %893 = vmatprep.subr.bf16.mxu0 0
        %894 = vmatpush1.bf16.msra.mxu0 %v871
        %895 = vmatprep.subr.bf16.mxu0 0
        %896 = vmatpush1.bf16.msra.mxu0 %v872
        %897 = vmatprep.subr.bf16.mxu0 0
        %898 = vmatpush1.bf16.msra.mxu0 0
        %899 = vmatprep.subr.bf16.mxu0 0
        %900 = vmatpush1.bf16.msra.mxu0 0
        %901 = vmatprep.subr.bf16.mxu0 0
        %902 = vmatpush1.bf16.msra.mxu0 0
        %903 = vmatprep.subr.bf16.mxu0 0
        %904 = vmatpush1.bf16.msra.mxu0 0
        %905 = vmatprep.subr.bf16.mxu0 0
        %906 = vmatpush1.bf16.msra.mxu0 0
        %907 = vmatprep.subr.bf16.mxu0 0
        %908 = vmatpush1.bf16.msra.mxu0 0
        %909 = vmatprep.subr.bf16.mxu0 0
        %910 = vmatpush1.bf16.msra.mxu0 0
        %911 = vmatprep.subr.bf16.mxu0 0
        %912 = vmatpush1.bf16.msra.mxu0 0
        %913 = vmatprep.mubr.bf16.mxu0 0
        %914 = vmatmul.mubr.bf16.gmra.mrb[0].mxu0 %v811
        %v915 = vpop.f32.mrb[0].mxu0
        %v916 = vadd.f32 %v832, %v915
        %v917 = vpop.f32.mrb[0].mxu0
        %v918 = vpop.f32.mrb[0].mxu0
        %v919 = vadd.f32 %v832, %v918
        %v920 = vpop.f32.mrb[0].mxu0
        %921 = vdwg.mxu0
        %v922 = vpack.c.bf16 %v780, %v779
        %v923 = vpack.c.bf16 %v782, %v781
        %v924 = vpack.c.bf16 %v784, %v783
        %v925 = vpack.c.bf16 %v786, %v785
        %v926 = vpack.c.bf16 %v788, %v787
        %v927 = vpack.c.bf16 %v790, %v789
        %v928 = vpack.c.bf16 %v792, %v791
        %v929 = vpack.c.bf16 %v794, %v793
        %v930 = vpack.c.bf16 %v796, %v795
        %v931 = vpack.c.bf16 %v798, %v797
        %v932 = vpack.c.bf16 %v800, %v799
        %v933 = vpack.c.bf16 %v802, %v801
        %v934 = vpack.c.bf16 %v804, %v803
        %v935 = vpack.c.bf16 %v806, %v805
        %v936 = vpack.c.bf16 %v808, %v807
        %v937 = vpack.c.bf16 %v810, %v809
        %s938 = scalar_lea.vmem [#allocation5], 64
        %v939 = vld [vmem:[%s938] sm:$0xf]
        %v940 = vld [vmem:[%s938 + $0x4] sm:$0xf]
        %v941 = vld [vmem:[%s938 + $0x8] sm:$0xf]
        %v942 = vld [vmem:[%s938 + $0xc] sm:$0xf]
        %v943 = vld [vmem:[%s938 + $0x10] sm:$0xf]
        %v944 = vld [vmem:[%s938 + $0x14] sm:$0xf]
        %v945 = vld [vmem:[%s938 + $0x18] sm:$0xf]
        %v946 = vld [vmem:[%s938 + $0x1c] sm:$0xf]
        %v947 = vld [vmem:[%s938 + $0x20] sm:$0xf]
        %v948 = vld [vmem:[%s938 + $0x24] sm:$0xf]
        %v949 = vld [vmem:[%s938 + $0x28] sm:$0xf]
        %v950 = vld [vmem:[%s938 + $0x2c] sm:$0xf]
        %v951 = vld [vmem:[%s938 + $0x30] sm:$0xf]
        %v952 = vld [vmem:[%s938 + $0x34] sm:$0xf]
        %v953 = vld [vmem:[%s938 + $0x38] sm:$0xf]
        %v954 = vld [vmem:[%s938 + $0x3c] sm:$0xf]
        %v955 = vld [vmem:[%s6 + $0x3] sm:$0x1]
        %v956 = vlaneseq
        %v957 = vshrl.u32 %v956, 7
        %v958 = vsub.s32 0, %v957
        %v959 = vrot.slane %v955, %v958
        %v976 = vunpack.c.l.b16 %v939
        %v977 = vunpack.c.l.b16 %v940
        %v978 = vunpack.c.l.b16 %v941
        %v979 = vunpack.c.l.b16 %v942
        %v980 = vunpack.c.l.b16 %v943
        %v981 = vunpack.c.l.b16 %v944
        %v982 = vunpack.c.l.b16 %v945
        %v983 = vunpack.c.l.b16 %v946
        %v984 = vunpack.c.l.b16 %v947
        %v985 = vunpack.c.l.b16 %v948
        %v986 = vunpack.c.l.b16 %v949
        %v987 = vunpack.c.l.b16 %v950
        %v988 = vunpack.c.l.b16 %v951
        %v989 = vunpack.c.l.b16 %v952
        %v990 = vunpack.c.l.b16 %v953
        %v991 = vunpack.c.l.b16 %v954
        %v992 = vpack.c.b16 %v977, %v976
        %v993 = vpack.c.b16 %v979, %v978
        %v994 = vpack.c.b16 %v981, %v980
        %v995 = vpack.c.b16 %v983, %v982
        %v996 = vpack.c.b16 %v985, %v984
        %v997 = vpack.c.b16 %v987, %v986
        %v998 = vpack.c.b16 %v989, %v988
        %v999 = vpack.c.b16 %v991, %v990
        %1008 = vmatprep.subr.bf16.mxu0 0
        %1009 = vmatpush1.bf16.msra.mxu0 %v992
        %1010 = vmatprep.subr.bf16.mxu0 0
        %1011 = vmatpush1.bf16.msra.mxu0 %v993
        %1012 = vmatprep.subr.bf16.mxu0 0
        %1013 = vmatpush1.bf16.msra.mxu0 %v994
        %1014 = vmatprep.subr.bf16.mxu0 0
        %1015 = vmatpush1.bf16.msra.mxu0 %v995
        %1016 = vmatprep.subr.bf16.mxu0 0
        %1017 = vmatpush1.bf16.msra.mxu0 %v996
        %1018 = vmatprep.subr.bf16.mxu0 0
        %1019 = vmatpush1.bf16.msra.mxu0 %v997
        %1020 = vmatprep.subr.bf16.mxu0 0
        %1021 = vmatpush1.bf16.msra.mxu0 %v998
        %1022 = vmatprep.subr.bf16.mxu0 0
        %1023 = vmatpush1.bf16.msra.mxu0 %v999
        %1024 = vmatprep.subr.bf16.mxu0 0
        %1025 = vmatpush1.bf16.msra.mxu0 0
        %1026 = vmatprep.subr.bf16.mxu0 0
        %1027 = vmatpush1.bf16.msra.mxu0 0
        %1028 = vmatprep.subr.bf16.mxu0 0
        %1029 = vmatpush1.bf16.msra.mxu0 0
        %1030 = vmatprep.subr.bf16.mxu0 0
        %1031 = vmatpush1.bf16.msra.mxu0 0
        %1032 = vmatprep.subr.bf16.mxu0 0
        %1033 = vmatpush1.bf16.msra.mxu0 0
        %1034 = vmatprep.subr.bf16.mxu0 0
        %1035 = vmatpush1.bf16.msra.mxu0 0
        %1036 = vmatprep.subr.bf16.mxu0 0
        %1037 = vmatpush1.bf16.msra.mxu0 0
        %1038 = vmatprep.subr.bf16.mxu0 0
        %1039 = vmatpush1.bf16.msra.mxu0 0
        %1040 = vmatprep.mubr.bf16.mxu0 0
        %1041 = vmatmul.mubr.bf16.gmra.mrb[0].mxu0 %v922
        %v1042 = vpop.f32.mrb[0].mxu0
        %v1043 = vadd.f32 %v959, %v1042
        %v1044 = vpop.f32.mrb[0].mxu0
        %v1045 = vpop.f32.mrb[0].mxu0
        %v1046 = vadd.f32 %v959, %v1045
        %v1047 = vpop.f32.mrb[0].mxu0
        %1048 = vmatprep.mubr.bf16.mxu0 0
        %1049 = vmatmul.mubr.bf16.gmra.mrb[0].mxu0 %v923
        %v1050 = vpop.f32.mrb[0].mxu0
        %v1051 = vadd.f32 %v959, %v1050
        %v1052 = vpop.f32.mrb[0].mxu0
        %v1053 = vpop.f32.mrb[0].mxu0
        %v1054 = vadd.f32 %v959, %v1053
        %v1055 = vpop.f32.mrb[0].mxu0
        %1056 = vmatprep.mubr.bf16.mxu0 0
        %1057 = vmatmul.mubr.bf16.gmra.mrb[0].mxu0 %v924
        %v1058 = vpop.f32.mrb[0].mxu0
        %v1059 = vadd.f32 %v959, %v1058
        %v1060 = vpop.f32.mrb[0].mxu0
        %v1061 = vpop.f32.mrb[0].mxu0
        %v1062 = vadd.f32 %v959, %v1061
        %v1063 = vpop.f32.mrb[0].mxu0
        %1064 = vmatprep.mubr.bf16.mxu0 0
        %1065 = vmatmul.mubr.bf16.gmra.mrb[0].mxu0 %v925
        %v1066 = vpop.f32.mrb[0].mxu0
        %v1067 = vadd.f32 %v959, %v1066
        %v1068 = vpop.f32.mrb[0].mxu0
        %v1069 = vpop.f32.mrb[0].mxu0
        %v1070 = vadd.f32 %v959, %v1069
        %v1071 = vpop.f32.mrb[0].mxu0
        %1072 = vmatprep.mubr.bf16.mxu0 0
        %1073 = vmatmul.mubr.bf16.gmra.mrb[0].mxu0 %v926
        %v1074 = vpop.f32.mrb[0].mxu0
        %v1075 = vadd.f32 %v959, %v1074
        %v1076 = vpop.f32.mrb[0].mxu0
        %v1077 = vpop.f32.mrb[0].mxu0
        %v1078 = vadd.f32 %v959, %v1077
        %v1079 = vpop.f32.mrb[0].mxu0
        %1080 = vmatprep.mubr.bf16.mxu0 0
        %1081 = vmatmul.mubr.bf16.gmra.mrb[0].mxu0 %v927
        %v1082 = vpop.f32.mrb[0].mxu0
        %v1083 = vadd.f32 %v959, %v1082
        %v1084 = vpop.f32.mrb[0].mxu0
        %v1085 = vpop.f32.mrb[0].mxu0
        %v1086 = vadd.f32 %v959, %v1085
        %v1087 = vpop.f32.mrb[0].mxu0
        %1088 = vmatprep.mubr.bf16.mxu0 0
        %1089 = vmatmul.mubr.bf16.gmra.mrb[0].mxu0 %v928
        %v1090 = vpop.f32.mrb[0].mxu0
        %v1091 = vadd.f32 %v959, %v1090
        %v1092 = vpop.f32.mrb[0].mxu0
        %v1093 = vpop.f32.mrb[0].mxu0
        %v1094 = vadd.f32 %v959, %v1093
        %v1095 = vpop.f32.mrb[0].mxu0
        %1096 = vmatprep.mubr.bf16.mxu0 0
        %1097 = vmatmul.mubr.bf16.gmra.mrb[0].mxu0 %v929
        %v1098 = vpop.f32.mrb[0].mxu0
        %v1099 = vadd.f32 %v959, %v1098
        %v1100 = vpop.f32.mrb[0].mxu0
        %v1101 = vpop.f32.mrb[0].mxu0
        %v1102 = vadd.f32 %v959, %v1101
        %v1103 = vpop.f32.mrb[0].mxu0
        %1104 = vmatprep.mubr.bf16.mxu0 0
        %1105 = vmatmul.mubr.bf16.gmra.mrb[0].mxu0 %v930
        %v1106 = vpop.f32.mrb[0].mxu0
        %v1107 = vadd.f32 %v959, %v1106
        %v1108 = vpop.f32.mrb[0].mxu0
        %v1109 = vpop.f32.mrb[0].mxu0
        %v1110 = vadd.f32 %v959, %v1109
        %v1111 = vpop.f32.mrb[0].mxu0
        %1112 = vmatprep.mubr.bf16.mxu0 0
        %1113 = vmatmul.mubr.bf16.gmra.mrb[0].mxu0 %v931
        %v1114 = vpop.f32.mrb[0].mxu0
        %v1115 = vadd.f32 %v959, %v1114
        %v1116 = vpop.f32.mrb[0].mxu0
        %v1117 = vpop.f32.mrb[0].mxu0
        %v1118 = vadd.f32 %v959, %v1117
        %v1119 = vpop.f32.mrb[0].mxu0
        %1120 = vmatprep.mubr.bf16.mxu0 0
        %1121 = vmatmul.mubr.bf16.gmra.mrb[0].mxu0 %v932
        %v1122 = vpop.f32.mrb[0].mxu0
        %v1123 = vadd.f32 %v959, %v1122
        %v1124 = vpop.f32.mrb[0].mxu0
        %v1125 = vpop.f32.mrb[0].mxu0
        %v1126 = vadd.f32 %v959, %v1125
        %v1127 = vpop.f32.mrb[0].mxu0
        %1128 = vmatprep.mubr.bf16.mxu0 0
        %1129 = vmatmul.mubr.bf16.gmra.mrb[0].mxu0 %v933
        %v1130 = vpop.f32.mrb[0].mxu0
        %v1131 = vadd.f32 %v959, %v1130
        %v1132 = vpop.f32.mrb[0].mxu0
        %v1133 = vpop.f32.mrb[0].mxu0
        %v1134 = vadd.f32 %v959, %v1133
        %v1135 = vpop.f32.mrb[0].mxu0
        %1136 = vmatprep.mubr.bf16.mxu0 0
        %1137 = vmatmul.mubr.bf16.gmra.mrb[0].mxu0 %v934
        %v1138 = vpop.f32.mrb[0].mxu0
        %v1139 = vadd.f32 %v959, %v1138
        %v1140 = vpop.f32.mrb[0].mxu0
        %v1141 = vpop.f32.mrb[0].mxu0
        %v1142 = vadd.f32 %v959, %v1141
        %v1143 = vpop.f32.mrb[0].mxu0
        %1144 = vmatprep.mubr.bf16.mxu0 0
        %1145 = vmatmul.mubr.bf16.gmra.mrb[0].mxu0 %v935
        %v1146 = vpop.f32.mrb[0].mxu0
        %v1147 = vadd.f32 %v959, %v1146
        %v1148 = vpop.f32.mrb[0].mxu0
        %v1149 = vpop.f32.mrb[0].mxu0
        %v1150 = vadd.f32 %v959, %v1149
        %v1151 = vpop.f32.mrb[0].mxu0
        %1152 = vmatprep.mubr.bf16.mxu0 0
        %1153 = vmatmul.mubr.bf16.gmra.mrb[0].mxu0 %v936
        %v1154 = vpop.f32.mrb[0].mxu0
        %v1155 = vadd.f32 %v959, %v1154
        %v1156 = vpop.f32.mrb[0].mxu0
        %v1157 = vpop.f32.mrb[0].mxu0
        %v1158 = vadd.f32 %v959, %v1157
        %v1159 = vpop.f32.mrb[0].mxu0
        %1160 = vmatprep.mubr.bf16.mxu0 0
        %1161 = vmatmul.mubr.bf16.gmra.mrb[0].mxu0 %v937
        %v1162 = vpop.f32.mrb[0].mxu0
        %v1163 = vadd.f32 %v959, %v1162
        %v1164 = vpop.f32.mrb[0].mxu0
        %v1165 = vpop.f32.mrb[0].mxu0
        %v1166 = vadd.f32 %v959, %v1165
        %v1167 = vpop.f32.mrb[0].mxu0
        %1168 = vdwg.mxu0
        %v1171 = vcombine.high %v916, %v916
        %v1173 = vunpack.c.l.s4 1966171168
        %v1174 = vunpack.c.0.s8 %v1173
        %v1175 = vlaneseq
        %v1176 = vshrl.u32 %v1175, 7
        %v1177 = vsub.s32 %v1174, %v1176
        %v1178 = vrot.slane %v916, %v1177
        %v1180 = vunpack.c.l.s4 1966171168
        %v1181 = vunpack.c.0.s8 %v1180
        %v1182 = vlaneseq
        %v1183 = vshrl.u32 %v1182, 7
        %v1184 = vsub.s32 %v1181, %v1183
        %v1185 = vrot.slane %v1171, %v1184
        %v1186 = vcombine.high %v1178, %v1178
        %v1187 = vcombine.high %v1185, %v1185
        %v1189 = vunpack.c.l.s4 1966171168
        %v1190 = vunpack.c.0.s8 %v1189
        %v1191 = vlaneseq
        %v1192 = vshrl.u32 %v1191, 7
        %v1193 = vsub.s32 %v1190, %v1192
        %v1194 = vrot.slane %v1178, %v1193
        %v1196 = vunpack.c.l.s4 1966171168
        %v1197 = vunpack.c.0.s8 %v1196
        %v1198 = vlaneseq
        %v1199 = vshrl.u32 %v1198, 7
        %v1200 = vsub.s32 %v1197, %v1199
        %v1201 = vrot.slane %v1185, %v1200
        %v1203 = vunpack.c.l.s4 1966171168
        %v1204 = vunpack.c.0.s8 %v1203
        %v1205 = vlaneseq
        %v1206 = vshrl.u32 %v1205, 7
        %v1207 = vsub.s32 %v1204, %v1206
        %v1208 = vrot.slane %v1186, %v1207
        %v1210 = vunpack.c.l.s4 1966171168
        %v1211 = vunpack.c.0.s8 %v1210
        %v1212 = vlaneseq
        %v1213 = vshrl.u32 %v1212, 7
        %v1214 = vsub.s32 %v1211, %v1213
        %v1215 = vrot.slane %v1187, %v1214
        %v1216 = vcombine.high %v1194, %v1194
        %v1217 = vcombine.high %v1201, %v1201
        %v1218 = vcombine.high %v1208, %v1208
        %v1219 = vcombine.high %v1215, %v1215
        %v1220 = vcombine.high %v919, %v919
        %v1222 = vunpack.c.l.s4 1966171168
        %v1223 = vunpack.c.0.s8 %v1222
        %v1224 = vlaneseq
        %v1225 = vshrl.u32 %v1224, 7
        %v1226 = vsub.s32 %v1223, %v1225
        %v1227 = vrot.slane %v919, %v1226
        %v1229 = vunpack.c.l.s4 1966171168
        %v1230 = vunpack.c.0.s8 %v1229
        %v1231 = vlaneseq
        %v1232 = vshrl.u32 %v1231, 7
        %v1233 = vsub.s32 %v1230, %v1232
        %v1234 = vrot.slane %v1220, %v1233
        %v1235 = vcombine.high %v1227, %v1227
        %v1236 = vcombine.high %v1234, %v1234
        %v1238 = vunpack.c.l.s4 1966171168
        %v1239 = vunpack.c.0.s8 %v1238
        %v1240 = vlaneseq
        %v1241 = vshrl.u32 %v1240, 7
        %v1242 = vsub.s32 %v1239, %v1241
        %v1243 = vrot.slane %v1227, %v1242
        %v1245 = vunpack.c.l.s4 1966171168
        %v1246 = vunpack.c.0.s8 %v1245
        %v1247 = vlaneseq
        %v1248 = vshrl.u32 %v1247, 7
        %v1249 = vsub.s32 %v1246, %v1248
        %v1250 = vrot.slane %v1234, %v1249
        %v1252 = vunpack.c.l.s4 1966171168
        %v1253 = vunpack.c.0.s8 %v1252
        %v1254 = vlaneseq
        %v1255 = vshrl.u32 %v1254, 7
        %v1256 = vsub.s32 %v1253, %v1255
        %v1257 = vrot.slane %v1235, %v1256
        %v1259 = vunpack.c.l.s4 1966171168
        %v1260 = vunpack.c.0.s8 %v1259
        %v1261 = vlaneseq
        %v1262 = vshrl.u32 %v1261, 7
        %v1263 = vsub.s32 %v1260, %v1262
        %v1264 = vrot.slane %v1236, %v1263
        %v1265 = vcombine.high %v1243, %v1243
        %v1266 = vcombine.high %v1250, %v1250
        %v1267 = vcombine.high %v1257, %v1257
        %v1268 = vcombine.high %v1264, %v1264
        %v1269 = vlaneseq
        %v1270 = vshrl.u32 %v1269, 7
        %v1271 = vsub.s32 0, %v1270
        %v1272 = vrot.slane %v1194, %v1271
        %v1273 = vlaneseq
        %v1274 = vshrl.u32 %v1273, 7
        %v1275 = vsub.s32 0, %v1274
        %v1276 = vrot.slane %v1208, %v1275
        %v1277 = vlaneseq
        %v1278 = vshrl.u32 %v1277, 7
        %v1279 = vsub.s32 0, %v1278
        %v1280 = vrot.slane %v1216, %v1279
        %v1281 = vlaneseq
        %v1282 = vshrl.u32 %v1281, 7
        %v1283 = vsub.s32 0, %v1282
        %v1284 = vrot.slane %v1218, %v1283
        %v1285 = vlaneseq
        %v1286 = vshrl.u32 %v1285, 7
        %v1287 = vsub.s32 0, %v1286
        %v1288 = vrot.slane %v1201, %v1287
        %v1289 = vlaneseq
        %v1290 = vshrl.u32 %v1289, 7
        %v1291 = vsub.s32 0, %v1290
        %v1292 = vrot.slane %v1215, %v1291
        %v1293 = vlaneseq
        %v1294 = vshrl.u32 %v1293, 7
        %v1295 = vsub.s32 0, %v1294
        %v1296 = vrot.slane %v1217, %v1295
        %v1297 = vlaneseq
        %v1298 = vshrl.u32 %v1297, 7
        %v1299 = vsub.s32 0, %v1298
        %v1300 = vrot.slane %v1219, %v1299
        %v1301 = vlaneseq
        %v1302 = vshrl.u32 %v1301, 7
        %v1303 = vsub.s32 0, %v1302
        %v1304 = vrot.slane %v1243, %v1303
        %v1305 = vlaneseq
        %v1306 = vshrl.u32 %v1305, 7
        %v1307 = vsub.s32 0, %v1306
        %v1308 = vrot.slane %v1257, %v1307
        %v1309 = vlaneseq
        %v1310 = vshrl.u32 %v1309, 7
        %v1311 = vsub.s32 0, %v1310
        %v1312 = vrot.slane %v1265, %v1311
        %v1313 = vlaneseq
        %v1314 = vshrl.u32 %v1313, 7
        %v1315 = vsub.s32 0, %v1314
        %v1316 = vrot.slane %v1267, %v1315
        %v1317 = vlaneseq
        %v1318 = vshrl.u32 %v1317, 7
        %v1319 = vsub.s32 0, %v1318
        %v1320 = vrot.slane %v1250, %v1319
        %v1321 = vlaneseq
        %v1322 = vshrl.u32 %v1321, 7
        %v1323 = vsub.s32 0, %v1322
        %v1324 = vrot.slane %v1264, %v1323
        %v1325 = vlaneseq
        %v1326 = vshrl.u32 %v1325, 7
        %v1327 = vsub.s32 0, %v1326
        %v1328 = vrot.slane %v1266, %v1327
        %v1329 = vlaneseq
        %v1330 = vshrl.u32 %v1329, 7
        %v1331 = vsub.s32 0, %v1330
        %v1332 = vrot.slane %v1268, %v1331
        %v1349 = vmul.f32 %v1272, %v1043
        %v1350 = vmul.f32 %v1272, %v1046
        %v1351 = vmul.f32 %v1276, %v1051
        %v1352 = vmul.f32 %v1276, %v1054
        %v1353 = vmul.f32 %v1280, %v1059
        %v1354 = vmul.f32 %v1280, %v1062
        %v1355 = vmul.f32 %v1284, %v1067
        %v1356 = vmul.f32 %v1284, %v1070
        %v1357 = vmul.f32 %v1288, %v1075
        %v1358 = vmul.f32 %v1288, %v1078
        %v1359 = vmul.f32 %v1292, %v1083
        %v1360 = vmul.f32 %v1292, %v1086
        %v1361 = vmul.f32 %v1296, %v1091
        %v1362 = vmul.f32 %v1296, %v1094
        %v1363 = vmul.f32 %v1300, %v1099
        %v1364 = vmul.f32 %v1300, %v1102
        %v1365 = vmul.f32 %v1304, %v1107
        %v1366 = vmul.f32 %v1304, %v1110
        %v1367 = vmul.f32 %v1308, %v1115
        %v1368 = vmul.f32 %v1308, %v1118
        %v1369 = vmul.f32 %v1312, %v1123
        %v1370 = vmul.f32 %v1312, %v1126
        %v1371 = vmul.f32 %v1316, %v1131
        %v1372 = vmul.f32 %v1316, %v1134
        %v1373 = vmul.f32 %v1320, %v1139
        %v1374 = vmul.f32 %v1320, %v1142
        %v1375 = vmul.f32 %v1324, %v1147
        %v1376 = vmul.f32 %v1324, %v1150
        %v1377 = vmul.f32 %v1328, %v1155
        %v1378 = vmul.f32 %v1328, %v1158
        %v1379 = vmul.f32 %v1332, %v1163
        %v1380 = vmul.f32 %v1332, %v1166
        %1381 = vadd.xlane.f32.xlu0 %v1349
        %v1382 = vpop.xlane.xlu0 %1381
        %1383 = vadd.xlane.f32.xlu0 %v1350
        %v1384 = vpop.xlane.xlu0 %1383
        %1385 = vadd.xlane.f32.xlu0 %v1351
        %v1386 = vpop.xlane.xlu0 %1385
        %1387 = vadd.xlane.f32.xlu0 %v1352
        %v1388 = vpop.xlane.xlu0 %1387
        %1389 = vadd.xlane.f32.xlu0 %v1353
        %v1390 = vpop.xlane.xlu0 %1389
        %1391 = vadd.xlane.f32.xlu0 %v1354
        %v1392 = vpop.xlane.xlu0 %1391
        %1393 = vadd.xlane.f32.xlu0 %v1355
        %v1394 = vpop.xlane.xlu0 %1393
        %1395 = vadd.xlane.f32.xlu0 %v1356
        %v1396 = vpop.xlane.xlu0 %1395
        %1397 = vadd.xlane.f32.xlu0 %v1357
        %v1398 = vpop.xlane.xlu0 %1397
        %1399 = vadd.xlane.f32.xlu0 %v1358
        %v1400 = vpop.xlane.xlu0 %1399
        %1401 = vadd.xlane.f32.xlu0 %v1359
        %v1402 = vpop.xlane.xlu0 %1401
        %1403 = vadd.xlane.f32.xlu0 %v1360
        %v1404 = vpop.xlane.xlu0 %1403
        %1405 = vadd.xlane.f32.xlu0 %v1361
        %v1406 = vpop.xlane.xlu0 %1405
        %1407 = vadd.xlane.f32.xlu0 %v1362
        %v1408 = vpop.xlane.xlu0 %1407
        %1409 = vadd.xlane.f32.xlu0 %v1363
        %v1410 = vpop.xlane.xlu0 %1409
        %1411 = vadd.xlane.f32.xlu0 %v1364
        %v1412 = vpop.xlane.xlu0 %1411
        %1413 = vadd.xlane.f32.xlu0 %v1365
        %v1414 = vpop.xlane.xlu0 %1413
        %1415 = vadd.xlane.f32.xlu0 %v1366
        %v1416 = vpop.xlane.xlu0 %1415
        %1417 = vadd.xlane.f32.xlu0 %v1367
        %v1418 = vpop.xlane.xlu0 %1417
        %1419 = vadd.xlane.f32.xlu0 %v1368
        %v1420 = vpop.xlane.xlu0 %1419
        %1421 = vadd.xlane.f32.xlu0 %v1369
        %v1422 = vpop.xlane.xlu0 %1421
        %1423 = vadd.xlane.f32.xlu0 %v1370
        %v1424 = vpop.xlane.xlu0 %1423
        %1425 = vadd.xlane.f32.xlu0 %v1371
        %v1426 = vpop.xlane.xlu0 %1425
        %1427 = vadd.xlane.f32.xlu0 %v1372
        %v1428 = vpop.xlane.xlu0 %1427
        %1429 = vadd.xlane.f32.xlu0 %v1373
        %v1430 = vpop.xlane.xlu0 %1429
        %1431 = vadd.xlane.f32.xlu0 %v1374
        %v1432 = vpop.xlane.xlu0 %1431
        %1433 = vadd.xlane.f32.xlu0 %v1375
        %v1434 = vpop.xlane.xlu0 %1433
        %1435 = vadd.xlane.f32.xlu0 %v1376
        %v1436 = vpop.xlane.xlu0 %1435
        %1437 = vadd.xlane.f32.xlu0 %v1377
        %v1438 = vpop.xlane.xlu0 %1437
        %1439 = vadd.xlane.f32.xlu0 %v1378
        %v1440 = vpop.xlane.xlu0 %1439
        %1441 = vadd.xlane.f32.xlu0 %v1379
        %v1442 = vpop.xlane.xlu0 %1441
        %1443 = vadd.xlane.f32.xlu0 %v1380
        %v1444 = vpop.xlane.xlu0 %1443
        %v1445 = vmul.f32 %v394, -1e+09
        %v1446 = vmul.f32 %v395, -1e+09
        %v1449 = vlaneseq
        %v1450 = vshrl.u32 %v1449, 7
        %v1451 = vsub.s32 0, %v1450
        %v1452 = vrot.slane %v1445, %v1451
        %1454 = vbcast.lane.b32.xlu0 %v1452, 256
        %v1455 = vpop.permute.xlu0 %1454
        %s1457 = sor.u32 256, 8
        %1458 = vbcast.lane.b32.xlu0 %v1452, %s1457
        %v1459 = vpop.permute.xlu0 %1458
        %v1460 = vlaneseq
        %v1461 = vshrl.u32 %v1460, 7
        %v1462 = vsub.s32 1, %v1461
        %v1463 = vrot.slane %v1445, %v1462
        %1465 = vbcast.lane.b32.xlu0 %v1463, 256
        %v1466 = vpop.permute.xlu0 %1465
        %s1468 = sor.u32 256, 8
        %1469 = vbcast.lane.b32.xlu0 %v1463, %s1468
        %v1470 = vpop.permute.xlu0 %1469
        %v1471 = vlaneseq
        %v1472 = vshrl.u32 %v1471, 7
        %v1473 = vsub.s32 2, %v1472
        %v1474 = vrot.slane %v1445, %v1473
        %1476 = vbcast.lane.b32.xlu0 %v1474, 256
        %v1477 = vpop.permute.xlu0 %1476
        %s1479 = sor.u32 256, 8
        %1480 = vbcast.lane.b32.xlu0 %v1474, %s1479
        %v1481 = vpop.permute.xlu0 %1480
        %v1482 = vlaneseq
        %v1483 = vshrl.u32 %v1482, 7
        %v1484 = vsub.s32 3, %v1483
        %v1485 = vrot.slane %v1445, %v1484
        %1487 = vbcast.lane.b32.xlu0 %v1485, 256
        %v1488 = vpop.permute.xlu0 %1487
        %s1490 = sor.u32 256, 8
        %1491 = vbcast.lane.b32.xlu0 %v1485, %s1490
        %v1492 = vpop.permute.xlu0 %1491
        %v1493 = vlaneseq
        %v1494 = vshrl.u32 %v1493, 7
        %v1495 = vsub.s32 4, %v1494
        %v1496 = vrot.slane %v1445, %v1495
        %1498 = vbcast.lane.b32.xlu0 %v1496, 256
        %v1499 = vpop.permute.xlu0 %1498
        %s1501 = sor.u32 256, 8
        %1502 = vbcast.lane.b32.xlu0 %v1496, %s1501
        %v1503 = vpop.permute.xlu0 %1502
        %v1504 = vlaneseq
        %v1505 = vshrl.u32 %v1504, 7
        %v1506 = vsub.s32 5, %v1505
        %v1507 = vrot.slane %v1445, %v1506
        %1509 = vbcast.lane.b32.xlu0 %v1507, 256
        %v1510 = vpop.permute.xlu0 %1509
        %s1512 = sor.u32 256, 8
        %1513 = vbcast.lane.b32.xlu0 %v1507, %s1512
        %v1514 = vpop.permute.xlu0 %1513
        %v1515 = vlaneseq
        %v1516 = vshrl.u32 %v1515, 7
        %v1517 = vsub.s32 6, %v1516
        %v1518 = vrot.slane %v1445, %v1517
        %1520 = vbcast.lane.b32.xlu0 %v1518, 256
        %v1521 = vpop.permute.xlu0 %1520
        %s1523 = sor.u32 256, 8
        %1524 = vbcast.lane.b32.xlu0 %v1518, %s1523
        %v1525 = vpop.permute.xlu0 %1524
        %v1526 = vlaneseq
        %v1527 = vshrl.u32 %v1526, 7
        %v1528 = vsub.s32 7, %v1527
        %v1529 = vrot.slane %v1445, %v1528
        %1531 = vbcast.lane.b32.xlu0 %v1529, 256
        %v1532 = vpop.permute.xlu0 %1531
        %s1534 = sor.u32 256, 8
        %1535 = vbcast.lane.b32.xlu0 %v1529, %s1534
        %v1536 = vpop.permute.xlu0 %1535
        %v1537 = vlaneseq
        %v1538 = vshrl.u32 %v1537, 7
        %v1539 = vsub.s32 0, %v1538
        %v1540 = vrot.slane %v1446, %v1539
        %1542 = vbcast.lane.b32.xlu0 %v1540, 256
        %v1543 = vpop.permute.xlu0 %1542
        %s1545 = sor.u32 256, 8
        %1546 = vbcast.lane.b32.xlu0 %v1540, %s1545
        %v1547 = vpop.permute.xlu0 %1546
        %v1548 = vlaneseq
        %v1549 = vshrl.u32 %v1548, 7
        %v1550 = vsub.s32 1, %v1549
        %v1551 = vrot.slane %v1446, %v1550
        %1553 = vbcast.lane.b32.xlu0 %v1551, 256
        %v1554 = vpop.permute.xlu0 %1553
        %s1556 = sor.u32 256, 8
        %1557 = vbcast.lane.b32.xlu0 %v1551, %s1556
        %v1558 = vpop.permute.xlu0 %1557
        %v1559 = vlaneseq
        %v1560 = vshrl.u32 %v1559, 7
        %v1561 = vsub.s32 2, %v1560
        %v1562 = vrot.slane %v1446, %v1561
        %1564 = vbcast.lane.b32.xlu0 %v1562, 256
        %v1565 = vpop.permute.xlu0 %1564
        %s1567 = sor.u32 256, 8
        %1568 = vbcast.lane.b32.xlu0 %v1562, %s1567
        %v1569 = vpop.permute.xlu0 %1568
        %v1570 = vlaneseq
        %v1571 = vshrl.u32 %v1570, 7
        %v1572 = vsub.s32 3, %v1571
        %v1573 = vrot.slane %v1446, %v1572
        %1575 = vbcast.lane.b32.xlu0 %v1573, 256
        %v1576 = vpop.permute.xlu0 %1575
        %s1578 = sor.u32 256, 8
        %1579 = vbcast.lane.b32.xlu0 %v1573, %s1578
        %v1580 = vpop.permute.xlu0 %1579
        %v1581 = vlaneseq
        %v1582 = vshrl.u32 %v1581, 7
        %v1583 = vsub.s32 4, %v1582
        %v1584 = vrot.slane %v1446, %v1583
        %1586 = vbcast.lane.b32.xlu0 %v1584, 256
        %v1587 = vpop.permute.xlu0 %1586
        %s1589 = sor.u32 256, 8
        %1590 = vbcast.lane.b32.xlu0 %v1584, %s1589
        %v1591 = vpop.permute.xlu0 %1590
        %v1592 = vlaneseq
        %v1593 = vshrl.u32 %v1592, 7
        %v1594 = vsub.s32 5, %v1593
        %v1595 = vrot.slane %v1446, %v1594
        %1597 = vbcast.lane.b32.xlu0 %v1595, 256
        %v1598 = vpop.permute.xlu0 %1597
        %s1600 = sor.u32 256, 8
        %1601 = vbcast.lane.b32.xlu0 %v1595, %s1600
        %v1602 = vpop.permute.xlu0 %1601
        %v1603 = vlaneseq
        %v1604 = vshrl.u32 %v1603, 7
        %v1605 = vsub.s32 6, %v1604
        %v1606 = vrot.slane %v1446, %v1605
        %1608 = vbcast.lane.b32.xlu0 %v1606, 256
        %v1609 = vpop.permute.xlu0 %1608
        %s1611 = sor.u32 256, 8
        %1612 = vbcast.lane.b32.xlu0 %v1606, %s1611
        %v1613 = vpop.permute.xlu0 %1612
        %v1614 = vlaneseq
        %v1615 = vshrl.u32 %v1614, 7
        %v1616 = vsub.s32 7, %v1615
        %v1617 = vrot.slane %v1446, %v1616
        %1619 = vbcast.lane.b32.xlu0 %v1617, 256
        %v1620 = vpop.permute.xlu0 %1619
        %s1622 = sor.u32 256, 8
        %1623 = vbcast.lane.b32.xlu0 %v1617, %s1622
        %v1624 = vpop.permute.xlu0 %1623
        %v1657 = vadd.f32 %v1382, %v1455
        %v1658 = vadd.f32 %v1384, %v1459
        %v1659 = vadd.f32 %v1386, %v1466
        %v1660 = vadd.f32 %v1388, %v1470
        %v1661 = vadd.f32 %v1390, %v1477
        %v1662 = vadd.f32 %v1392, %v1481
        %v1663 = vadd.f32 %v1394, %v1488
        %v1664 = vadd.f32 %v1396, %v1492
        %v1665 = vadd.f32 %v1398, %v1499
        %v1666 = vadd.f32 %v1400, %v1503
        %v1667 = vadd.f32 %v1402, %v1510
        %v1668 = vadd.f32 %v1404, %v1514
        %v1669 = vadd.f32 %v1406, %v1521
        %v1670 = vadd.f32 %v1408, %v1525
        %v1671 = vadd.f32 %v1410, %v1532
        %v1672 = vadd.f32 %v1412, %v1536
        %v1673 = vadd.f32 %v1414, %v1543
        %v1674 = vadd.f32 %v1416, %v1547
        %v1675 = vadd.f32 %v1418, %v1554
        %v1676 = vadd.f32 %v1420, %v1558
        %v1677 = vadd.f32 %v1422, %v1565
        %v1678 = vadd.f32 %v1424, %v1569
        %v1679 = vadd.f32 %v1426, %v1576
        %v1680 = vadd.f32 %v1428, %v1580
        %v1681 = vadd.f32 %v1430, %v1587
        %v1682 = vadd.f32 %v1432, %v1591
        %v1683 = vadd.f32 %v1434, %v1598
        %v1684 = vadd.f32 %v1436, %v1602
        %v1685 = vadd.f32 %v1438, %v1609
        %v1686 = vadd.f32 %v1440, %v1613
        %v1687 = vadd.f32 %v1442, %v1620
        %v1688 = vadd.f32 %v1444, %v1624
        %1721 = vset.pattern.permute.xlu0 0
        %1722 = vperm.xlu0 %1721, %v1657
        %v1723 = vpop.permute.xlu0 %1722
        %1724 = vset.pattern.permute.xlu0 0
        %1725 = vperm.xlu0 %1724, %v1658
        %v1726 = vpop.permute.xlu0 %1725
        %1727 = vset.pattern.permute.xlu0 0
        %1728 = vperm.xlu0 %1727, %v1659
        %v1729 = vpop.permute.xlu0 %1728
        %1730 = vset.pattern.permute.xlu0 0
        %1731 = vperm.xlu0 %1730, %v1660
        %v1732 = vpop.permute.xlu0 %1731
        %1733 = vset.pattern.permute.xlu0 0
        %1734 = vperm.xlu0 %1733, %v1661
        %v1735 = vpop.permute.xlu0 %1734
        %1736 = vset.pattern.permute.xlu0 0
        %1737 = vperm.xlu0 %1736, %v1662
        %v1738 = vpop.permute.xlu0 %1737
        %1739 = vset.pattern.permute.xlu0 0
        %1740 = vperm.xlu0 %1739, %v1663
        %v1741 = vpop.permute.xlu0 %1740
        %1742 = vset.pattern.permute.xlu0 0
        %1743 = vperm.xlu0 %1742, %v1664
        %v1744 = vpop.permute.xlu0 %1743
        %1745 = vset.pattern.permute.xlu0 0
        %1746 = vperm.xlu0 %1745, %v1665
        %v1747 = vpop.permute.xlu0 %1746
        %1748 = vset.pattern.permute.xlu0 0
        %1749 = vperm.xlu0 %1748, %v1666
        %v1750 = vpop.permute.xlu0 %1749
        %1751 = vset.pattern.permute.xlu0 0
        %1752 = vperm.xlu0 %1751, %v1667
        %v1753 = vpop.permute.xlu0 %1752
        %1754 = vset.pattern.permute.xlu0 0
        %1755 = vperm.xlu0 %1754, %v1668
        %v1756 = vpop.permute.xlu0 %1755
        %1757 = vset.pattern.permute.xlu0 0
        %1758 = vperm.xlu0 %1757, %v1669
        %v1759 = vpop.permute.xlu0 %1758
        %1760 = vset.pattern.permute.xlu0 0
        %1761 = vperm.xlu0 %1760, %v1670
        %v1762 = vpop.permute.xlu0 %1761
        %1763 = vset.pattern.permute.xlu0 0
        %1764 = vperm.xlu0 %1763, %v1671
        %v1765 = vpop.permute.xlu0 %1764
        %1766 = vset.pattern.permute.xlu0 0
        %1767 = vperm.xlu0 %1766, %v1672
        %v1768 = vpop.permute.xlu0 %1767
        %1769 = vset.pattern.permute.xlu0 0
        %1770 = vperm.xlu0 %1769, %v1673
        %v1771 = vpop.permute.xlu0 %1770
        %1772 = vset.pattern.permute.xlu0 0
        %1773 = vperm.xlu0 %1772, %v1674
        %v1774 = vpop.permute.xlu0 %1773
        %1775 = vset.pattern.permute.xlu0 0
        %1776 = vperm.xlu0 %1775, %v1675
        %v1777 = vpop.permute.xlu0 %1776
        %1778 = vset.pattern.permute.xlu0 0
        %1779 = vperm.xlu0 %1778, %v1676
        %v1780 = vpop.permute.xlu0 %1779
        %1781 = vset.pattern.permute.xlu0 0
        %1782 = vperm.xlu0 %1781, %v1677
        %v1783 = vpop.permute.xlu0 %1782
        %1784 = vset.pattern.permute.xlu0 0
        %1785 = vperm.xlu0 %1784, %v1678
        %v1786 = vpop.permute.xlu0 %1785
        %1787 = vset.pattern.permute.xlu0 0
        %1788 = vperm.xlu0 %1787, %v1679
        %v1789 = vpop.permute.xlu0 %1788
        %1790 = vset.pattern.permute.xlu0 0
        %1791 = vperm.xlu0 %1790, %v1680
        %v1792 = vpop.permute.xlu0 %1791
        %1793 = vset.pattern.permute.xlu0 0
        %1794 = vperm.xlu0 %1793, %v1681
        %v1795 = vpop.permute.xlu0 %1794
        %1796 = vset.pattern.permute.xlu0 0
        %1797 = vperm.xlu0 %1796, %v1682
        %v1798 = vpop.permute.xlu0 %1797
        %1799 = vset.pattern.permute.xlu0 0
        %1800 = vperm.xlu0 %1799, %v1683
        %v1801 = vpop.permute.xlu0 %1800
        %1802 = vset.pattern.permute.xlu0 0
        %1803 = vperm.xlu0 %1802, %v1684
        %v1804 = vpop.permute.xlu0 %1803
        %1805 = vset.pattern.permute.xlu0 0
        %1806 = vperm.xlu0 %1805, %v1685
        %v1807 = vpop.permute.xlu0 %1806
        %1808 = vset.pattern.permute.xlu0 0
        %1809 = vperm.xlu0 %1808, %v1686
        %v1810 = vpop.permute.xlu0 %1809
        %1811 = vset.pattern.permute.xlu0 0
        %1812 = vperm.xlu0 %1811, %v1687
        %v1813 = vpop.permute.xlu0 %1812
        %1814 = vset.pattern.permute.xlu0 0
        %1815 = vperm.xlu0 %1814, %v1688
        %v1816 = vpop.permute.xlu0 %1815
        %v1817 = vlaneseq
        %v1818 = vand.u32 %v1817, 127
        %v1819 = vlaneseq
        %v1820 = vshrl.u32 %v1819, 7
        %v1821 = vsub.s32 %v1818, %v1820
        %v1822 = vrot.slane %v1723, %v1821
        %v1823 = vadd.s32 %v1818, 4294967288
        %v1824 = vlaneseq
        %v1825 = vshrl.u32 %v1824, 7
        %v1826 = vsub.s32 %v1823, %v1825
        %v1827 = vrot.slane %v1726, %v1826
        %vm1828 = vcmask 130112
        %v1829 = vsel %vm1828, %v1827, %v1822
        %v1830 = vlaneseq
        %v1831 = vshrl.u32 %v1830, 7
        %v1832 = vsub.s32 %v1818, %v1831
        %v1833 = vrot.slane %v1729, %v1832
        %v1834 = vlaneseq
        %v1835 = vshrl.u32 %v1834, 7
        %v1836 = vsub.s32 %v1823, %v1835
        %v1837 = vrot.slane %v1732, %v1836
        %v1838 = vsel %vm1828, %v1837, %v1833
        %v1839 = vlaneseq
        %v1840 = vshrl.u32 %v1839, 7
        %v1841 = vsub.s32 %v1818, %v1840
        %v1842 = vrot.slane %v1735, %v1841
        %v1843 = vlaneseq
        %v1844 = vshrl.u32 %v1843, 7
        %v1845 = vsub.s32 %v1823, %v1844
        %v1846 = vrot.slane %v1738, %v1845
        %v1847 = vsel %vm1828, %v1846, %v1842
        %v1848 = vlaneseq
        %v1849 = vshrl.u32 %v1848, 7
        %v1850 = vsub.s32 %v1818, %v1849
        %v1851 = vrot.slane %v1741, %v1850
        %v1852 = vlaneseq
        %v1853 = vshrl.u32 %v1852, 7
        %v1854 = vsub.s32 %v1823, %v1853
        %v1855 = vrot.slane %v1744, %v1854
        %v1856 = vsel %vm1828, %v1855, %v1851
        %v1857 = vlaneseq
        %v1858 = vshrl.u32 %v1857, 7
        %v1859 = vsub.s32 %v1818, %v1858
        %v1860 = vrot.slane %v1747, %v1859
        %v1861 = vlaneseq
        %v1862 = vshrl.u32 %v1861, 7
        %v1863 = vsub.s32 %v1823, %v1862
        %v1864 = vrot.slane %v1750, %v1863
        %v1865 = vsel %vm1828, %v1864, %v1860
        %v1866 = vlaneseq
        %v1867 = vshrl.u32 %v1866, 7
        %v1868 = vsub.s32 %v1818, %v1867
        %v1869 = vrot.slane %v1753, %v1868
        %v1870 = vlaneseq
        %v1871 = vshrl.u32 %v1870, 7
        %v1872 = vsub.s32 %v1823, %v1871
        %v1873 = vrot.slane %v1756, %v1872
        %v1874 = vsel %vm1828, %v1873, %v1869
        %v1875 = vlaneseq
        %v1876 = vshrl.u32 %v1875, 7
        %v1877 = vsub.s32 %v1818, %v1876
        %v1878 = vrot.slane %v1759, %v1877
        %v1879 = vlaneseq
        %v1880 = vshrl.u32 %v1879, 7
        %v1881 = vsub.s32 %v1823, %v1880
        %v1882 = vrot.slane %v1762, %v1881
        %v1883 = vsel %vm1828, %v1882, %v1878
        %v1884 = vlaneseq
        %v1885 = vshrl.u32 %v1884, 7
        %v1886 = vsub.s32 %v1818, %v1885
        %v1887 = vrot.slane %v1765, %v1886
        %v1888 = vlaneseq
        %v1889 = vshrl.u32 %v1888, 7
        %v1890 = vsub.s32 %v1823, %v1889
        %v1891 = vrot.slane %v1768, %v1890
        %v1892 = vsel %vm1828, %v1891, %v1887
        %v1893 = vlaneseq
        %v1894 = vshrl.u32 %v1893, 7
        %v1895 = vsub.s32 %v1818, %v1894
        %v1896 = vrot.slane %v1771, %v1895
        %v1897 = vlaneseq
        %v1898 = vshrl.u32 %v1897, 7
        %v1899 = vsub.s32 %v1823, %v1898
        %v1900 = vrot.slane %v1774, %v1899
        %v1901 = vsel %vm1828, %v1900, %v1896
        %v1902 = vlaneseq
        %v1903 = vshrl.u32 %v1902, 7
        %v1904 = vsub.s32 %v1818, %v1903
        %v1905 = vrot.slane %v1777, %v1904
        %v1906 = vlaneseq
        %v1907 = vshrl.u32 %v1906, 7
        %v1908 = vsub.s32 %v1823, %v1907
        %v1909 = vrot.slane %v1780, %v1908
        %v1910 = vsel %vm1828, %v1909, %v1905
        %v1911 = vlaneseq
        %v1912 = vshrl.u32 %v1911, 7
        %v1913 = vsub.s32 %v1818, %v1912
        %v1914 = vrot.slane %v1783, %v1913
        %v1915 = vlaneseq
        %v1916 = vshrl.u32 %v1915, 7
        %v1917 = vsub.s32 %v1823, %v1916
        %v1918 = vrot.slane %v1786, %v1917
        %v1919 = vsel %vm1828, %v1918, %v1914
        %v1920 = vlaneseq
        %v1921 = vshrl.u32 %v1920, 7
        %v1922 = vsub.s32 %v1818, %v1921
        %v1923 = vrot.slane %v1789, %v1922
        %v1924 = vlaneseq
        %v1925 = vshrl.u32 %v1924, 7
        %v1926 = vsub.s32 %v1823, %v1925
        %v1927 = vrot.slane %v1792, %v1926
        %v1928 = vsel %vm1828, %v1927, %v1923
        %v1929 = vlaneseq
        %v1930 = vshrl.u32 %v1929, 7
        %v1931 = vsub.s32 %v1818, %v1930
        %v1932 = vrot.slane %v1795, %v1931
        %v1933 = vlaneseq
        %v1934 = vshrl.u32 %v1933, 7
        %v1935 = vsub.s32 %v1823, %v1934
        %v1936 = vrot.slane %v1798, %v1935
        %v1937 = vsel %vm1828, %v1936, %v1932
        %v1938 = vlaneseq
        %v1939 = vshrl.u32 %v1938, 7
        %v1940 = vsub.s32 %v1818, %v1939
        %v1941 = vrot.slane %v1801, %v1940
        %v1942 = vlaneseq
        %v1943 = vshrl.u32 %v1942, 7
        %v1944 = vsub.s32 %v1823, %v1943
        %v1945 = vrot.slane %v1804, %v1944
        %v1946 = vsel %vm1828, %v1945, %v1941
        %v1947 = vlaneseq
        %v1948 = vshrl.u32 %v1947, 7
        %v1949 = vsub.s32 %v1818, %v1948
        %v1950 = vrot.slane %v1807, %v1949
        %v1951 = vlaneseq
        %v1952 = vshrl.u32 %v1951, 7
        %v1953 = vsub.s32 %v1823, %v1952
        %v1954 = vrot.slane %v1810, %v1953
        %v1955 = vsel %vm1828, %v1954, %v1950
        %v1956 = vlaneseq
        %v1957 = vshrl.u32 %v1956, 7
        %v1958 = vsub.s32 %v1818, %v1957
        %v1959 = vrot.slane %v1813, %v1958
        %v1960 = vlaneseq
        %v1961 = vshrl.u32 %v1960, 7
        %v1962 = vsub.s32 %v1823, %v1961
        %v1963 = vrot.slane %v1816, %v1962
        %v1964 = vsel %vm1828, %v1963, %v1959
        %vm1965 = vcmask 1041409
        %v1966 = vsel %vm1965, %v1838, %v1829
        %vm1967 = vcmask 1042434
        %v1968 = vsel %vm1967, %v1847, %v1966
        %vm1969 = vcmask 1043459
        %v1970 = vsel %vm1969, %v1856, %v1968
        %vm1971 = vcmask 1044484
        %v1972 = vsel %vm1971, %v1865, %v1970
        %vm1973 = vcmask 1045509
        %v1974 = vsel %vm1973, %v1874, %v1972
        %vm1975 = vcmask 1046534
        %v1976 = vsel %vm1975, %v1883, %v1974
        %vm1977 = vcmask 1047559
        %v1978 = vsel %vm1977, %v1892, %v1976
        %v1979 = vsel %vm1965, %v1910, %v1901
        %v1980 = vsel %vm1967, %v1919, %v1979
        %v1981 = vsel %vm1969, %v1928, %v1980
        %v1982 = vsel %vm1971, %v1937, %v1981
        %v1983 = vsel %vm1973, %v1946, %v1982
        %v1984 = vsel %vm1975, %v1955, %v1983
        %v1985 = vsel %vm1977, %v1964, %v1984
        %vm1988 = vcmask 130048
        %v1989 = vsel %vm1988, %v1978, -inf
        %1990 = vmax.xlane.f32.xlu0 %v1989
        %v1991 = vpop.xlane.xlu0 %1990
        %v1992 = vsel %vm1988, %v1985, -inf
        %1993 = vmax.xlane.f32.xlu0 %v1992
        %v1994 = vpop.xlane.xlu0 %1993
        %v1997 = vlaneseq
        %v1998 = vshrl.u32 %v1997, 7
        %v1999 = vsub.s32 0, %v1998
        %v2000 = vrot.slane %v1991, %v1999
        %v2001 = vlaneseq
        %v2002 = vshrl.u32 %v2001, 7
        %v2003 = vsub.s32 1, %v2002
        %v2004 = vrot.slane %v1991, %v2003
        %v2005 = vlaneseq
        %v2006 = vshrl.u32 %v2005, 7
        %v2007 = vsub.s32 2, %v2006
        %v2008 = vrot.slane %v1991, %v2007
        %v2009 = vlaneseq
        %v2010 = vshrl.u32 %v2009, 7
        %v2011 = vsub.s32 3, %v2010
        %v2012 = vrot.slane %v1991, %v2011
        %v2013 = vlaneseq
        %v2014 = vshrl.u32 %v2013, 7
        %v2015 = vsub.s32 4, %v2014
        %v2016 = vrot.slane %v1991, %v2015
        %v2017 = vlaneseq
        %v2018 = vshrl.u32 %v2017, 7
        %v2019 = vsub.s32 5, %v2018
        %v2020 = vrot.slane %v1991, %v2019
        %v2021 = vlaneseq
        %v2022 = vshrl.u32 %v2021, 7
        %v2023 = vsub.s32 6, %v2022
        %v2024 = vrot.slane %v1991, %v2023
        %v2025 = vlaneseq
        %v2026 = vshrl.u32 %v2025, 7
        %v2027 = vsub.s32 7, %v2026
        %v2028 = vrot.slane %v1991, %v2027
        %v2029 = vlaneseq
        %v2030 = vshrl.u32 %v2029, 7
        %v2031 = vsub.s32 0, %v2030
        %v2032 = vrot.slane %v1994, %v2031
        %v2033 = vlaneseq
        %v2034 = vshrl.u32 %v2033, 7
        %v2035 = vsub.s32 1, %v2034
        %v2036 = vrot.slane %v1994, %v2035
        %v2037 = vlaneseq
        %v2038 = vshrl.u32 %v2037, 7
        %v2039 = vsub.s32 2, %v2038
        %v2040 = vrot.slane %v1994, %v2039
        %v2041 = vlaneseq
        %v2042 = vshrl.u32 %v2041, 7
        %v2043 = vsub.s32 3, %v2042
        %v2044 = vrot.slane %v1994, %v2043
        %v2045 = vlaneseq
        %v2046 = vshrl.u32 %v2045, 7
        %v2047 = vsub.s32 4, %v2046
        %v2048 = vrot.slane %v1994, %v2047
        %v2049 = vlaneseq
        %v2050 = vshrl.u32 %v2049, 7
        %v2051 = vsub.s32 5, %v2050
        %v2052 = vrot.slane %v1994, %v2051
        %v2053 = vlaneseq
        %v2054 = vshrl.u32 %v2053, 7
        %v2055 = vsub.s32 6, %v2054
        %v2056 = vrot.slane %v1994, %v2055
        %v2057 = vlaneseq
        %v2058 = vshrl.u32 %v2057, 7
        %v2059 = vsub.s32 7, %v2058
        %v2060 = vrot.slane %v1994, %v2059
        %v2077 = vsub.f32 %v1657, %v2000
        %v2078 = vsub.f32 %v1658, %v2000
        %v2079 = vsub.f32 %v1659, %v2004
        %v2080 = vsub.f32 %v1660, %v2004
        %v2081 = vsub.f32 %v1661, %v2008
        %v2082 = vsub.f32 %v1662, %v2008
        %v2083 = vsub.f32 %v1663, %v2012
        %v2084 = vsub.f32 %v1664, %v2012
        %v2085 = vsub.f32 %v1665, %v2016
        %v2086 = vsub.f32 %v1666, %v2016
        %v2087 = vsub.f32 %v1667, %v2020
        %v2088 = vsub.f32 %v1668, %v2020
        %v2089 = vsub.f32 %v1669, %v2024
        %v2090 = vsub.f32 %v1670, %v2024
        %v2091 = vsub.f32 %v1671, %v2028
        %v2092 = vsub.f32 %v1672, %v2028
        %v2093 = vsub.f32 %v1673, %v2032
        %v2094 = vsub.f32 %v1674, %v2032
        %v2095 = vsub.f32 %v1675, %v2036
        %v2096 = vsub.f32 %v1676, %v2036
        %v2097 = vsub.f32 %v1677, %v2040
        %v2098 = vsub.f32 %v1678, %v2040
        %v2099 = vsub.f32 %v1679, %v2044
        %v2100 = vsub.f32 %v1680, %v2044
        %v2101 = vsub.f32 %v1681, %v2048
        %v2102 = vsub.f32 %v1682, %v2048
        %v2103 = vsub.f32 %v1683, %v2052
        %v2104 = vsub.f32 %v1684, %v2052
        %v2105 = vsub.f32 %v1685, %v2056
        %v2106 = vsub.f32 %v1686, %v2056
        %v2107 = vsub.f32 %v1687, %v2060
        %v2108 = vsub.f32 %v1688, %v2060
        %v2109 = vmul.f32 %v2077, 1.442695
        %v2110 = vpow.pop %v2109
        %v2111 = vmul.f32 %v2078, 1.442695
        %v2112 = vpow.pop %v2111
        %v2113 = vmul.f32 %v2079, 1.442695
        %v2114 = vpow.pop %v2113
        %v2115 = vmul.f32 %v2080, 1.442695
        %v2116 = vpow.pop %v2115
        %v2117 = vmul.f32 %v2081, 1.442695
        %v2118 = vpow.pop %v2117
        %v2119 = vmul.f32 %v2082, 1.442695
        %v2120 = vpow.pop %v2119
        %v2121 = vmul.f32 %v2083, 1.442695
        %v2122 = vpow.pop %v2121
        %v2123 = vmul.f32 %v2084, 1.442695
        %v2124 = vpow.pop %v2123
        %v2125 = vmul.f32 %v2085, 1.442695
        %v2126 = vpow.pop %v2125
        %v2127 = vmul.f32 %v2086, 1.442695
        %v2128 = vpow.pop %v2127
        %v2129 = vmul.f32 %v2087, 1.442695
        %v2130 = vpow.pop %v2129
        %v2131 = vmul.f32 %v2088, 1.442695
        %v2132 = vpow.pop %v2131
        %v2133 = vmul.f32 %v2089, 1.442695
        %v2134 = vpow.pop %v2133
        %v2135 = vmul.f32 %v2090, 1.442695
        %v2136 = vpow.pop %v2135
        %v2137 = vmul.f32 %v2091, 1.442695
        %v2138 = vpow.pop %v2137
        %v2139 = vmul.f32 %v2092, 1.442695
        %v2140 = vpow.pop %v2139
        %v2141 = vmul.f32 %v2093, 1.442695
        %v2142 = vpow.pop %v2141
        %v2143 = vmul.f32 %v2094, 1.442695
        %v2144 = vpow.pop %v2143
        %v2145 = vmul.f32 %v2095, 1.442695
        %v2146 = vpow.pop %v2145
        %v2147 = vmul.f32 %v2096, 1.442695
        %v2148 = vpow.pop %v2147
        %v2149 = vmul.f32 %v2097, 1.442695
        %v2150 = vpow.pop %v2149
        %v2151 = vmul.f32 %v2098, 1.442695
        %v2152 = vpow.pop %v2151
        %v2153 = vmul.f32 %v2099, 1.442695
        %v2154 = vpow.pop %v2153
        %v2155 = vmul.f32 %v2100, 1.442695
        %v2156 = vpow.pop %v2155
        %v2157 = vmul.f32 %v2101, 1.442695
        %v2158 = vpow.pop %v2157
        %v2159 = vmul.f32 %v2102, 1.442695
        %v2160 = vpow.pop %v2159
        %v2161 = vmul.f32 %v2103, 1.442695
        %v2162 = vpow.pop %v2161
        %v2163 = vmul.f32 %v2104, 1.442695
        %v2164 = vpow.pop %v2163
        %v2165 = vmul.f32 %v2105, 1.442695
        %v2166 = vpow.pop %v2165
        %v2167 = vmul.f32 %v2106, 1.442695
        %v2168 = vpow.pop %v2167
        %v2169 = vmul.f32 %v2107, 1.442695
        %v2170 = vpow.pop %v2169
        %v2171 = vmul.f32 %v2108, 1.442695
        %v2172 = vpow.pop %v2171
        %2205 = vset.pattern.permute.xlu0 0
        %2206 = vperm.xlu0 %2205, %v2110
        %v2207 = vpop.permute.xlu0 %2206
        %2208 = vset.pattern.permute.xlu0 0
        %2209 = vperm.xlu0 %2208, %v2112
        %v2210 = vpop.permute.xlu0 %2209
        %2211 = vset.pattern.permute.xlu0 0
        %2212 = vperm.xlu0 %2211, %v2114
        %v2213 = vpop.permute.xlu0 %2212
        %2214 = vset.pattern.permute.xlu0 0
        %2215 = vperm.xlu0 %2214, %v2116
        %v2216 = vpop.permute.xlu0 %2215
        %2217 = vset.pattern.permute.xlu0 0
        %2218 = vperm.xlu0 %2217, %v2118
        %v2219 = vpop.permute.xlu0 %2218
        %2220 = vset.pattern.permute.xlu0 0
        %2221 = vperm.xlu0 %2220, %v2120
        %v2222 = vpop.permute.xlu0 %2221
        %2223 = vset.pattern.permute.xlu0 0
        %2224 = vperm.xlu0 %2223, %v2122
        %v2225 = vpop.permute.xlu0 %2224
        %2226 = vset.pattern.permute.xlu0 0
        %2227 = vperm.xlu0 %2226, %v2124
        %v2228 = vpop.permute.xlu0 %2227
        %2229 = vset.pattern.permute.xlu0 0
        %2230 = vperm.xlu0 %2229, %v2126
        %v2231 = vpop.permute.xlu0 %2230
        %2232 = vset.pattern.permute.xlu0 0
        %2233 = vperm.xlu0 %2232, %v2128
        %v2234 = vpop.permute.xlu0 %2233
        %2235 = vset.pattern.permute.xlu0 0
        %2236 = vperm.xlu0 %2235, %v2130
        %v2237 = vpop.permute.xlu0 %2236
        %2238 = vset.pattern.permute.xlu0 0
        %2239 = vperm.xlu0 %2238, %v2132
        %v2240 = vpop.permute.xlu0 %2239
        %2241 = vset.pattern.permute.xlu0 0
        %2242 = vperm.xlu0 %2241, %v2134
        %v2243 = vpop.permute.xlu0 %2242
        %2244 = vset.pattern.permute.xlu0 0
        %2245 = vperm.xlu0 %2244, %v2136
        %v2246 = vpop.permute.xlu0 %2245
        %2247 = vset.pattern.permute.xlu0 0
        %2248 = vperm.xlu0 %2247, %v2138
        %v2249 = vpop.permute.xlu0 %2248
        %2250 = vset.pattern.permute.xlu0 0
        %2251 = vperm.xlu0 %2250, %v2140
        %v2252 = vpop.permute.xlu0 %2251
        %2253 = vset.pattern.permute.xlu0 0
        %2254 = vperm.xlu0 %2253, %v2142
        %v2255 = vpop.permute.xlu0 %2254
        %2256 = vset.pattern.permute.xlu0 0
        %2257 = vperm.xlu0 %2256, %v2144
        %v2258 = vpop.permute.xlu0 %2257
        %2259 = vset.pattern.permute.xlu0 0
        %2260 = vperm.xlu0 %2259, %v2146
        %v2261 = vpop.permute.xlu0 %2260
        %2262 = vset.pattern.permute.xlu0 0
        %2263 = vperm.xlu0 %2262, %v2148
        %v2264 = vpop.permute.xlu0 %2263
        %2265 = vset.pattern.permute.xlu0 0
        %2266 = vperm.xlu0 %2265, %v2150
        %v2267 = vpop.permute.xlu0 %2266
        %2268 = vset.pattern.permute.xlu0 0
        %2269 = vperm.xlu0 %2268, %v2152
        %v2270 = vpop.permute.xlu0 %2269
        %2271 = vset.pattern.permute.xlu0 0
        %2272 = vperm.xlu0 %2271, %v2154
        %v2273 = vpop.permute.xlu0 %2272
        %2274 = vset.pattern.permute.xlu0 0
        %2275 = vperm.xlu0 %2274, %v2156
        %v2276 = vpop.permute.xlu0 %2275
        %2277 = vset.pattern.permute.xlu0 0
        %2278 = vperm.xlu0 %2277, %v2158
        %v2279 = vpop.permute.xlu0 %2278
        %2280 = vset.pattern.permute.xlu0 0
        %2281 = vperm.xlu0 %2280, %v2160
        %v2282 = vpop.permute.xlu0 %2281
        %2283 = vset.pattern.permute.xlu0 0
        %2284 = vperm.xlu0 %2283, %v2162
        %v2285 = vpop.permute.xlu0 %2284
        %2286 = vset.pattern.permute.xlu0 0
        %2287 = vperm.xlu0 %2286, %v2164
        %v2288 = vpop.permute.xlu0 %2287
        %2289 = vset.pattern.permute.xlu0 0
        %2290 = vperm.xlu0 %2289, %v2166
        %v2291 = vpop.permute.xlu0 %2290
        %2292 = vset.pattern.permute.xlu0 0
        %2293 = vperm.xlu0 %2292, %v2168
        %v2294 = vpop.permute.xlu0 %2293
        %2295 = vset.pattern.permute.xlu0 0
        %2296 = vperm.xlu0 %2295, %v2170
        %v2297 = vpop.permute.xlu0 %2296
        %2298 = vset.pattern.permute.xlu0 0
        %2299 = vperm.xlu0 %2298, %v2172
        %v2300 = vpop.permute.xlu0 %2299
        %v2301 = vlaneseq
        %v2302 = vshrl.u32 %v2301, 7
        %v2303 = vsub.s32 %v1818, %v2302
        %v2304 = vrot.slane %v2207, %v2303
        %v2305 = vlaneseq
        %v2306 = vshrl.u32 %v2305, 7
        %v2307 = vsub.s32 %v1823, %v2306
        %v2308 = vrot.slane %v2210, %v2307
        %v2309 = vsel %vm1828, %v2308, %v2304
        %v2310 = vlaneseq
        %v2311 = vshrl.u32 %v2310, 7
        %v2312 = vsub.s32 %v1818, %v2311
        %v2313 = vrot.slane %v2213, %v2312
        %v2314 = vlaneseq
        %v2315 = vshrl.u32 %v2314, 7
        %v2316 = vsub.s32 %v1823, %v2315
        %v2317 = vrot.slane %v2216, %v2316
        %v2318 = vsel %vm1828, %v2317, %v2313
        %v2319 = vlaneseq
        %v2320 = vshrl.u32 %v2319, 7
        %v2321 = vsub.s32 %v1818, %v2320
        %v2322 = vrot.slane %v2219, %v2321
        %v2323 = vlaneseq
        %v2324 = vshrl.u32 %v2323, 7
        %v2325 = vsub.s32 %v1823, %v2324
        %v2326 = vrot.slane %v2222, %v2325
        %v2327 = vsel %vm1828, %v2326, %v2322
        %v2328 = vlaneseq
        %v2329 = vshrl.u32 %v2328, 7
        %v2330 = vsub.s32 %v1818, %v2329
        %v2331 = vrot.slane %v2225, %v2330
        %v2332 = vlaneseq
        %v2333 = vshrl.u32 %v2332, 7
        %v2334 = vsub.s32 %v1823, %v2333
        %v2335 = vrot.slane %v2228, %v2334
        %v2336 = vsel %vm1828, %v2335, %v2331
        %v2337 = vlaneseq
        %v2338 = vshrl.u32 %v2337, 7
        %v2339 = vsub.s32 %v1818, %v2338
        %v2340 = vrot.slane %v2231, %v2339
        %v2341 = vlaneseq
        %v2342 = vshrl.u32 %v2341, 7
        %v2343 = vsub.s32 %v1823, %v2342
        %v2344 = vrot.slane %v2234, %v2343
        %v2345 = vsel %vm1828, %v2344, %v2340
        %v2346 = vlaneseq
        %v2347 = vshrl.u32 %v2346, 7
        %v2348 = vsub.s32 %v1818, %v2347
        %v2349 = vrot.slane %v2237, %v2348
        %v2350 = vlaneseq
        %v2351 = vshrl.u32 %v2350, 7
        %v2352 = vsub.s32 %v1823, %v2351
        %v2353 = vrot.slane %v2240, %v2352
        %v2354 = vsel %vm1828, %v2353, %v2349
        %v2355 = vlaneseq
        %v2356 = vshrl.u32 %v2355, 7
        %v2357 = vsub.s32 %v1818, %v2356
        %v2358 = vrot.slane %v2243, %v2357
        %v2359 = vlaneseq
        %v2360 = vshrl.u32 %v2359, 7
        %v2361 = vsub.s32 %v1823, %v2360
        %v2362 = vrot.slane %v2246, %v2361
        %v2363 = vsel %vm1828, %v2362, %v2358
        %v2364 = vlaneseq
        %v2365 = vshrl.u32 %v2364, 7
        %v2366 = vsub.s32 %v1818, %v2365
        %v2367 = vrot.slane %v2249, %v2366
        %v2368 = vlaneseq
        %v2369 = vshrl.u32 %v2368, 7
        %v2370 = vsub.s32 %v1823, %v2369
        %v2371 = vrot.slane %v2252, %v2370
        %v2372 = vsel %vm1828, %v2371, %v2367
        %v2373 = vlaneseq
        %v2374 = vshrl.u32 %v2373, 7
        %v2375 = vsub.s32 %v1818, %v2374
        %v2376 = vrot.slane %v2255, %v2375
        %v2377 = vlaneseq
        %v2378 = vshrl.u32 %v2377, 7
        %v2379 = vsub.s32 %v1823, %v2378
        %v2380 = vrot.slane %v2258, %v2379
        %v2381 = vsel %vm1828, %v2380, %v2376
        %v2382 = vlaneseq
        %v2383 = vshrl.u32 %v2382, 7
        %v2384 = vsub.s32 %v1818, %v2383
        %v2385 = vrot.slane %v2261, %v2384
        %v2386 = vlaneseq
        %v2387 = vshrl.u32 %v2386, 7
        %v2388 = vsub.s32 %v1823, %v2387
        %v2389 = vrot.slane %v2264, %v2388
        %v2390 = vsel %vm1828, %v2389, %v2385
        %v2391 = vlaneseq
        %v2392 = vshrl.u32 %v2391, 7
        %v2393 = vsub.s32 %v1818, %v2392
        %v2394 = vrot.slane %v2267, %v2393
        %v2395 = vlaneseq
        %v2396 = vshrl.u32 %v2395, 7
        %v2397 = vsub.s32 %v1823, %v2396
        %v2398 = vrot.slane %v2270, %v2397
        %v2399 = vsel %vm1828, %v2398, %v2394
        %v2400 = vlaneseq
        %v2401 = vshrl.u32 %v2400, 7
        %v2402 = vsub.s32 %v1818, %v2401
        %v2403 = vrot.slane %v2273, %v2402
        %v2404 = vlaneseq
        %v2405 = vshrl.u32 %v2404, 7
        %v2406 = vsub.s32 %v1823, %v2405
        %v2407 = vrot.slane %v2276, %v2406
        %v2408 = vsel %vm1828, %v2407, %v2403
        %v2409 = vlaneseq
        %v2410 = vshrl.u32 %v2409, 7
        %v2411 = vsub.s32 %v1818, %v2410
        %v2412 = vrot.slane %v2279, %v2411
        %v2413 = vlaneseq
        %v2414 = vshrl.u32 %v2413, 7
        %v2415 = vsub.s32 %v1823, %v2414
        %v2416 = vrot.slane %v2282, %v2415
        %v2417 = vsel %vm1828, %v2416, %v2412
        %v2418 = vlaneseq
        %v2419 = vshrl.u32 %v2418, 7
        %v2420 = vsub.s32 %v1818, %v2419
        %v2421 = vrot.slane %v2285, %v2420
        %v2422 = vlaneseq
        %v2423 = vshrl.u32 %v2422, 7
        %v2424 = vsub.s32 %v1823, %v2423
        %v2425 = vrot.slane %v2288, %v2424
        %v2426 = vsel %vm1828, %v2425, %v2421
        %v2427 = vlaneseq
        %v2428 = vshrl.u32 %v2427, 7
        %v2429 = vsub.s32 %v1818, %v2428
        %v2430 = vrot.slane %v2291, %v2429
        %v2431 = vlaneseq
        %v2432 = vshrl.u32 %v2431, 7
        %v2433 = vsub.s32 %v1823, %v2432
        %v2434 = vrot.slane %v2294, %v2433
        %v2435 = vsel %vm1828, %v2434, %v2430
        %v2436 = vlaneseq
        %v2437 = vshrl.u32 %v2436, 7
        %v2438 = vsub.s32 %v1818, %v2437
        %v2439 = vrot.slane %v2297, %v2438
        %v2440 = vlaneseq
        %v2441 = vshrl.u32 %v2440, 7
        %v2442 = vsub.s32 %v1823, %v2441
        %v2443 = vrot.slane %v2300, %v2442
        %v2444 = vsel %vm1828, %v2443, %v2439
        %v2445 = vsel %vm1965, %v2318, %v2309
        %v2446 = vsel %vm1967, %v2327, %v2445
        %v2447 = vsel %vm1969, %v2336, %v2446
        %v2448 = vsel %vm1971, %v2345, %v2447
        %v2449 = vsel %vm1973, %v2354, %v2448
        %v2450 = vsel %vm1975, %v2363, %v2449
        %v2451 = vsel %vm1977, %v2372, %v2450
        %v2452 = vsel %vm1965, %v2390, %v2381
        %v2453 = vsel %vm1967, %v2399, %v2452
        %v2454 = vsel %vm1969, %v2408, %v2453
        %v2455 = vsel %vm1971, %v2417, %v2454
        %v2456 = vsel %vm1973, %v2426, %v2455
        %v2457 = vsel %vm1975, %v2435, %v2456
        %v2458 = vsel %vm1977, %v2444, %v2457
        %v2461 = vsel %vm1988, %v2451, 0.0
        %2462 = vadd.xlane.f32.xlu0 %v2461
        %v2463 = vpop.xlane.xlu0 %2462
        %v2464 = vsel %vm1988, %v2458, 0.0
        %2465 = vadd.xlane.f32.xlu0 %v2464
        %v2466 = vpop.xlane.xlu0 %2465
        %v2467 = vrcp.pop %v2463
        %v2468 = vrcp.pop %v2466
        %v2471 = vlaneseq
        %v2472 = vshrl.u32 %v2471, 7
        %v2473 = vsub.s32 0, %v2472
        %v2474 = vrot.slane %v2467, %v2473
        %v2475 = vlaneseq
        %v2476 = vshrl.u32 %v2475, 7
        %v2477 = vsub.s32 1, %v2476
        %v2478 = vrot.slane %v2467, %v2477
        %v2479 = vlaneseq
        %v2480 = vshrl.u32 %v2479, 7
        %v2481 = vsub.s32 2, %v2480
        %v2482 = vrot.slane %v2467, %v2481
        %v2483 = vlaneseq
        %v2484 = vshrl.u32 %v2483, 7
        %v2485 = vsub.s32 3, %v2484
        %v2486 = vrot.slane %v2467, %v2485
        %v2487 = vlaneseq
        %v2488 = vshrl.u32 %v2487, 7
        %v2489 = vsub.s32 4, %v2488
        %v2490 = vrot.slane %v2467, %v2489
        %v2491 = vlaneseq
        %v2492 = vshrl.u32 %v2491, 7
        %v2493 = vsub.s32 5, %v2492
        %v2494 = vrot.slane %v2467, %v2493
        %v2495 = vlaneseq
        %v2496 = vshrl.u32 %v2495, 7
        %v2497 = vsub.s32 6, %v2496
        %v2498 = vrot.slane %v2467, %v2497
        %v2499 = vlaneseq
        %v2500 = vshrl.u32 %v2499, 7
        %v2501 = vsub.s32 7, %v2500
        %v2502 = vrot.slane %v2467, %v2501
        %v2503 = vlaneseq
        %v2504 = vshrl.u32 %v2503, 7
        %v2505 = vsub.s32 0, %v2504
        %v2506 = vrot.slane %v2468, %v2505
        %v2507 = vlaneseq
        %v2508 = vshrl.u32 %v2507, 7
        %v2509 = vsub.s32 1, %v2508
        %v2510 = vrot.slane %v2468, %v2509
        %v2511 = vlaneseq
        %v2512 = vshrl.u32 %v2511, 7
        %v2513 = vsub.s32 2, %v2512
        %v2514 = vrot.slane %v2468, %v2513
        %v2515 = vlaneseq
        %v2516 = vshrl.u32 %v2515, 7
        %v2517 = vsub.s32 3, %v2516
        %v2518 = vrot.slane %v2468, %v2517
        %v2519 = vlaneseq
        %v2520 = vshrl.u32 %v2519, 7
        %v2521 = vsub.s32 4, %v2520
        %v2522 = vrot.slane %v2468, %v2521
        %v2523 = vlaneseq
        %v2524 = vshrl.u32 %v2523, 7
        %v2525 = vsub.s32 5, %v2524
        %v2526 = vrot.slane %v2468, %v2525
        %v2527 = vlaneseq
        %v2528 = vshrl.u32 %v2527, 7
        %v2529 = vsub.s32 6, %v2528
        %v2530 = vrot.slane %v2468, %v2529
        %v2531 = vlaneseq
        %v2532 = vshrl.u32 %v2531, 7
        %v2533 = vsub.s32 7, %v2532
        %v2534 = vrot.slane %v2468, %v2533
        %v2551 = vmul.f32 %v2110, %v2474
        %v2552 = vmul.f32 %v2112, %v2474
        %v2553 = vmul.f32 %v2114, %v2478
        %v2554 = vmul.f32 %v2116, %v2478
        %v2555 = vmul.f32 %v2118, %v2482
        %v2556 = vmul.f32 %v2120, %v2482
        %v2557 = vmul.f32 %v2122, %v2486
        %v2558 = vmul.f32 %v2124, %v2486
        %v2559 = vmul.f32 %v2126, %v2490
        %v2560 = vmul.f32 %v2128, %v2490
        %v2561 = vmul.f32 %v2130, %v2494
        %v2562 = vmul.f32 %v2132, %v2494
        %v2563 = vmul.f32 %v2134, %v2498
        %v2564 = vmul.f32 %v2136, %v2498
        %v2565 = vmul.f32 %v2138, %v2502
        %v2566 = vmul.f32 %v2140, %v2502
        %v2567 = vmul.f32 %v2142, %v2506
        %v2568 = vmul.f32 %v2144, %v2506
        %v2569 = vmul.f32 %v2146, %v2510
        %v2570 = vmul.f32 %v2148, %v2510
        %v2571 = vmul.f32 %v2150, %v2514
        %v2572 = vmul.f32 %v2152, %v2514
        %v2573 = vmul.f32 %v2154, %v2518
        %v2574 = vmul.f32 %v2156, %v2518
        %v2575 = vmul.f32 %v2158, %v2522
        %v2576 = vmul.f32 %v2160, %v2522
        %v2577 = vmul.f32 %v2162, %v2526
        %v2578 = vmul.f32 %v2164, %v2526
        %v2579 = vmul.f32 %v2166, %v2530
        %v2580 = vmul.f32 %v2168, %v2530
        %v2581 = vmul.f32 %v2170, %v2534
        %v2582 = vmul.f32 %v2172, %v2534
        %2584 = vset.pattern.permute.xlu0 0
        %2585 = vperm.xlu0 %2584, %v2551
        %v2586 = vpop.permute.xlu0 %2585
        %2589 = vset.pattern.permute.xlu0 0
        %2590 = vperm.xlu0 %2589, %v2552
        %v2591 = vpop.permute.xlu0 %2590
        %2594 = vset.pattern.permute.xlu0 0
        %2595 = vperm.xlu0 %2594, %v2553
        %v2596 = vpop.permute.xlu0 %2595
        %2599 = vset.pattern.permute.xlu0 0
        %2600 = vperm.xlu0 %2599, %v2554
        %v2601 = vpop.permute.xlu0 %2600
        %2604 = vset.pattern.permute.xlu0 0
        %2605 = vperm.xlu0 %2604, %v2555
        %v2606 = vpop.permute.xlu0 %2605
        %2609 = vset.pattern.permute.xlu0 0
        %2610 = vperm.xlu0 %2609, %v2556
        %v2611 = vpop.permute.xlu0 %2610
        %2614 = vset.pattern.permute.xlu0 0
        %2615 = vperm.xlu0 %2614, %v2557
        %v2616 = vpop.permute.xlu0 %2615
        %2619 = vset.pattern.permute.xlu0 0
        %2620 = vperm.xlu0 %2619, %v2558
        %v2621 = vpop.permute.xlu0 %2620
        %2624 = vset.pattern.permute.xlu0 0
        %2625 = vperm.xlu0 %2624, %v2559
        %v2626 = vpop.permute.xlu0 %2625
        %2629 = vset.pattern.permute.xlu0 0
        %2630 = vperm.xlu0 %2629, %v2560
        %v2631 = vpop.permute.xlu0 %2630
        %2634 = vset.pattern.permute.xlu0 0
        %2635 = vperm.xlu0 %2634, %v2561
        %v2636 = vpop.permute.xlu0 %2635
        %2639 = vset.pattern.permute.xlu0 0
        %2640 = vperm.xlu0 %2639, %v2562
        %v2641 = vpop.permute.xlu0 %2640
        %2644 = vset.pattern.permute.xlu0 0
        %2645 = vperm.xlu0 %2644, %v2563
        %v2646 = vpop.permute.xlu0 %2645
        %2649 = vset.pattern.permute.xlu0 0
        %2650 = vperm.xlu0 %2649, %v2564
        %v2651 = vpop.permute.xlu0 %2650
        %2654 = vset.pattern.permute.xlu0 0
        %2655 = vperm.xlu0 %2654, %v2565
        %v2656 = vpop.permute.xlu0 %2655
        %2659 = vset.pattern.permute.xlu0 0
        %2660 = vperm.xlu0 %2659, %v2566
        %v2661 = vpop.permute.xlu0 %2660
        %2664 = vset.pattern.permute.xlu0 0
        %2665 = vperm.xlu0 %2664, %v2567
        %v2666 = vpop.permute.xlu0 %2665
        %2669 = vset.pattern.permute.xlu0 0
        %2670 = vperm.xlu0 %2669, %v2568
        %v2671 = vpop.permute.xlu0 %2670
        %2674 = vset.pattern.permute.xlu0 0
        %2675 = vperm.xlu0 %2674, %v2569
        %v2676 = vpop.permute.xlu0 %2675
        %2679 = vset.pattern.permute.xlu0 0
        %2680 = vperm.xlu0 %2679, %v2570
        %v2681 = vpop.permute.xlu0 %2680
        %2684 = vset.pattern.permute.xlu0 0
        %2685 = vperm.xlu0 %2684, %v2571
        %v2686 = vpop.permute.xlu0 %2685
        %2689 = vset.pattern.permute.xlu0 0
        %2690 = vperm.xlu0 %2689, %v2572
        %v2691 = vpop.permute.xlu0 %2690
        %2694 = vset.pattern.permute.xlu0 0
        %2695 = vperm.xlu0 %2694, %v2573
        %v2696 = vpop.permute.xlu0 %2695
        %2699 = vset.pattern.permute.xlu0 0
        %2700 = vperm.xlu0 %2699, %v2574
        %v2701 = vpop.permute.xlu0 %2700
        %2704 = vset.pattern.permute.xlu0 0
        %2705 = vperm.xlu0 %2704, %v2575
        %v2706 = vpop.permute.xlu0 %2705
        %2709 = vset.pattern.permute.xlu0 0
        %2710 = vperm.xlu0 %2709, %v2576
        %v2711 = vpop.permute.xlu0 %2710
        %2714 = vset.pattern.permute.xlu0 0
        %2715 = vperm.xlu0 %2714, %v2577
        %v2716 = vpop.permute.xlu0 %2715
        %2719 = vset.pattern.permute.xlu0 0
        %2720 = vperm.xlu0 %2719, %v2578
        %v2721 = vpop.permute.xlu0 %2720
        %2724 = vset.pattern.permute.xlu0 0
        %2725 = vperm.xlu0 %2724, %v2579
        %v2726 = vpop.permute.xlu0 %2725
        %2729 = vset.pattern.permute.xlu0 0
        %2730 = vperm.xlu0 %2729, %v2580
        %v2731 = vpop.permute.xlu0 %2730
        %2734 = vset.pattern.permute.xlu0 0
        %2735 = vperm.xlu0 %2734, %v2581
        %v2736 = vpop.permute.xlu0 %2735
        %2739 = vset.pattern.permute.xlu0 0
        %2740 = vperm.xlu0 %2739, %v2582
        %v2741 = vpop.permute.xlu0 %2740
        %v2743 = vmul.f32 %v2586, %v1043
        %v2744 = vmul.f32 %v2591, %v1046
        %v2745 = vmul.f32 %v2596, %v1051
        %v2746 = vmul.f32 %v2601, %v1054
        %v2747 = vmul.f32 %v2606, %v1059
        %v2748 = vmul.f32 %v2611, %v1062
        %v2749 = vmul.f32 %v2616, %v1067
        %v2750 = vmul.f32 %v2621, %v1070
        %v2751 = vmul.f32 %v2626, %v1075
        %v2752 = vmul.f32 %v2631, %v1078
        %v2753 = vmul.f32 %v2636, %v1083
        %v2754 = vmul.f32 %v2641, %v1086
        %v2755 = vmul.f32 %v2646, %v1091
        %v2756 = vmul.f32 %v2651, %v1094
        %v2757 = vmul.f32 %v2656, %v1099
        %v2758 = vmul.f32 %v2661, %v1102
        %v2759 = vmul.f32 %v2666, %v1107
        %v2760 = vmul.f32 %v2671, %v1110
        %v2761 = vmul.f32 %v2676, %v1115
        %v2762 = vmul.f32 %v2681, %v1118
        %v2763 = vmul.f32 %v2686, %v1123
        %v2764 = vmul.f32 %v2691, %v1126
        %v2765 = vmul.f32 %v2696, %v1131
        %v2766 = vmul.f32 %v2701, %v1134
        %v2767 = vmul.f32 %v2706, %v1139
        %v2768 = vmul.f32 %v2711, %v1142
        %v2769 = vmul.f32 %v2716, %v1147
        %v2770 = vmul.f32 %v2721, %v1150
        %v2771 = vmul.f32 %v2726, %v1155
        %v2772 = vmul.f32 %v2731, %v1158
        %v2773 = vmul.f32 %v2736, %v1163
        %v2774 = vmul.f32 %v2741, %v1166
        %v2775 = vadd.f32 %v2743, %v2744
        %v2776 = vrot.slane %v2775, 4
        %v2777 = vadd.f32 %v2775, %v2776
        %v2778 = vrot.slane %v2777, 2
        %v2779 = vadd.f32 %v2777, %v2778
        %v2780 = vrot.slane %v2779, 1
        %v2781 = vadd.f32 %v2779, %v2780
        %v2782 = vadd.f32 %v2745, %v2746
        %v2783 = vrot.slane %v2782, 4
        %v2784 = vadd.f32 %v2782, %v2783
        %v2785 = vrot.slane %v2784, 2
        %v2786 = vadd.f32 %v2784, %v2785
        %v2787 = vrot.slane %v2786, 1
        %v2788 = vadd.f32 %v2786, %v2787
        %v2789 = vadd.f32 %v2747, %v2748
        %v2790 = vrot.slane %v2789, 4
        %v2791 = vadd.f32 %v2789, %v2790
        %v2792 = vrot.slane %v2791, 2
        %v2793 = vadd.f32 %v2791, %v2792
        %v2794 = vrot.slane %v2793, 1
        %v2795 = vadd.f32 %v2793, %v2794
        %v2796 = vadd.f32 %v2749, %v2750
        %v2797 = vrot.slane %v2796, 4
        %v2798 = vadd.f32 %v2796, %v2797
        %v2799 = vrot.slane %v2798, 2
        %v2800 = vadd.f32 %v2798, %v2799
        %v2801 = vrot.slane %v2800, 1
        %v2802 = vadd.f32 %v2800, %v2801
        %v2803 = vadd.f32 %v2751, %v2752
        %v2804 = vrot.slane %v2803, 4
        %v2805 = vadd.f32 %v2803, %v2804
        %v2806 = vrot.slane %v2805, 2
        %v2807 = vadd.f32 %v2805, %v2806
        %v2808 = vrot.slane %v2807, 1
        %v2809 = vadd.f32 %v2807, %v2808
        %v2810 = vadd.f32 %v2753, %v2754
        %v2811 = vrot.slane %v2810, 4
        %v2812 = vadd.f32 %v2810, %v2811
        %v2813 = vrot.slane %v2812, 2
        %v2814 = vadd.f32 %v2812, %v2813
        %v2815 = vrot.slane %v2814, 1
        %v2816 = vadd.f32 %v2814, %v2815
        %v2817 = vadd.f32 %v2755, %v2756
        %v2818 = vrot.slane %v2817, 4
        %v2819 = vadd.f32 %v2817, %v2818
        %v2820 = vrot.slane %v2819, 2
        %v2821 = vadd.f32 %v2819, %v2820
        %v2822 = vrot.slane %v2821, 1
        %v2823 = vadd.f32 %v2821, %v2822
        %v2824 = vadd.f32 %v2757, %v2758
        %v2825 = vrot.slane %v2824, 4
        %v2826 = vadd.f32 %v2824, %v2825
        %v2827 = vrot.slane %v2826, 2
        %v2828 = vadd.f32 %v2826, %v2827
        %v2829 = vrot.slane %v2828, 1
        %v2830 = vadd.f32 %v2828, %v2829
        %v2831 = vadd.f32 %v2759, %v2760
        %v2832 = vrot.slane %v2831, 4
        %v2833 = vadd.f32 %v2831, %v2832
        %v2834 = vrot.slane %v2833, 2
        %v2835 = vadd.f32 %v2833, %v2834
        %v2836 = vrot.slane %v2835, 1
        %v2837 = vadd.f32 %v2835, %v2836
        %v2838 = vadd.f32 %v2761, %v2762
        %v2839 = vrot.slane %v2838, 4
        %v2840 = vadd.f32 %v2838, %v2839
        %v2841 = vrot.slane %v2840, 2
        %v2842 = vadd.f32 %v2840, %v2841
        %v2843 = vrot.slane %v2842, 1
        %v2844 = vadd.f32 %v2842, %v2843
        %v2845 = vadd.f32 %v2763, %v2764
        %v2846 = vrot.slane %v2845, 4
        %v2847 = vadd.f32 %v2845, %v2846
        %v2848 = vrot.slane %v2847, 2
        %v2849 = vadd.f32 %v2847, %v2848
        %v2850 = vrot.slane %v2849, 1
        %v2851 = vadd.f32 %v2849, %v2850
        %v2852 = vadd.f32 %v2765, %v2766
        %v2853 = vrot.slane %v2852, 4
        %v2854 = vadd.f32 %v2852, %v2853
        %v2855 = vrot.slane %v2854, 2
        %v2856 = vadd.f32 %v2854, %v2855
        %v2857 = vrot.slane %v2856, 1
        %v2858 = vadd.f32 %v2856, %v2857
        %v2859 = vadd.f32 %v2767, %v2768
        %v2860 = vrot.slane %v2859, 4
        %v2861 = vadd.f32 %v2859, %v2860
        %v2862 = vrot.slane %v2861, 2
        %v2863 = vadd.f32 %v2861, %v2862
        %v2864 = vrot.slane %v2863, 1
        %v2865 = vadd.f32 %v2863, %v2864
        %v2866 = vadd.f32 %v2769, %v2770
        %v2867 = vrot.slane %v2866, 4
        %v2868 = vadd.f32 %v2866, %v2867
        %v2869 = vrot.slane %v2868, 2
        %v2870 = vadd.f32 %v2868, %v2869
        %v2871 = vrot.slane %v2870, 1
        %v2872 = vadd.f32 %v2870, %v2871
        %v2873 = vadd.f32 %v2771, %v2772
        %v2874 = vrot.slane %v2873, 4
        %v2875 = vadd.f32 %v2873, %v2874
        %v2876 = vrot.slane %v2875, 2
        %v2877 = vadd.f32 %v2875, %v2876
        %v2878 = vrot.slane %v2877, 1
        %v2879 = vadd.f32 %v2877, %v2878
        %v2880 = vadd.f32 %v2773, %v2774
        %v2881 = vrot.slane %v2880, 4
        %v2882 = vadd.f32 %v2880, %v2881
        %v2883 = vrot.slane %v2882, 2
        %v2884 = vadd.f32 %v2882, %v2883
        %v2885 = vrot.slane %v2884, 1
        %v2886 = vadd.f32 %v2884, %v2885
        %v2887 = vpack.c.bf16 %v2781, %v2781
        %v2888 = vpack.c.bf16 %v2788, %v2788
        %v2889 = vpack.c.bf16 %v2795, %v2795
        %v2890 = vpack.c.bf16 %v2802, %v2802
        %v2891 = vpack.c.bf16 %v2809, %v2809
        %v2892 = vpack.c.bf16 %v2816, %v2816
        %v2893 = vpack.c.bf16 %v2823, %v2823
        %v2894 = vpack.c.bf16 %v2830, %v2830
        %v2895 = vpack.c.bf16 %v2837, %v2837
        %v2896 = vpack.c.bf16 %v2844, %v2844
        %v2897 = vpack.c.bf16 %v2851, %v2851
        %v2898 = vpack.c.bf16 %v2858, %v2858
        %v2899 = vpack.c.bf16 %v2865, %v2865
        %v2900 = vpack.c.bf16 %v2872, %v2872
        %v2901 = vpack.c.bf16 %v2879, %v2879
        %v2902 = vpack.c.bf16 %v2886, %v2886
        %s2903 = scalar_lea.vmem [#allocation5], 128
        %v2904 = vld [vmem:[%s2903] sm:$0xf]
        %v2905 = vld [vmem:[%s2903 + $0x4] sm:$0xf]
        %v2906 = vld [vmem:[%s2903 + $0x8] sm:$0xf]
        %v2907 = vld [vmem:[%s2903 + $0xc] sm:$0xf]
        %v2908 = vld [vmem:[%s2903 + $0x10] sm:$0xf]
        %v2909 = vld [vmem:[%s2903 + $0x14] sm:$0xf]
        %v2910 = vld [vmem:[%s2903 + $0x18] sm:$0xf]
        %v2911 = vld [vmem:[%s2903 + $0x1c] sm:$0xf]
        %v2912 = vld [vmem:[%s2903 + $0x20] sm:$0xf]
        %v2913 = vld [vmem:[%s2903 + $0x24] sm:$0xf]
        %v2914 = vld [vmem:[%s2903 + $0x28] sm:$0xf]
        %v2915 = vld [vmem:[%s2903 + $0x2c] sm:$0xf]
        %v2916 = vld [vmem:[%s2903 + $0x30] sm:$0xf]
        %v2917 = vld [vmem:[%s2903 + $0x34] sm:$0xf]
        %v2918 = vld [vmem:[%s2903 + $0x38] sm:$0xf]
        %v2919 = vld [vmem:[%s2903 + $0x3c] sm:$0xf]
        %v2920 = vld [vmem:[%s6 + $0x4] sm:$0x1]
        %v2921 = vlaneseq
        %v2922 = vshrl.u32 %v2921, 7
        %v2923 = vsub.s32 0, %v2922
        %v2924 = vrot.slane %v2920, %v2923
        %v2941 = vunpack.c.l.b16 %v2887
        %v2942 = vunpack.c.l.b16 %v2888
        %v2943 = vunpack.c.l.b16 %v2889
        %v2944 = vunpack.c.l.b16 %v2890
        %v2945 = vunpack.c.l.b16 %v2891
        %v2946 = vunpack.c.l.b16 %v2892
        %v2947 = vunpack.c.l.b16 %v2893
        %v2948 = vunpack.c.l.b16 %v2894
        %v2949 = vunpack.c.l.b16 %v2895
        %v2950 = vunpack.c.l.b16 %v2896
        %v2951 = vunpack.c.l.b16 %v2897
        %v2952 = vunpack.c.l.b16 %v2898
        %v2953 = vunpack.c.l.b16 %v2899
        %v2954 = vunpack.c.l.b16 %v2900
        %v2955 = vunpack.c.l.b16 %v2901
        %v2956 = vunpack.c.l.b16 %v2902
        %v2957 = vsel %vm1965, %v2942, %v2941
        %v2958 = vsel %vm1967, %v2943, %v2957
        %v2959 = vsel %vm1969, %v2944, %v2958
        %v2960 = vsel %vm1971, %v2945, %v2959
        %v2961 = vsel %vm1973, %v2946, %v2960
        %v2962 = vsel %vm1975, %v2947, %v2961
        %v2963 = vsel %vm1977, %v2948, %v2962
        %v2964 = vsel %vm1965, %v2950, %v2949
        %v2965 = vsel %vm1967, %v2951, %v2964
        %v2966 = vsel %vm1969, %v2952, %v2965
        %v2967 = vsel %vm1971, %v2953, %v2966
        %v2968 = vsel %vm1973, %v2954, %v2967
        %v2969 = vsel %vm1975, %v2955, %v2968
        %v2970 = vsel %vm1977, %v2956, %v2969
        %v2971 = vpack.c.b16 %v2970, %v2963
        %v2989 = vunpack.c.l.b16 %v2904
        %v2990 = vunpack.c.l.b16 %v2905
        %v2991 = vunpack.c.l.b16 %v2906
        %v2992 = vunpack.c.l.b16 %v2907
        %v2993 = vunpack.c.l.b16 %v2908
        %v2994 = vunpack.c.l.b16 %v2909
        %v2995 = vunpack.c.l.b16 %v2910
        %v2996 = vunpack.c.l.b16 %v2911
        %v2997 = vunpack.c.l.b16 %v2912
        %v2998 = vunpack.c.l.b16 %v2913
        %v2999 = vunpack.c.l.b16 %v2914
        %v3000 = vunpack.c.l.b16 %v2915
        %v3001 = vunpack.c.l.b16 %v2916
        %v3002 = vunpack.c.l.b16 %v2917
        %v3003 = vunpack.c.l.b16 %v2918
        %v3004 = vunpack.c.l.b16 %v2919
        %v3005 = vpack.c.b16 %v2990, %v2989
        %v3006 = vpack.c.b16 %v2992, %v2991
        %v3007 = vpack.c.b16 %v2994, %v2993
        %v3008 = vpack.c.b16 %v2996, %v2995
        %v3009 = vpack.c.b16 %v2998, %v2997
        %v3010 = vpack.c.b16 %v3000, %v2999
        %v3011 = vpack.c.b16 %v3002, %v3001
        %v3012 = vpack.c.b16 %v3004, %v3003
        %3021 = vmatprep.subr.bf16.mxu0 0
        %3022 = vmatpush1.bf16.msra.mxu0 %v3005
        %3023 = vmatprep.subr.bf16.mxu0 0
        %3024 = vmatpush1.bf16.msra.mxu0 %v3006
        %3025 = vmatprep.subr.bf16.mxu0 0
        %3026 = vmatpush1.bf16.msra.mxu0 %v3007
        %3027 = vmatprep.subr.bf16.mxu0 0
        %3028 = vmatpush1.bf16.msra.mxu0 %v3008
        %3029 = vmatprep.subr.bf16.mxu0 0
        %3030 = vmatpush1.bf16.msra.mxu0 %v3009
        %3031 = vmatprep.subr.bf16.mxu0 0
        %3032 = vmatpush1.bf16.msra.mxu0 %v3010
        %3033 = vmatprep.subr.bf16.mxu0 0
        %3034 = vmatpush1.bf16.msra.mxu0 %v3011
        %3035 = vmatprep.subr.bf16.mxu0 0
        %3036 = vmatpush1.bf16.msra.mxu0 %v3012
        %3037 = vmatprep.subr.bf16.mxu0 0
        %3038 = vmatpush1.bf16.msra.mxu0 0
        %3039 = vmatprep.subr.bf16.mxu0 0
        %3040 = vmatpush1.bf16.msra.mxu0 0
        %3041 = vmatprep.subr.bf16.mxu0 0
        %3042 = vmatpush1.bf16.msra.mxu0 0
        %3043 = vmatprep.subr.bf16.mxu0 0
        %3044 = vmatpush1.bf16.msra.mxu0 0
        %3045 = vmatprep.subr.bf16.mxu0 0
        %3046 = vmatpush1.bf16.msra.mxu0 0
        %3047 = vmatprep.subr.bf16.mxu0 0
        %3048 = vmatpush1.bf16.msra.mxu0 0
        %3049 = vmatprep.subr.bf16.mxu0 0
        %3050 = vmatpush1.bf16.msra.mxu0 0
        %3051 = vmatprep.subr.bf16.mxu0 0
        %3052 = vmatpush1.bf16.msra.mxu0 0
        %3053 = vmatprep.mubr.bf16.mxu0 0
        %3054 = vmatmul.mubr.bf16.gmra.mrb[0].mxu0 %v2971
        %v3055 = vpop.f32.mrb[0].mxu0
        %v3056 = vadd.f32 %v2924, %v3055
        %v3057 = vpop.f32.mrb[0].mxu0
        %v3058 = vpop.f32.mrb[0].mxu0
        %v3059 = vadd.f32 %v2924, %v3058
        %v3060 = vpop.f32.mrb[0].mxu0
        %3061 = vdwg.mxu0
        %v3062 = vadd.f32 %v467, %v3056
        %v3063 = vadd.f32 %v468, %v3059
        %v3064 = vpack.c.bf16 %v3063, %v3062
        %s3065 = scalar_lea.vmem [#allocation5], 192
        %v3066 = vld [vmem:[%s3065] sm:$0xf]
        %v3067 = vld [vmem:[%s3065 + $0x4] sm:$0xf]
        %v3068 = vld [vmem:[%s3065 + $0x8] sm:$0xf]
        %v3069 = vld [vmem:[%s3065 + $0xc] sm:$0xf]
        %v3070 = vld [vmem:[%s3065 + $0x10] sm:$0xf]
        %v3071 = vld [vmem:[%s3065 + $0x14] sm:$0xf]
        %v3072 = vld [vmem:[%s3065 + $0x18] sm:$0xf]
        %v3073 = vld [vmem:[%s3065 + $0x1c] sm:$0xf]
        %v3074 = vld [vmem:[%s3065 + $0x20] sm:$0xf]
        %v3075 = vld [vmem:[%s3065 + $0x24] sm:$0xf]
        %v3076 = vld [vmem:[%s3065 + $0x28] sm:$0xf]
        %v3077 = vld [vmem:[%s3065 + $0x2c] sm:$0xf]
        %v3078 = vld [vmem:[%s3065 + $0x30] sm:$0xf]
        %v3079 = vld [vmem:[%s3065 + $0x34] sm:$0xf]
        %v3080 = vld [vmem:[%s3065 + $0x38] sm:$0xf]
        %v3081 = vld [vmem:[%s3065 + $0x3c] sm:$0xf]
        %v3082 = vld [vmem:[%s6 + $0x5] sm:$0x1]
        %v3083 = vlaneseq
        %v3084 = vshrl.u32 %v3083, 7
        %v3085 = vsub.s32 0, %v3084
        %v3086 = vrot.slane %v3082, %v3085
        %v3103 = vunpack.c.l.b16 %v3066
        %v3104 = vunpack.c.l.b16 %v3067
        %v3105 = vunpack.c.l.b16 %v3068
        %v3106 = vunpack.c.l.b16 %v3069
        %v3107 = vunpack.c.l.b16 %v3070
        %v3108 = vunpack.c.l.b16 %v3071
        %v3109 = vunpack.c.l.b16 %v3072
        %v3110 = vunpack.c.l.b16 %v3073
        %v3111 = vunpack.c.l.b16 %v3074
        %v3112 = vunpack.c.l.b16 %v3075
        %v3113 = vunpack.c.l.b16 %v3076
        %v3114 = vunpack.c.l.b16 %v3077
        %v3115 = vunpack.c.l.b16 %v3078
        %v3116 = vunpack.c.l.b16 %v3079
        %v3117 = vunpack.c.l.b16 %v3080
        %v3118 = vunpack.c.l.b16 %v3081
        %v3119 = vpack.c.b16 %v3104, %v3103
        %v3120 = vpack.c.b16 %v3106, %v3105
        %v3121 = vpack.c.b16 %v3108, %v3107
        %v3122 = vpack.c.b16 %v3110, %v3109
        %v3123 = vpack.c.b16 %v3112, %v3111
        %v3124 = vpack.c.b16 %v3114, %v3113
        %v3125 = vpack.c.b16 %v3116, %v3115
        %v3126 = vpack.c.b16 %v3118, %v3117
        %3135 = vmatprep.subr.bf16.mxu0 0
        %3136 = vmatpush1.bf16.msra.mxu0 %v3119
        %3137 = vmatprep.subr.bf16.mxu0 0
        %3138 = vmatpush1.bf16.msra.mxu0 %v3120
        %3139 = vmatprep.subr.bf16.mxu0 0
        %3140 = vmatpush1.bf16.msra.mxu0 %v3121
        %3141 = vmatprep.subr.bf16.mxu0 0
        %3142 = vmatpush1.bf16.msra.mxu0 %v3122
        %3143 = vmatprep.subr.bf16.mxu0 0
        %3144 = vmatpush1.bf16.msra.mxu0 %v3123
        %3145 = vmatprep.subr.bf16.mxu0 0
        %3146 = vmatpush1.bf16.msra.mxu0 %v3124
        %3147 = vmatprep.subr.bf16.mxu0 0
        %3148 = vmatpush1.bf16.msra.mxu0 %v3125
        %3149 = vmatprep.subr.bf16.mxu0 0
        %3150 = vmatpush1.bf16.msra.mxu0 %v3126
        %3151 = vmatprep.subr.bf16.mxu0 0
        %3152 = vmatpush1.bf16.msra.mxu0 0
        %3153 = vmatprep.subr.bf16.mxu0 0
        %3154 = vmatpush1.bf16.msra.mxu0 0
        %3155 = vmatprep.subr.bf16.mxu0 0
        %3156 = vmatpush1.bf16.msra.mxu0 0
        %3157 = vmatprep.subr.bf16.mxu0 0
        %3158 = vmatpush1.bf16.msra.mxu0 0
        %3159 = vmatprep.subr.bf16.mxu0 0
        %3160 = vmatpush1.bf16.msra.mxu0 0
        %3161 = vmatprep.subr.bf16.mxu0 0
        %3162 = vmatpush1.bf16.msra.mxu0 0
        %3163 = vmatprep.subr.bf16.mxu0 0
        %3164 = vmatpush1.bf16.msra.mxu0 0
        %3165 = vmatprep.subr.bf16.mxu0 0
        %3166 = vmatpush1.bf16.msra.mxu0 0
        %3167 = vmatprep.mubr.bf16.mxu0 0
        %3168 = vmatmul.mubr.bf16.gmra.mrb[0].mxu0 %v3064
        %v3169 = vpop.f32.mrb[0].mxu0
        %v3170 = vadd.f32 %v3086, %v3169
        %v3171 = vpop.f32.mrb[0].mxu0
        %v3172 = vpop.f32.mrb[0].mxu0
        %v3173 = vadd.f32 %v3086, %v3172
        %v3174 = vpop.f32.mrb[0].mxu0
        %3175 = vdwg.mxu0
        %v3176 = vmax.f32 %v3170, 0.0
        %v3177 = vmax.f32 %v3173, 0.0
        %v3178 = vpack.c.bf16 %v3177, %v3176
        %s3179 = scalar_lea.vmem [#allocation5], 256
        %v3180 = vld [vmem:[%s3179] sm:$0xf]
        %v3181 = vld [vmem:[%s3179 + $0x4] sm:$0xf]
        %v3182 = vld [vmem:[%s3179 + $0x8] sm:$0xf]
        %v3183 = vld [vmem:[%s3179 + $0xc] sm:$0xf]
        %v3184 = vld [vmem:[%s3179 + $0x10] sm:$0xf]
        %v3185 = vld [vmem:[%s3179 + $0x14] sm:$0xf]
        %v3186 = vld [vmem:[%s3179 + $0x18] sm:$0xf]
        %v3187 = vld [vmem:[%s3179 + $0x1c] sm:$0xf]
        %v3188 = vld [vmem:[%s3179 + $0x20] sm:$0xf]
        %v3189 = vld [vmem:[%s3179 + $0x24] sm:$0xf]
        %v3190 = vld [vmem:[%s3179 + $0x28] sm:$0xf]
        %v3191 = vld [vmem:[%s3179 + $0x2c] sm:$0xf]
        %v3192 = vld [vmem:[%s3179 + $0x30] sm:$0xf]
        %v3193 = vld [vmem:[%s3179 + $0x34] sm:$0xf]
        %v3194 = vld [vmem:[%s3179 + $0x38] sm:$0xf]
        %v3195 = vld [vmem:[%s3179 + $0x3c] sm:$0xf]
        %v3196 = vld [vmem:[%s6 + $0x6] sm:$0x1]
        %v3197 = vlaneseq
        %v3198 = vshrl.u32 %v3197, 7
        %v3199 = vsub.s32 0, %v3198
        %v3200 = vrot.slane %v3196, %v3199
        %v3217 = vunpack.c.l.b16 %v3180
        %v3218 = vunpack.c.l.b16 %v3181
        %v3219 = vunpack.c.l.b16 %v3182
        %v3220 = vunpack.c.l.b16 %v3183
        %v3221 = vunpack.c.l.b16 %v3184
        %v3222 = vunpack.c.l.b16 %v3185
        %v3223 = vunpack.c.l.b16 %v3186
        %v3224 = vunpack.c.l.b16 %v3187
        %v3225 = vunpack.c.l.b16 %v3188
        %v3226 = vunpack.c.l.b16 %v3189
        %v3227 = vunpack.c.l.b16 %v3190
        %v3228 = vunpack.c.l.b16 %v3191
        %v3229 = vunpack.c.l.b16 %v3192
        %v3230 = vunpack.c.l.b16 %v3193
        %v3231 = vunpack.c.l.b16 %v3194
        %v3232 = vunpack.c.l.b16 %v3195
        %v3233 = vpack.c.b16 %v3218, %v3217
        %v3234 = vpack.c.b16 %v3220, %v3219
        %v3235 = vpack.c.b16 %v3222, %v3221
        %v3236 = vpack.c.b16 %v3224, %v3223
        %v3237 = vpack.c.b16 %v3226, %v3225
        %v3238 = vpack.c.b16 %v3228, %v3227
        %v3239 = vpack.c.b16 %v3230, %v3229
        %v3240 = vpack.c.b16 %v3232, %v3231
        %3249 = vmatprep.subr.bf16.mxu0 0
        %3250 = vmatpush1.bf16.msra.mxu0 %v3233
        %3251 = vmatprep.subr.bf16.mxu0 0
        %3252 = vmatpush1.bf16.msra.mxu0 %v3234
        %3253 = vmatprep.subr.bf16.mxu0 0
        %3254 = vmatpush1.bf16.msra.mxu0 %v3235
        %3255 = vmatprep.subr.bf16.mxu0 0
        %3256 = vmatpush1.bf16.msra.mxu0 %v3236
        %3257 = vmatprep.subr.bf16.mxu0 0
        %3258 = vmatpush1.bf16.msra.mxu0 %v3237
        %3259 = vmatprep.subr.bf16.mxu0 0
        %3260 = vmatpush1.bf16.msra.mxu0 %v3238
        %3261 = vmatprep.subr.bf16.mxu0 0
        %3262 = vmatpush1.bf16.msra.mxu0 %v3239
        %3263 = vmatprep.subr.bf16.mxu0 0
        %3264 = vmatpush1.bf16.msra.mxu0 %v3240
        %3265 = vmatprep.subr.bf16.mxu0 0
        %3266 = vmatpush1.bf16.msra.mxu0 0
        %3267 = vmatprep.subr.bf16.mxu0 0
        %3268 = vmatpush1.bf16.msra.mxu0 0
        %3269 = vmatprep.subr.bf16.mxu0 0
        %3270 = vmatpush1.bf16.msra.mxu0 0
        %3271 = vmatprep.subr.bf16.mxu0 0
        %3272 = vmatpush1.bf16.msra.mxu0 0
        %3273 = vmatprep.subr.bf16.mxu0 0
        %3274 = vmatpush1.bf16.msra.mxu0 0
        %3275 = vmatprep.subr.bf16.mxu0 0
        %3276 = vmatpush1.bf16.msra.mxu0 0
        %3277 = vmatprep.subr.bf16.mxu0 0
        %3278 = vmatpush1.bf16.msra.mxu0 0
        %3279 = vmatprep.subr.bf16.mxu0 0
        %3280 = vmatpush1.bf16.msra.mxu0 0
        %3281 = vmatprep.mubr.bf16.mxu0 0
        %3282 = vmatmul.mubr.bf16.gmra.mrb[0].mxu0 %v3178
        %v3283 = vpop.f32.mrb[0].mxu0
        %v3284 = vadd.f32 %v3200, %v3283
        %v3285 = vpop.f32.mrb[0].mxu0
        %v3286 = vpop.f32.mrb[0].mxu0
        %v3287 = vadd.f32 %v3200, %v3286
        %v3288 = vpop.f32.mrb[0].mxu0
        %3289 = vdwg.mxu0
        %v3290 = vadd.f32 %v3062, %v3284
        %v3291 = vadd.f32 %v3063, %v3287
        %v3292 = vmax.f32 %v3290, 0.0
        %v3293 = vmax.f32 %v3291, 0.0
        %v3294 = vpack.c.bf16 %v3293, %v3292
        %s3295 = scalar_lea.vmem [#allocation5], 320
        %v3296 = vld [vmem:[%s3295] sm:$0xf]
        %v3297 = vld [vmem:[%s3295 + $0x4] sm:$0xf]
        %v3298 = vld [vmem:[%s3295 + $0x8] sm:$0xf]
        %v3299 = vld [vmem:[%s3295 + $0xc] sm:$0xf]
        %v3300 = vld [vmem:[%s3295 + $0x10] sm:$0xf]
        %v3301 = vld [vmem:[%s3295 + $0x14] sm:$0xf]
        %v3302 = vld [vmem:[%s3295 + $0x18] sm:$0xf]
        %v3303 = vld [vmem:[%s3295 + $0x1c] sm:$0xf]
        %v3304 = vld [vmem:[%s3295 + $0x20] sm:$0xf]
        %v3305 = vld [vmem:[%s3295 + $0x24] sm:$0xf]
        %v3306 = vld [vmem:[%s3295 + $0x28] sm:$0xf]
        %v3307 = vld [vmem:[%s3295 + $0x2c] sm:$0xf]
        %v3308 = vld [vmem:[%s3295 + $0x30] sm:$0xf]
        %v3309 = vld [vmem:[%s3295 + $0x34] sm:$0xf]
        %v3310 = vld [vmem:[%s3295 + $0x38] sm:$0xf]
        %v3311 = vld [vmem:[%s3295 + $0x3c] sm:$0xf]
        %v3312 = vld [vmem:[%s6 + $0x7] sm:$0x1]
        %v3313 = vlaneseq
        %v3314 = vshrl.u32 %v3313, 7
        %v3315 = vsub.s32 0, %v3314
        %v3316 = vrot.slane %v3312, %v3315
        %v3333 = vunpack.c.l.b16 %v3296
        %v3334 = vunpack.c.l.b16 %v3297
        %v3335 = vunpack.c.l.b16 %v3298
        %v3336 = vunpack.c.l.b16 %v3299
        %v3337 = vunpack.c.l.b16 %v3300
        %v3338 = vunpack.c.l.b16 %v3301
        %v3339 = vunpack.c.l.b16 %v3302
        %v3340 = vunpack.c.l.b16 %v3303
        %v3341 = vunpack.c.l.b16 %v3304
        %v3342 = vunpack.c.l.b16 %v3305
        %v3343 = vunpack.c.l.b16 %v3306
        %v3344 = vunpack.c.l.b16 %v3307
        %v3345 = vunpack.c.l.b16 %v3308
        %v3346 = vunpack.c.l.b16 %v3309
        %v3347 = vunpack.c.l.b16 %v3310
        %v3348 = vunpack.c.l.b16 %v3311
        %v3349 = vpack.c.b16 %v3334, %v3333
        %v3350 = vpack.c.b16 %v3336, %v3335
        %v3351 = vpack.c.b16 %v3338, %v3337
        %v3352 = vpack.c.b16 %v3340, %v3339
        %v3353 = vpack.c.b16 %v3342, %v3341
        %v3354 = vpack.c.b16 %v3344, %v3343
        %v3355 = vpack.c.b16 %v3346, %v3345
        %v3356 = vpack.c.b16 %v3348, %v3347
        %3365 = vmatprep.subr.bf16.mxu0 0
        %3366 = vmatpush1.bf16.msra.mxu0 %v3349
        %3367 = vmatprep.subr.bf16.mxu0 0
        %3368 = vmatpush1.bf16.msra.mxu0 %v3350
        %3369 = vmatprep.subr.bf16.mxu0 0
        %3370 = vmatpush1.bf16.msra.mxu0 %v3351
        %3371 = vmatprep.subr.bf16.mxu0 0
        %3372 = vmatpush1.bf16.msra.mxu0 %v3352
        %3373 = vmatprep.subr.bf16.mxu0 0
        %3374 = vmatpush1.bf16.msra.mxu0 %v3353
        %3375 = vmatprep.subr.bf16.mxu0 0
        %3376 = vmatpush1.bf16.msra.mxu0 %v3354
        %3377 = vmatprep.subr.bf16.mxu0 0
        %3378 = vmatpush1.bf16.msra.mxu0 %v3355
        %3379 = vmatprep.subr.bf16.mxu0 0
        %3380 = vmatpush1.bf16.msra.mxu0 %v3356
        %3381 = vmatprep.subr.bf16.mxu0 0
        %3382 = vmatpush1.bf16.msra.mxu0 0
        %3383 = vmatprep.subr.bf16.mxu0 0
        %3384 = vmatpush1.bf16.msra.mxu0 0
        %3385 = vmatprep.subr.bf16.mxu0 0
        %3386 = vmatpush1.bf16.msra.mxu0 0
        %3387 = vmatprep.subr.bf16.mxu0 0
        %3388 = vmatpush1.bf16.msra.mxu0 0
        %3389 = vmatprep.subr.bf16.mxu0 0
        %3390 = vmatpush1.bf16.msra.mxu0 0
        %3391 = vmatprep.subr.bf16.mxu0 0
        %3392 = vmatpush1.bf16.msra.mxu0 0
        %3393 = vmatprep.subr.bf16.mxu0 0
        %3394 = vmatpush1.bf16.msra.mxu0 0
        %3395 = vmatprep.subr.bf16.mxu0 0
        %3396 = vmatpush1.bf16.msra.mxu0 0
        %3397 = vmatprep.mubr.bf16.mxu0 0
        %3398 = vmatmul.mubr.bf16.gmra.mrb[0].mxu0 %v3294
        %v3399 = vpop.f32.mrb[0].mxu0
        %v3400 = vadd.f32 %v3316, %v3399
        %v3401 = vpop.f32.mrb[0].mxu0
        %v3402 = vpop.f32.mrb[0].mxu0
        %v3403 = vadd.f32 %v3316, %v3402
        %v3404 = vpop.f32.mrb[0].mxu0
        %3405 = vdwg.mxu0
        %3406 = vst [vmem:[%s344] sm:$0xff] %v3400
        %3407 = vst [vmem:[%s344 + $0x8] sm:$0xff] %v3403
        %s3408 = sand.u32 %s195, 1
        %s3409 = scalar_lea.sflag [#allocation4], %s3408
        %s3410 = sand.u32 %s195, 1
        %s3411 = smul.addr %s3410, 16
        %s3412 = scalar_lea.vmem [#allocation7], %s3411
        // Predicated region
        $region57: #{tpu_custom_call.1} parent=47 // pred_check
          %p3413 = pneg %p205
        $region58: #{tpu_custom_call.1} parent=47 // pred_check_branch
          %3415 = sbr.rel (%p3413) target = $region60
        $region59: #{tpu_custom_call.1} parent=47 // pred_region
          %s3416 = smul.u32 2, %s25
          %s3418 = ssub.s32 256, 256
          %3419 = vsyncadd %s3409, %s3418
          %s3420 = smul.addr %s3416, 128
          %s3421 = scalar_lea.hbm %s7, %s3420
          %s3422 = sshll.u32 %s3412, 4
          %s3423 = int_to_ptr.vmem [resolvable:$true] %s3422
          %3428 = dma.vmem_to_hbm [thread:$0]  %s3423, 256, %s3421, %s3409, 128, 128, 8
        $region60: #{tpu_custom_call.1} parent=47 // pred_fallthru
          _
      $region48: #{tpu_custom_call.1} parent=5 // pred_fallthru
        _
      %p3429 = scmp.le.s32.totalorder 2, %s20
      // Predicated region
      $region61: #{tpu_custom_call.1} parent=5 // pred_check
        %p3430 = pneg %p3429
      $region62: #{tpu_custom_call.1} parent=5 // pred_check_branch
        %3432 = sbr.rel (%p3430) target = $region64
      $region63: #{tpu_custom_call.1} parent=5 // pred_region
        %s3433 = ssub.s32 %s20, 2
        // Predicated region
        $region65: #{tpu_custom_call.1} parent=63 // pred_check
          %p3434 = pneg %p211
        $region66: #{tpu_custom_call.1} parent=63 // pred_check_branch
          %3436 = sbr.rel (%p3434) target = $region68
        $region67: #{tpu_custom_call.1} parent=63 // pred_region
          %s3437 = sand.u32 %s196, 1
          %s3438 = scalar_lea.sflag [#allocation4], %s3437
          %s3439 = sand.u32 %s196, 1
          %s3440 = smul.addr %s3439, 16
          %s3441 = scalar_lea.vmem [#allocation7], %s3440
          %3442 = dma.done %s3438, 256
        $region68: #{tpu_custom_call.1} parent=63 // pred_fallthru
          _
      $region64: #{tpu_custom_call.1} parent=5 // pred_fallthru
        _
    $region6: #{tpu_custom_call.1} parent=1 // loop_footer
      %s24 = sadd.s32 1, %s20
    $region7: #{tpu_custom_call.1} parent=1 // loop_footer_branch
      %19 = sbr.rel target = $region3
    $region8: #{tpu_custom_call.1} parent=1 // loop_exit
      _
    %3443 = vsyncpa [#allocation3], 1
    %s3444 = scalar_lea.sflag [#allocation3], 1
    %3445 = vsyncpa %s3444, 1
    %3446 = vsyncpa [#allocation6], 1
    %3447 = vsyncpa [#allocation4], 1
    %s3448 = scalar_lea.sflag [#allocation4], 1
    %3449 = vsyncpa %s3448, 1

</llo_original>
